<compile_context>
chip_gen: v6e
topology: v6e:2x2x1
jax: 0.10.0
libtpu: 0.0.40
codegen_flags: <defaults>
</compile_context>

<pallas_src>
import jax
import jax.numpy as jnp
from jax.experimental import pallas as pl
from jax.experimental.pallas import tpu as pltpu


# ----------------------------- Pallas kernels ------------------------------

def _conv_pool_relu_kernel(w_ref, b_ref, p_ref, o_ref):
    # w: [Cout, K]   b: [Cout, 1]   p: [4, K, tm]   o: [Cout, tm]
    # Four MXU matmuls (one per 2x2 pool-window shift), max-combined, then
    # bias + ReLU.  Output is lane-dense: tm lanes, Cout sublanes.
    z = jnp.dot(w_ref[...], p_ref[0], preferred_element_type=jnp.float32)
    for i in range(1, 4):
        z = jnp.maximum(
            z, jnp.dot(w_ref[...], p_ref[i], preferred_element_type=jnp.float32))
    o_ref[...] = jnp.maximum(z + b_ref[...], 0.0)


def _fc_fused_kernel(x_ref, w1_ref, b1_ref, w2_ref, b2_ref, o_ref):
    # fc1 (matmul+bias+ReLU) and fc2 (matmul+bias+log_softmax) fused; the
    # [tb, 500] intermediate never leaves VMEM.
    h = jnp.dot(x_ref[...], w1_ref[...], preferred_element_type=jnp.float32)
    h = jnp.maximum(h + b1_ref[...], 0.0)
    z = jnp.dot(h, w2_ref[...], preferred_element_type=jnp.float32) + b2_ref[...]
    m = jnp.max(z, axis=-1, keepdims=True)
    lse = m + jnp.log(jnp.sum(jnp.exp(z - m), axis=-1, keepdims=True))
    o_ref[...] = z - lse


# ----------------------------- pallas_call glue -----------------------------

def conv5x5_pool_relu(w, b, p):
    # w: [Cout, K], b: [Cout, 1], p: [4, K, M]  ->  [Cout, M]
    cout, K = w.shape
    m = p.shape[-1]
    tm = m if m <= 512 else 512           # 512 is 128-divisible; else full block
    return pl.pallas_call(
        _conv_pool_relu_kernel,
        grid=(pl.cdiv(m, tm),),
        in_specs=[
            pl.BlockSpec((cout, K), lambda j: (0, 0)),
            pl.BlockSpec((cout, 1), lambda j: (0, 0)),
            pl.BlockSpec((4, K, tm), lambda j: (0, 0, j)),
        ],
        out_specs=pl.BlockSpec((cout, tm), lambda j: (0, j)),
        out_shape=jax.ShapeDtypeStruct((cout, m), jnp.float32),
        compiler_params=pltpu.CompilerParams(
            dimension_semantics=("parallel",)),
    )(w, b, p)


def fc_fused(x, w1, b1, w2p, b2p):
    # x: [B, 800], w1: [800, 500], b1: [1, 500], w2p: [500, 128], b2p: [1, 128]
    B, K1 = x.shape
    N1 = w1.shape[1]
    N2 = w2p.shape[1]
    tb = B if B <= 256 else 256
    return pl.pallas_call(
        _fc_fused_kernel,
        grid=(pl.cdiv(B, tb),),
        in_specs=[
            pl.BlockSpec((tb, K1), lambda i: (i, 0)),
            pl.BlockSpec((K1, N1), lambda i: (0, 0)),
            pl.BlockSpec((1, N1), lambda i: (0, 0)),
            pl.BlockSpec((N1, N2), lambda i: (0, 0)),
            pl.BlockSpec((1, N2), lambda i: (0, 0)),
        ],
        out_specs=pl.BlockSpec((tb, N2), lambda i: (i, 0)),
        out_shape=jax.ShapeDtypeStruct((B, N2), jnp.float32),
        compiler_params=pltpu.CompilerParams(
            dimension_semantics=("parallel",)),
    )(x, w1, b1, w2p, b2p)


# ------------------------- patch extraction (glue) ---------------------------

def _pool_patches(a):
    # a: [C, B, H, W] -> P: [4, C*25, B*OH*OW] for a 5x5 valid conv (stride 1)
    # followed by a 2x2/2 max pool.  P[i, (c,kh,kw), (b,oh,ow)] =
    #   a[c, b, 2*oh + dh + kh, 2*ow + dw + kw]   with i = (dh, dw).
    C, B, H, W = a.shape
    OH = (H - 4) // 2
    OW = (W - 4) // 2
    shifts = []
    for dh in range(2):
        for dw in range(2):
            cols = []
            for kh in range(5):
                for kw in range(5):
                    h0 = dh + kh
                    w0 = dw + kw
                    cols.append(a[:, :, h0:h0 + 2 * OH:2, w0:w0 + 2 * OW:2])
            k = jnp.stack(cols, axis=1)                  # [C, 25, B, OH, OW]
            shifts.append(k.reshape(C * 25, B * OH * OW))
    return jnp.stack(shifts, axis=0), OH, OW             # [4, C*25, B*OH*OW]


# ------------------------------ Network ------------------------------------

def init_params(key):
    def uniform(k, shape, fan_in):
        bound = 1.0 / jnp.sqrt(fan_in)
        return jax.random.uniform(k, shape, jnp.float32, -bound, bound)

    ks = jax.random.split(key, 8)
    fc2_w = uniform(ks[6], (500, 10), 500)
    fc2_b = uniform(ks[7], (10,), 500)
    # fc2 padded to a full 128-lane tile (unmasked stores, clean softmax
    # epilogue); padded columns get bias -1e30 so they contribute exp(.) = 0.
    fc2_wp = jnp.zeros((500, 128), jnp.float32).at[:, :10].set(fc2_w)
    fc2_bp = jnp.full((1, 128), -1e30, jnp.float32).at[0, :10].set(fc2_b)
    return {
        # conv weights pre-flattened to the lane-dense matmul form [Cout, Cin*25]
        "conv1_w": uniform(ks[0], (20, 1, 5, 5), 1 * 5 * 5).reshape(20, 25),
        "conv1_b": uniform(ks[1], (20,), 1 * 5 * 5).reshape(20, 1),
        "conv2_w": uniform(ks[2], (50, 20, 5, 5), 20 * 5 * 5).reshape(50, 500),
        "conv2_b": uniform(ks[3], (50,), 20 * 5 * 5).reshape(50, 1),
        # Linear weights stored pre-transposed as [in, out]
        "fc1_w": uniform(ks[4], (4 * 4 * 50, 500), 4 * 4 * 50),
        "fc1_b": uniform(ks[5], (1, 500), 4 * 4 * 50),
        "fc2_w": fc2_wp,
        "fc2_b": fc2_bp,
    }


def network_forward(params, x):
    # x: [B, 1, 28, 28] (NCHW).  Activations stay [C, B, H, W] between layers
    # (no NCHW round trips); only one small transpose builds fc1's input.
    B = x.shape[0]
    a0 = x.transpose(1, 0, 2, 3)                            # [1, B, 28, 28]

    # conv1 + ReLU + 2x2 pool (fused)
    p1, oh1, ow1 = _pool_patches(a0)                        # [4, 25, B*144]
    h1 = conv5x5_pool_relu(params["conv1_w"], params["conv1_b"], p1)  # [20, B*144]
    a1 = h1.reshape(20, B, oh1, ow1)                        # [20, B, 12, 12]

    # conv2 + ReLU + 2x2 pool (fused)
    # TODO(synk): at training-scale batches, loop the (kh,kw) contraction
    # inside the kernel (K as an "arbitrary" grid axis) instead of
    # materializing the 25x-inflated im2col matrix in HBM, and cast matmul
    # inputs to bf16 (f32 accumulation) once compute-bound.
    p2, oh2, ow2 = _pool_patches(a1)                        # [4, 500, B*16]
    h2 = conv5x5_pool_relu(params["conv2_w"], params["conv2_b"], p2)  # [50, B*16]

    # fc1 input in PyTorch's view(-1, 4*4*50) order: per-sample (c, h, w) flatten.
    xf = (h2.reshape(50, B, oh2 * ow2)
             .transpose(1, 0, 2)
             .reshape(B, 50 * oh2 * ow2))                   # [B, 800]

    out = fc_fused(xf, params["fc1_w"], params["fc1_b"],
                   params["fc2_w"], params["fc2_b"])        # [B, 128]
    return out[:, :10]


if __name__ == "__main__":
    key = jax.random.PRNGKey(0)
    k_param, k_x = jax.random.split(key)
    params = init_params(k_param)
    # 28x28 is forced by the module's 4*4*50 flatten; keep batch small.
    x = jax.random.normal(k_x, (2, 1, 28, 28), jnp.float32)

    fwd = jax.jit(network_forward)
    out = jax.block_until_ready(fwd(params, x))

    assert out.shape == (2, 10)
    # log_softmax rows must exponentiate-sum to ~1
    row_sums = jnp.exp(out).sum(axis=1)
    assert bool(jnp.all(jnp.isfinite(out)))
    assert bool(jnp.all(jnp.abs(row_sums - 1.0) < 1e-4))
    print("KERNEL_OK")
</pallas_src>

<mosaic_0001>
module attributes {stable_mosaic.version = 11 : i64} {
  func.func @_conv_pool_relu_kernel(%arg0: i32, %arg1: memref<20x25xf32, #tpu.memory_space<vmem>>, %arg2: memref<20x1xf32, #tpu.memory_space<vmem>>, %arg3: memref<4x25x288xf32, #tpu.memory_space<vmem>>, %arg4: memref<20x288xf32, #tpu.memory_space<vmem>>) attributes {dimension_semantics = [#tpu.dimension_semantics<parallel>], iteration_bounds = array<i64: 1>, scalar_prefetch = 0 : i64, scratch_operands = 0 : i64, tpu.core_type = #tpu.core_type<tc>, window_params = [{pipeline_mode = #tpu.pipeline_mode<synchronous>, transform_indices = @transform_0, window_bounds = array<i64: 20, 25>}, {pipeline_mode = #tpu.pipeline_mode<synchronous>, transform_indices = @transform_1, window_bounds = array<i64: 20, 1>}, {transform_indices = @transform_2, window_bounds = array<i64: 4, 25, 288>}, {transform_indices = @transform_3, window_bounds = array<i64: 20, 288>}]} {
    %c0 = arith.constant 0 : index
    %c0_0 = arith.constant 0 : index
    %0 = vector.load %arg1[%c0, %c0_0] : memref<20x25xf32, #tpu.memory_space<vmem>>, vector<20x25xf32>
    %c0_1 = arith.constant 0 : index
    %c0_2 = arith.constant 0 : index
    %c0_3 = arith.constant 0 : index
    %1 = vector.load %arg3[%c0_1, %c0_2, %c0_3] : memref<4x25x288xf32, #tpu.memory_space<vmem>>, vector<1x25x288xf32>
    %2 = vector.shape_cast %1 : vector<1x25x288xf32> to vector<25x288xf32>
    %cst = arith.constant dense<0.000000e+00> : vector<20x288xf32>
    %3 = tpu.matmul %0, %2, %cst {dimension_numbers = #tpu.dot_dimension_numbers<[1], [0], [0], [1], [0, 0, 1, 1], [], []>} : vector<20x25xf32>, vector<25x288xf32>, vector<20x288xf32> -> vector<20x288xf32>
    %c0_4 = arith.constant 0 : index
    %c0_5 = arith.constant 0 : index
    %4 = vector.load %arg1[%c0_4, %c0_5] : memref<20x25xf32, #tpu.memory_space<vmem>>, vector<20x25xf32>
    %c1 = arith.constant 1 : index
    %c0_6 = arith.constant 0 : index
    %c0_7 = arith.constant 0 : index
    %5 = vector.load %arg3[%c1, %c0_6, %c0_7] : memref<4x25x288xf32, #tpu.memory_space<vmem>>, vector<1x25x288xf32>
    %6 = vector.shape_cast %5 : vector<1x25x288xf32> to vector<25x288xf32>
    %cst_8 = arith.constant dense<0.000000e+00> : vector<20x288xf32>
    %7 = tpu.matmul %4, %6, %cst_8 {dimension_numbers = #tpu.dot_dimension_numbers<[1], [0], [0], [1], [0, 0, 1, 1], [], []>} : vector<20x25xf32>, vector<25x288xf32>, vector<20x288xf32> -> vector<20x288xf32>
    %8 = arith.maximumf %3, %7 : vector<20x288xf32>
    %c0_9 = arith.constant 0 : index
    %c0_10 = arith.constant 0 : index
    %9 = vector.load %arg1[%c0_9, %c0_10] : memref<20x25xf32, #tpu.memory_space<vmem>>, vector<20x25xf32>
    %c2 = arith.constant 2 : index
    %c0_11 = arith.constant 0 : index
    %c0_12 = arith.constant 0 : index
    %10 = vector.load %arg3[%c2, %c0_11, %c0_12] : memref<4x25x288xf32, #tpu.memory_space<vmem>>, vector<1x25x288xf32>
    %11 = vector.shape_cast %10 : vector<1x25x288xf32> to vector<25x288xf32>
    %cst_13 = arith.constant dense<0.000000e+00> : vector<20x288xf32>
    %12 = tpu.matmul %9, %11, %cst_13 {dimension_numbers = #tpu.dot_dimension_numbers<[1], [0], [0], [1], [0, 0, 1, 1], [], []>} : vector<20x25xf32>, vector<25x288xf32>, vector<20x288xf32> -> vector<20x288xf32>
    %13 = arith.maximumf %8, %12 : vector<20x288xf32>
    %c0_14 = arith.constant 0 : index
    %c0_15 = arith.constant 0 : index
    %14 = vector.load %arg1[%c0_14, %c0_15] : memref<20x25xf32, #tpu.memory_space<vmem>>, vector<20x25xf32>
    %c3 = arith.constant 3 : index
    %c0_16 = arith.constant 0 : index
    %c0_17 = arith.constant 0 : index
    %15 = vector.load %arg3[%c3, %c0_16, %c0_17] : memref<4x25x288xf32, #tpu.memory_space<vmem>>, vector<1x25x288xf32>
    %16 = vector.shape_cast %15 : vector<1x25x288xf32> to vector<25x288xf32>
    %cst_18 = arith.constant dense<0.000000e+00> : vector<20x288xf32>
    %17 = tpu.matmul %14, %16, %cst_18 {dimension_numbers = #tpu.dot_dimension_numbers<[1], [0], [0], [1], [0, 0, 1, 1], [], []>} : vector<20x25xf32>, vector<25x288xf32>, vector<20x288xf32> -> vector<20x288xf32>
    %18 = arith.maximumf %13, %17 : vector<20x288xf32>
    %c0_19 = arith.constant 0 : index
    %c0_20 = arith.constant 0 : index
    %19 = vector.load %arg2[%c0_19, %c0_20] : memref<20x1xf32, #tpu.memory_space<vmem>>, vector<20x1xf32>
    %20 = vector.broadcast %19 : vector<20x1xf32> to vector<20x288xf32>
    %21 = arith.addf %18, %20 : vector<20x288xf32>
    %cst_21 = arith.constant 0.000000e+00 : f32
    %22 = vector.broadcast %cst_21 : f32 to vector<20x288xf32>
    %23 = arith.maximumf %21, %22 : vector<20x288xf32>
    %c0_22 = arith.constant 0 : index
    %c0_23 = arith.constant 0 : index
    %24 = vector.load %arg4[%c0_22, %c0_23] : memref<20x288xf32, #tpu.memory_space<vmem>>, vector<20x288xf32>
    tpu.vector_store %arg4[%c0_22, %c0_23], %23 {strides = array<i32>} : memref<20x288xf32, #tpu.memory_space<vmem>>, vector<20x288xf32>,
    return
  }
  func.func @transform_0(%arg0: i32) -> (i32, i32) {
    %c0_i32 = arith.constant 0 : i32
    %c0_i32_0 = arith.constant 0 : i32
    %c0_i32_1 = arith.constant 0 : i32
    return %c0_i32, %c0_i32_0 : i32, i32
  }
  func.func @transform_1(%arg0: i32) -> (i32, i32) {
    %c0_i32 = arith.constant 0 : i32
    %c0_i32_0 = arith.constant 0 : i32
    %c0_i32_1 = arith.constant 0 : i32
    return %c0_i32, %c0_i32_0 : i32, i32
  }
  func.func @transform_2(%arg0: i32) -> (i32, i32, i32) {
    %c0_i32 = arith.constant 0 : i32
    %c0_i32_0 = arith.constant 0 : i32
    %c0_i32_1 = arith.constant 0 : i32
    return %c0_i32, %c0_i32_0, %arg0 : i32, i32, i32
  }
  func.func @transform_3(%arg0: i32) -> (i32, i32) {
    %c0_i32 = arith.constant 0 : i32
    %c0_i32_0 = arith.constant 0 : i32
    return %c0_i32, %arg0 : i32, i32
  }
}

module attributes {stable_mosaic.version = 11 : i64} {
  func.func @_conv_pool_relu_kernel(%arg0: i32, %arg1: memref<50x500xf32, #tpu.memory_space<vmem>>, %arg2: memref<50x1xf32, #tpu.memory_space<vmem>>, %arg3: memref<4x500x32xf32, #tpu.memory_space<vmem>>, %arg4: memref<50x32xf32, #tpu.memory_space<vmem>>) attributes {dimension_semantics = [#tpu.dimension_semantics<parallel>], iteration_bounds = array<i64: 1>, scalar_prefetch = 0 : i64, scratch_operands = 0 : i64, tpu.core_type = #tpu.core_type<tc>, window_params = [{pipeline_mode = #tpu.pipeline_mode<synchronous>, transform_indices = @transform_0, window_bounds = array<i64: 50, 500>}, {pipeline_mode = #tpu.pipeline_mode<synchronous>, transform_indices = @transform_1, window_bounds = array<i64: 50, 1>}, {transform_indices = @transform_2, window_bounds = array<i64: 4, 500, 32>}, {transform_indices = @transform_3, window_bounds = array<i64: 50, 32>}]} {
    %c0 = arith.constant 0 : index
    %c0_0 = arith.constant 0 : index
    %0 = vector.load %arg1[%c0, %c0_0] : memref<50x500xf32, #tpu.memory_space<vmem>>, vector<50x500xf32>
    %c0_1 = arith.constant 0 : index
    %c0_2 = arith.constant 0 : index
    %c0_3 = arith.constant 0 : index
    %1 = vector.load %arg3[%c0_1, %c0_2, %c0_3] : memref<4x500x32xf32, #tpu.memory_space<vmem>>, vector<1x500x32xf32>
    %2 = vector.shape_cast %1 : vector<1x500x32xf32> to vector<500x32xf32>
    %cst = arith.constant dense<0.000000e+00> : vector<50x32xf32>
    %3 = tpu.matmul %0, %2, %cst {dimension_numbers = #tpu.dot_dimension_numbers<[1], [0], [0], [1], [0, 0, 1, 1], [], []>} : vector<50x500xf32>, vector<500x32xf32>, vector<50x32xf32> -> vector<50x32xf32>
    %c0_4 = arith.constant 0 : index
    %c0_5 = arith.constant 0 : index
    %4 = vector.load %arg1[%c0_4, %c0_5] : memref<50x500xf32, #tpu.memory_space<vmem>>, vector<50x500xf32>
    %c1 = arith.constant 1 : index
    %c0_6 = arith.constant 0 : index
    %c0_7 = arith.constant 0 : index
    %5 = vector.load %arg3[%c1, %c0_6, %c0_7] : memref<4x500x32xf32, #tpu.memory_space<vmem>>, vector<1x500x32xf32>
    %6 = vector.shape_cast %5 : vector<1x500x32xf32> to vector<500x32xf32>
    %cst_8 = arith.constant dense<0.000000e+00> : vector<50x32xf32>
    %7 = tpu.matmul %4, %6, %cst_8 {dimension_numbers = #tpu.dot_dimension_numbers<[1], [0], [0], [1], [0, 0, 1, 1], [], []>} : vector<50x500xf32>, vector<500x32xf32>, vector<50x32xf32> -> vector<50x32xf32>
    %8 = arith.maximumf %3, %7 : vector<50x32xf32>
    %c0_9 = arith.constant 0 : index
    %c0_10 = arith.constant 0 : index
    %9 = vector.load %arg1[%c0_9, %c0_10] : memref<50x500xf32, #tpu.memory_space<vmem>>, vector<50x500xf32>
    %c2 = arith.constant 2 : index
    %c0_11 = arith.constant 0 : index
    %c0_12 = arith.constant 0 : index
    %10 = vector.load %arg3[%c2, %c0_11, %c0_12] : memref<4x500x32xf32, #tpu.memory_space<vmem>>, vector<1x500x32xf32>
    %11 = vector.shape_cast %10 : vector<1x500x32xf32> to vector<500x32xf32>
    %cst_13 = arith.constant dense<0.000000e+00> : vector<50x32xf32>
    %12 = tpu.matmul %9, %11, %cst_13 {dimension_numbers = #tpu.dot_dimension_numbers<[1], [0], [0], [1], [0, 0, 1, 1], [], []>} : vector<50x500xf32>, vector<500x32xf32>, vector<50x32xf32> -> vector<50x32xf32>
    %13 = arith.maximumf %8, %12 : vector<50x32xf32>
    %c0_14 = arith.constant 0 : index
    %c0_15 = arith.constant 0 : index
    %14 = vector.load %arg1[%c0_14, %c0_15] : memref<50x500xf32, #tpu.memory_space<vmem>>, vector<50x500xf32>
    %c3 = arith.constant 3 : index
    %c0_16 = arith.constant 0 : index
    %c0_17 = arith.constant 0 : index
    %15 = vector.load %arg3[%c3, %c0_16, %c0_17] : memref<4x500x32xf32, #tpu.memory_space<vmem>>, vector<1x500x32xf32>
    %16 = vector.shape_cast %15 : vector<1x500x32xf32> to vector<500x32xf32>
    %cst_18 = arith.constant dense<0.000000e+00> : vector<50x32xf32>
    %17 = tpu.matmul %14, %16, %cst_18 {dimension_numbers = #tpu.dot_dimension_numbers<[1], [0], [0], [1], [0, 0, 1, 1], [], []>} : vector<50x500xf32>, vector<500x32xf32>, vector<50x32xf32> -> vector<50x32xf32>
    %18 = arith.maximumf %13, %17 : vector<50x32xf32>
    %c0_19 = arith.constant 0 : index
    %c0_20 = arith.constant 0 : index
    %19 = vector.load %arg2[%c0_19, %c0_20] : memref<50x1xf32, #tpu.memory_space<vmem>>, vector<50x1xf32>
    %20 = vector.broadcast %19 : vector<50x1xf32> to vector<50x32xf32>
    %21 = arith.addf %18, %20 : vector<50x32xf32>
    %cst_21 = arith.constant 0.000000e+00 : f32
    %22 = vector.broadcast %cst_21 : f32 to vector<50x32xf32>
    %23 = arith.maximumf %21, %22 : vector<50x32xf32>
    %c0_22 = arith.constant 0 : index
    %c0_23 = arith.constant 0 : index
    %24 = vector.load %arg4[%c0_22, %c0_23] : memref<50x32xf32, #tpu.memory_space<vmem>>, vector<50x32xf32>
    tpu.vector_store %arg4[%c0_22, %c0_23], %23 {strides = array<i32>} : memref<50x32xf32, #tpu.memory_space<vmem>>, vector<50x32xf32>,
    return
  }
  func.func @transform_0(%arg0: i32) -> (i32, i32) {
    %c0_i32 = arith.constant 0 : i32
    %c0_i32_0 = arith.constant 0 : i32
    %c0_i32_1 = arith.constant 0 : i32
    return %c0_i32, %c0_i32_0 : i32, i32
  }
  func.func @transform_1(%arg0: i32) -> (i32, i32) {
    %c0_i32 = arith.constant 0 : i32
    %c0_i32_0 = arith.constant 0 : i32
    %c0_i32_1 = arith.constant 0 : i32
    return %c0_i32, %c0_i32_0 : i32, i32
  }
  func.func @transform_2(%arg0: i32) -> (i32, i32, i32) {
    %c0_i32 = arith.constant 0 : i32
    %c0_i32_0 = arith.constant 0 : i32
    %c0_i32_1 = arith.constant 0 : i32
    return %c0_i32, %c0_i32_0, %arg0 : i32, i32, i32
  }
  func.func @transform_3(%arg0: i32) -> (i32, i32) {
    %c0_i32 = arith.constant 0 : i32
    %c0_i32_0 = arith.constant 0 : i32
    return %c0_i32, %arg0 : i32, i32
  }
}

module attributes {stable_mosaic.version = 11 : i64} {
  func.func @_fc_fused_kernel(%arg0: i32, %arg1: memref<2x800xf32, #tpu.memory_space<vmem>>, %arg2: memref<800x500xf32, #tpu.memory_space<vmem>>, %arg3: memref<1x500xf32, #tpu.memory_space<vmem>>, %arg4: memref<500x128xf32, #tpu.memory_space<vmem>>, %arg5: memref<1x128xf32, #tpu.memory_space<vmem>>, %arg6: memref<2x128xf32, #tpu.memory_space<vmem>>) attributes {dimension_semantics = [#tpu.dimension_semantics<parallel>], iteration_bounds = array<i64: 1>, scalar_prefetch = 0 : i64, scratch_operands = 0 : i64, tpu.core_type = #tpu.core_type<tc>, window_params = [{transform_indices = @transform_0, window_bounds = array<i64: 2, 800>}, {pipeline_mode = #tpu.pipeline_mode<synchronous>, transform_indices = @transform_1, window_bounds = array<i64: 800, 500>}, {pipeline_mode = #tpu.pipeline_mode<synchronous>, transform_indices = @transform_2, window_bounds = array<i64: 1, 500>}, {pipeline_mode = #tpu.pipeline_mode<synchronous>, transform_indices = @transform_3, window_bounds = array<i64: 500, 128>}, {pipeline_mode = #tpu.pipeline_mode<synchronous>, transform_indices = @transform_4, window_bounds = array<i64: 1, 128>}, {transform_indices = @transform_5, window_bounds = array<i64: 2, 128>}]} {
    %c0 = arith.constant 0 : index
    %c0_0 = arith.constant 0 : index
    %0 = vector.load %arg1[%c0, %c0_0] : memref<2x800xf32, #tpu.memory_space<vmem>>, vector<2x800xf32>
    %c0_1 = arith.constant 0 : index
    %c0_2 = arith.constant 0 : index
    %1 = vector.load %arg2[%c0_1, %c0_2] : memref<800x500xf32, #tpu.memory_space<vmem>>, vector<800x500xf32>
    %cst = arith.constant dense<0.000000e+00> : vector<2x500xf32>
    %2 = tpu.matmul %0, %1, %cst {dimension_numbers = #tpu.dot_dimension_numbers<[1], [0], [0], [1], [0, 0, 1, 1], [], []>} : vector<2x800xf32>, vector<800x500xf32>, vector<2x500xf32> -> vector<2x500xf32>
    %c0_3 = arith.constant 0 : index
    %c0_4 = arith.constant 0 : index
    %3 = vector.load %arg3[%c0_3, %c0_4] : memref<1x500xf32, #tpu.memory_space<vmem>>, vector<1x500xf32>
    %4 = vector.broadcast %3 : vector<1x500xf32> to vector<2x500xf32>
    %5 = arith.addf %2, %4 : vector<2x500xf32>
    %cst_5 = arith.constant 0.000000e+00 : f32
    %6 = vector.broadcast %cst_5 : f32 to vector<2x500xf32>
    %7 = arith.maximumf %5, %6 : vector<2x500xf32>
    %c0_6 = arith.constant 0 : index
    %c0_7 = arith.constant 0 : index
    %8 = vector.load %arg4[%c0_6, %c0_7] : memref<500x128xf32, #tpu.memory_space<vmem>>, vector<500x128xf32>
    %cst_8 = arith.constant dense<0.000000e+00> : vector<2x128xf32>
    %9 = tpu.matmul %7, %8, %cst_8 {dimension_numbers = #tpu.dot_dimension_numbers<[1], [0], [0], [1], [0, 0, 1, 1], [], []>} : vector<2x500xf32>, vector<500x128xf32>, vector<2x128xf32> -> vector<2x128xf32>
    %c0_9 = arith.constant 0 : index
    %c0_10 = arith.constant 0 : index
    %10 = vector.load %arg5[%c0_9, %c0_10] : memref<1x128xf32, #tpu.memory_space<vmem>>, vector<1x128xf32>
    %11 = vector.broadcast %10 : vector<1x128xf32> to vector<2x128xf32>
    %12 = arith.addf %9, %11 : vector<2x128xf32>
    %cst_11 = arith.constant dense<0xFF800000> : vector<2xf32>
    %13 = vector.multi_reduction <maximumf>, %12, %cst_11 [1] : vector<2x128xf32> to vector<2xf32>
    %14 = vector.shape_cast %13 : vector<2xf32> to vector<2x1xf32>
    %15 = vector.broadcast %14 : vector<2x1xf32> to vector<2x128xf32>
    %16 = arith.subf %12, %15 : vector<2x128xf32>
    %17 = math.exp %16 : vector<2x128xf32>
    %cst_12 = arith.constant dense<0.000000e+00> : vector<2xf32>
    %18 = vector.multi_reduction <add>, %17, %cst_12 [1] : vector<2x128xf32> to vector<2xf32>
    %19 = vector.shape_cast %18 : vector<2xf32> to vector<2x1xf32>
    %20 = math.log %19 : vector<2x1xf32>
    %21 = arith.addf %14, %20 : vector<2x1xf32>
    %22 = vector.broadcast %21 : vector<2x1xf32> to vector<2x128xf32>
    %23 = arith.subf %12, %22 : vector<2x128xf32>
    %c0_13 = arith.constant 0 : index
    %c0_14 = arith.constant 0 : index
    %24 = vector.load %arg6[%c0_13, %c0_14] : memref<2x128xf32, #tpu.memory_space<vmem>>, vector<2x128xf32>
    tpu.vector_store %arg6[%c0_13, %c0_14], %23 {strides = array<i32>} : memref<2x128xf32, #tpu.memory_space<vmem>>, vector<2x128xf32>,
    return
  }
  func.func @transform_0(%arg0: i32) -> (i32, i32) {
    %c0_i32 = arith.constant 0 : i32
    %c0_i32_0 = arith.constant 0 : i32
    return %arg0, %c0_i32 : i32, i32
  }
  func.func @transform_1(%arg0: i32) -> (i32, i32) {
    %c0_i32 = arith.constant 0 : i32
    %c0_i32_0 = arith.constant 0 : i32
    %c0_i32_1 = arith.constant 0 : i32
    return %c0_i32, %c0_i32_0 : i32, i32
  }
  func.func @transform_2(%arg0: i32) -> (i32, i32) {
    %c0_i32 = arith.constant 0 : i32
    %c0_i32_0 = arith.constant 0 : i32
    %c0_i32_1 = arith.constant 0 : i32
    return %c0_i32, %c0_i32_0 : i32, i32
  }
  func.func @transform_3(%arg0: i32) -> (i32, i32) {
    %c0_i32 = arith.constant 0 : i32
    %c0_i32_0 = arith.constant 0 : i32
    %c0_i32_1 = arith.constant 0 : i32
    return %c0_i32, %c0_i32_0 : i32, i32
  }
  func.func @transform_4(%arg0: i32) -> (i32, i32) {
    %c0_i32 = arith.constant 0 : i32
    %c0_i32_0 = arith.constant 0 : i32
    %c0_i32_1 = arith.constant 0 : i32
    return %c0_i32, %c0_i32_0 : i32, i32
  }
  func.func @transform_5(%arg0: i32) -> (i32, i32) {
    %c0_i32 = arith.constant 0 : i32
    %c0_i32_0 = arith.constant 0 : i32
    return %arg0, %c0_i32 : i32, i32
  }
}

</mosaic_0001>

<llo_original>
// kernel: network_forward.3
$region0: #{network_forward.3}
  #allocation0 [shape = 'u32[]', space=smem, size = 0x4, offset = 0x4, fixed_abs, tag = 'smem constant byte address 0x4 - core index']
  #allocation1 [shape = 'u32[144,128]{1,0:T(1,128)}', space=vmem, size = 0x12000, scoped, tag = 'internal scratch']
  %s0 = inlined_call_operand.vmem [shape: f32[20,25], index: 0, kind: input, shape index: {}]
  %s1 = inlined_call_operand.vmem [shape: f32[20,1], index: 1, kind: input, shape index: {}]
  %s2 = inlined_call_operand.vmem [shape: f32[4,25,288], index: 2, kind: input, shape index: {}]
  %s3 = inlined_call_operand.vmem [shape: f32[20,288], index: 3, kind: output, shape index: {}]
  %s4 = sld [smem:[#allocation0]]
  $region22: #{network_forward.3} parent=0
    _
  %s6 = ssub.s32 1, %s4
  %s7 = scalar_select 0, %s6, %s4
  // Predicated region
  $region2: #{network_forward.3} parent=0 // pred_check
    _
  $region3: #{network_forward.3} parent=0 // pred_check_branch
    %9 = sbr.rel (0) target = $region5
  $region4: #{network_forward.3} parent=0 // pred_region
    _
  $region5: #{network_forward.3} parent=0 // pred_fallthru
    _
  // Predicated region
  $region6: #{network_forward.3} parent=0 // pred_check
    _
  $region7: #{network_forward.3} parent=0 // pred_check_branch
    %11 = sbr.rel (0) target = $region9
  $region8: #{network_forward.3} parent=0 // pred_region
    _
  $region9: #{network_forward.3} parent=0 // pred_fallthru
    _
  // Predicated region
  $region10: #{network_forward.3} parent=0 // pred_check
    _
  $region11: #{network_forward.3} parent=0 // pred_check_branch
    %13 = sbr.rel (0) target = $region13
  $region12: #{network_forward.3} parent=0 // pred_region
    _
  $region13: #{network_forward.3} parent=0 // pred_fallthru
    _
  %v14 = vld [vmem:[%s0] sm:$0xff]
  %v15 = vld [vmem:[%s0 + $0x8] sm:$0xff]
  %v16 = vld [vmem:[%s0 + $0x10] sm:$0xf]
  %v17 = vld [vmem:[%s2] sm:$0xff]
  %v18 = vld [vmem:[%s2 + $0x8] sm:$0xff]
  %v19 = vld [vmem:[%s2 + $0x10] sm:$0xff]
  %v20 = vld [vmem:[%s2 + $0x18] sm:$0xff]
  %v21 = vld [vmem:[%s2 + $0x20] sm:$0xff]
  %v22 = vld [vmem:[%s2 + $0x28] sm:$0xff]
  %v23 = vld [vmem:[%s2 + $0x30] sm:$0xff]
  %v24 = vld [vmem:[%s2 + $0x38] sm:$0xff]
  %v25 = vld [vmem:[%s2 + $0x40] sm:$0xff]
  %v26 = vld [vmem:[%s2 + $0x48] sm:$0x1]
  %v27 = vld [vmem:[%s2 + $0x50] sm:$0x1]
  %v28 = vld [vmem:[%s2 + $0x58] sm:$0x1]
  %vm29 = vcmask 203776
  %v31 = vsel %vm29, %v14, 0
  %v34 = vsel %vm29, %v15, 0
  %v37 = vsel %vm29, %v16, 0
  %vm39 = vcmask 1040384
  %v41 = vsel %vm39, %v26, 0
  %v44 = vsel %vm39, %v27, 0
  %v47 = vsel %vm39, %v28, 0
  %49 = vmatprep.subr.mxu0 0.0
  %50 = vmatpush1.msra.mxu0 0.0
  %51 = vmatprep.subr.mxu0 0.0
  %52 = vmatpush1.msra.mxu0 0.0
  %53 = vmatprep.subr.mxu0 0.0
  %54 = vmatpush1.msra.mxu0 0.0
  %55 = vmatprep.subr.mxu0 0.0
  %56 = vmatpush1.msra.mxu0 0.0
  %57 = vmatprep.subr.mxu0 0.0
  %58 = vmatpush1.msra.mxu0 0.0
  %59 = vmatprep.subr.mxu0 0.0
  %60 = vmatpush1.msra.mxu0 0.0
  %61 = vmatprep.subr.mxu0 0.0
  %62 = vmatpush1.msra.mxu0 0.0
  %63 = vmatprep.subr.mxu0 0.0
  %64 = vmatpush1.msra.mxu0 0.0
  %65 = vmatprep.subr.mxu0 0.0
  %66 = vmatpush1.msra.mxu0 0.0
  %67 = vmatprep.subr.mxu0 0.0
  %68 = vmatpush1.msra.mxu0 0.0
  %69 = vmatprep.subr.mxu0 0.0
  %70 = vmatpush1.msra.mxu0 0.0
  %71 = vmatprep.subr.mxu0 0.0
  %72 = vmatpush1.msra.mxu0 0.0
  %73 = vmatprep.subr.mxu0 %v44
  %74 = vmatpush1.msra.mxu0 %v41
  %75 = vmatprep.subr.mxu0 %v24
  %76 = vmatpush1.msra.mxu0 %v23
  %77 = vmatprep.subr.mxu0 %v21
  %78 = vmatpush1.msra.mxu0 %v20
  %79 = vmatprep.subr.mxu0 %v18
  %80 = vmatpush1.msra.mxu0 %v17
  %81 = vmatprep.subr.mxu0 0.0
  %82 = vmatpush2.msra.mxu0 0.0
  %83 = vmatprep.subr.mxu0 0.0
  %84 = vmatpush2.msra.mxu0 0.0
  %85 = vmatprep.subr.mxu0 0.0
  %86 = vmatpush2.msra.mxu0 0.0
  %87 = vmatprep.subr.mxu0 0.0
  %88 = vmatpush2.msra.mxu0 0.0
  %89 = vmatprep.subr.mxu0 0.0
  %90 = vmatpush2.msra.mxu0 0.0
  %91 = vmatprep.subr.mxu0 0.0
  %92 = vmatpush2.msra.mxu0 0.0
  %93 = vmatprep.subr.mxu0 0.0
  %94 = vmatpush2.msra.mxu0 0.0
  %95 = vmatprep.subr.mxu0 0.0
  %96 = vmatpush2.msra.mxu0 0.0
  %97 = vmatprep.subr.mxu0 0.0
  %98 = vmatpush2.msra.mxu0 0.0
  %99 = vmatprep.subr.mxu0 0.0
  %100 = vmatpush2.msra.mxu0 0.0
  %101 = vmatprep.subr.mxu0 0.0
  %102 = vmatpush2.msra.mxu0 0.0
  %103 = vmatprep.subr.mxu0 0.0
  %104 = vmatpush2.msra.mxu0 0.0
  %105 = vmatprep.subr.mxu0 0.0
  %106 = vmatpush2.msra.mxu0 0.0
  %107 = vmatprep.subr.mxu0 0.0
  %108 = vmatpush2.msra.mxu0 0.0
  %109 = vmatprep.subr.mxu0 0.0
  %110 = vmatpush2.msra.mxu0 0.0
  %111 = vmatprep.subr.mxu0 0.0
  %112 = vmatpush2.msra.mxu0 0.0
  %113 = vmatprep.mubr.f32.mxu0 0.0
  %114 = vmatmul.mubr.f32.gmra.mxu0 %v31
  %v115 = vpop.f32.mrf.mxu0
  %v116 = vadd.f32 0.0, %v115
  %v117 = vpop.f32.mrf.mxu0
  %v118 = vadd.f32 0.0, %v117
  %119 = vmatprep.mubr.f32.mxu0 0.0
  %120 = vmatmul.mubr.f32.gmra.mxu0 %v34
  %v121 = vpop.f32.mrf.mxu0
  %v122 = vadd.f32 0.0, %v121
  %v123 = vpop.f32.mrf.mxu0
  %v124 = vadd.f32 0.0, %v123
  %125 = vmatprep.mubr.f32.mxu0 0.0
  %126 = vmatmul.mubr.f32.gmra.mxu0 %v37
  %v127 = vpop.f32.mrf.mxu0
  %v128 = vadd.f32 0.0, %v127
  %v129 = vpop.f32.mrf.mxu0
  %v130 = vadd.f32 0.0, %v129
  %131 = vdwg.mxu0
  %132 = vmatprep.subr.mxu0 0.0
  %133 = vmatpush1.msra.mxu0 0.0
  %134 = vmatprep.subr.mxu0 0.0
  %135 = vmatpush1.msra.mxu0 0.0
  %136 = vmatprep.subr.mxu0 0.0
  %137 = vmatpush1.msra.mxu0 0.0
  %138 = vmatprep.subr.mxu0 0.0
  %139 = vmatpush1.msra.mxu0 0.0
  %140 = vmatprep.subr.mxu0 0.0
  %141 = vmatpush1.msra.mxu0 0.0
  %142 = vmatprep.subr.mxu0 0.0
  %143 = vmatpush1.msra.mxu0 0.0
  %144 = vmatprep.subr.mxu0 0.0
  %145 = vmatpush1.msra.mxu0 0.0
  %146 = vmatprep.subr.mxu0 0.0
  %147 = vmatpush1.msra.mxu0 0.0
  %148 = vmatprep.subr.mxu0 0.0
  %149 = vmatpush1.msra.mxu0 0.0
  %150 = vmatprep.subr.mxu0 0.0
  %151 = vmatpush1.msra.mxu0 0.0
  %152 = vmatprep.subr.mxu0 0.0
  %153 = vmatpush1.msra.mxu0 0.0
  %154 = vmatprep.subr.mxu0 0.0
  %155 = vmatpush1.msra.mxu0 0.0
  %156 = vmatprep.subr.mxu0 0.0
  %157 = vmatpush1.msra.mxu0 %v47
  %158 = vmatprep.subr.mxu0 0.0
  %159 = vmatpush1.msra.mxu0 %v25
  %160 = vmatprep.subr.mxu0 0.0
  %161 = vmatpush1.msra.mxu0 %v22
  %162 = vmatprep.subr.mxu0 0.0
  %163 = vmatpush1.msra.mxu0 %v19
  %164 = vmatprep.subr.mxu0 0.0
  %165 = vmatpush2.msra.mxu0 0.0
  %166 = vmatprep.subr.mxu0 0.0
  %167 = vmatpush2.msra.mxu0 0.0
  %168 = vmatprep.subr.mxu0 0.0
  %169 = vmatpush2.msra.mxu0 0.0
  %170 = vmatprep.subr.mxu0 0.0
  %171 = vmatpush2.msra.mxu0 0.0
  %172 = vmatprep.subr.mxu0 0.0
  %173 = vmatpush2.msra.mxu0 0.0
  %174 = vmatprep.subr.mxu0 0.0
  %175 = vmatpush2.msra.mxu0 0.0
  %176 = vmatprep.subr.mxu0 0.0
  %177 = vmatpush2.msra.mxu0 0.0
  %178 = vmatprep.subr.mxu0 0.0
  %179 = vmatpush2.msra.mxu0 0.0
  %180 = vmatprep.subr.mxu0 0.0
  %181 = vmatpush2.msra.mxu0 0.0
  %182 = vmatprep.subr.mxu0 0.0
  %183 = vmatpush2.msra.mxu0 0.0
  %184 = vmatprep.subr.mxu0 0.0
  %185 = vmatpush2.msra.mxu0 0.0
  %186 = vmatprep.subr.mxu0 0.0
  %187 = vmatpush2.msra.mxu0 0.0
  %188 = vmatprep.subr.mxu0 0.0
  %189 = vmatpush2.msra.mxu0 0.0
  %190 = vmatprep.subr.mxu0 0.0
  %191 = vmatpush2.msra.mxu0 0.0
  %192 = vmatprep.subr.mxu0 0.0
  %193 = vmatpush2.msra.mxu0 0.0
  %194 = vmatprep.subr.mxu0 0.0
  %195 = vmatpush2.msra.mxu0 0.0
  %196 = vmatprep.mubr.f32.mxu0 0.0
  %197 = vmatmul.mubr.f32.gmra.mxu0 %v31
  %v198 = vpop.f32.mrf.mxu0
  %v199 = vadd.f32 0.0, %v198
  %v200 = vpop.f32.mrf.mxu0
  %201 = vmatprep.mubr.f32.mxu0 0.0
  %202 = vmatmul.mubr.f32.gmra.mxu0 %v34
  %v203 = vpop.f32.mrf.mxu0
  %v204 = vadd.f32 0.0, %v203
  %v205 = vpop.f32.mrf.mxu0
  %206 = vmatprep.mubr.f32.mxu0 0.0
  %207 = vmatmul.mubr.f32.gmra.mxu0 %v37
  %v208 = vpop.f32.mrf.mxu0
  %v209 = vadd.f32 0.0, %v208
  %v210 = vpop.f32.mrf.mxu0
  %211 = vdwg.mxu0
  %s212 = scalar_lea.vmem %s2, 96
  %v213 = vld [vmem:[%s212] sm:$0xff]
  %v214 = vld [vmem:[%s212 + $0x8] sm:$0xff]
  %v215 = vld [vmem:[%s212 + $0x10] sm:$0xff]
  %v216 = vld [vmem:[%s212 + $0x18] sm:$0xff]
  %v217 = vld [vmem:[%s212 + $0x20] sm:$0xff]
  %v218 = vld [vmem:[%s212 + $0x28] sm:$0xff]
  %v219 = vld [vmem:[%s212 + $0x30] sm:$0xff]
  %v220 = vld [vmem:[%s212 + $0x38] sm:$0xff]
  %v221 = vld [vmem:[%s212 + $0x40] sm:$0xff]
  %v222 = vld [vmem:[%s212 + $0x48] sm:$0x1]
  %v223 = vld [vmem:[%s212 + $0x50] sm:$0x1]
  %v224 = vld [vmem:[%s212 + $0x58] sm:$0x1]
  %v226 = vsel %vm39, %v222, 0
  %v229 = vsel %vm39, %v223, 0
  %v232 = vsel %vm39, %v224, 0
  %234 = vmatprep.subr.mxu0 0.0
  %235 = vmatpush1.msra.mxu0 0.0
  %236 = vmatprep.subr.mxu0 0.0
  %237 = vmatpush1.msra.mxu0 0.0
  %238 = vmatprep.subr.mxu0 0.0
  %239 = vmatpush1.msra.mxu0 0.0
  %240 = vmatprep.subr.mxu0 0.0
  %241 = vmatpush1.msra.mxu0 0.0
  %242 = vmatprep.subr.mxu0 0.0
  %243 = vmatpush1.msra.mxu0 0.0
  %244 = vmatprep.subr.mxu0 0.0
  %245 = vmatpush1.msra.mxu0 0.0
  %246 = vmatprep.subr.mxu0 0.0
  %247 = vmatpush1.msra.mxu0 0.0
  %248 = vmatprep.subr.mxu0 0.0
  %249 = vmatpush1.msra.mxu0 0.0
  %250 = vmatprep.subr.mxu0 0.0
  %251 = vmatpush1.msra.mxu0 0.0
  %252 = vmatprep.subr.mxu0 0.0
  %253 = vmatpush1.msra.mxu0 0.0
  %254 = vmatprep.subr.mxu0 0.0
  %255 = vmatpush1.msra.mxu0 0.0
  %256 = vmatprep.subr.mxu0 0.0
  %257 = vmatpush1.msra.mxu0 0.0
  %258 = vmatprep.subr.mxu0 %v229
  %259 = vmatpush1.msra.mxu0 %v226
  %260 = vmatprep.subr.mxu0 %v220
  %261 = vmatpush1.msra.mxu0 %v219
  %262 = vmatprep.subr.mxu0 %v217
  %263 = vmatpush1.msra.mxu0 %v216
  %264 = vmatprep.subr.mxu0 %v214
  %265 = vmatpush1.msra.mxu0 %v213
  %266 = vmatprep.subr.mxu0 0.0
  %267 = vmatpush2.msra.mxu0 0.0
  %268 = vmatprep.subr.mxu0 0.0
  %269 = vmatpush2.msra.mxu0 0.0
  %270 = vmatprep.subr.mxu0 0.0
  %271 = vmatpush2.msra.mxu0 0.0
  %272 = vmatprep.subr.mxu0 0.0
  %273 = vmatpush2.msra.mxu0 0.0
  %274 = vmatprep.subr.mxu0 0.0
  %275 = vmatpush2.msra.mxu0 0.0
  %276 = vmatprep.subr.mxu0 0.0
  %277 = vmatpush2.msra.mxu0 0.0
  %278 = vmatprep.subr.mxu0 0.0
  %279 = vmatpush2.msra.mxu0 0.0
  %280 = vmatprep.subr.mxu0 0.0
  %281 = vmatpush2.msra.mxu0 0.0
  %282 = vmatprep.subr.mxu0 0.0
  %283 = vmatpush2.msra.mxu0 0.0
  %284 = vmatprep.subr.mxu0 0.0
  %285 = vmatpush2.msra.mxu0 0.0
  %286 = vmatprep.subr.mxu0 0.0
  %287 = vmatpush2.msra.mxu0 0.0
  %288 = vmatprep.subr.mxu0 0.0
  %289 = vmatpush2.msra.mxu0 0.0
  %290 = vmatprep.subr.mxu0 0.0
  %291 = vmatpush2.msra.mxu0 0.0
  %292 = vmatprep.subr.mxu0 0.0
  %293 = vmatpush2.msra.mxu0 0.0
  %294 = vmatprep.subr.mxu0 0.0
  %295 = vmatpush2.msra.mxu0 0.0
  %296 = vmatprep.subr.mxu0 0.0
  %297 = vmatpush2.msra.mxu0 0.0
  %298 = vmatprep.mubr.f32.mxu0 0.0
  %299 = vmatmul.mubr.f32.gmra.mxu0 %v31
  %v300 = vpop.f32.mrf.mxu0
  %v301 = vadd.f32 0.0, %v300
  %v302 = vpop.f32.mrf.mxu0
  %v303 = vadd.f32 0.0, %v302
  %304 = vmatprep.mubr.f32.mxu0 0.0
  %305 = vmatmul.mubr.f32.gmra.mxu0 %v34
  %v306 = vpop.f32.mrf.mxu0
  %v307 = vadd.f32 0.0, %v306
  %v308 = vpop.f32.mrf.mxu0
  %v309 = vadd.f32 0.0, %v308
  %310 = vmatprep.mubr.f32.mxu0 0.0
  %311 = vmatmul.mubr.f32.gmra.mxu0 %v37
  %v312 = vpop.f32.mrf.mxu0
  %v313 = vadd.f32 0.0, %v312
  %v314 = vpop.f32.mrf.mxu0
  %v315 = vadd.f32 0.0, %v314
  %316 = vdwg.mxu0
  %317 = vmatprep.subr.mxu0 0.0
  %318 = vmatpush1.msra.mxu0 0.0
  %319 = vmatprep.subr.mxu0 0.0
  %320 = vmatpush1.msra.mxu0 0.0
  %321 = vmatprep.subr.mxu0 0.0
  %322 = vmatpush1.msra.mxu0 0.0
  %323 = vmatprep.subr.mxu0 0.0
  %324 = vmatpush1.msra.mxu0 0.0
  %325 = vmatprep.subr.mxu0 0.0
  %326 = vmatpush1.msra.mxu0 0.0
  %327 = vmatprep.subr.mxu0 0.0
  %328 = vmatpush1.msra.mxu0 0.0
  %329 = vmatprep.subr.mxu0 0.0
  %330 = vmatpush1.msra.mxu0 0.0
  %331 = vmatprep.subr.mxu0 0.0
  %332 = vmatpush1.msra.mxu0 0.0
  %333 = vmatprep.subr.mxu0 0.0
  %334 = vmatpush1.msra.mxu0 0.0
  %335 = vmatprep.subr.mxu0 0.0
  %336 = vmatpush1.msra.mxu0 0.0
  %337 = vmatprep.subr.mxu0 0.0
  %338 = vmatpush1.msra.mxu0 0.0
  %339 = vmatprep.subr.mxu0 0.0
  %340 = vmatpush1.msra.mxu0 0.0
  %341 = vmatprep.subr.mxu0 0.0
  %342 = vmatpush1.msra.mxu0 %v232
  %343 = vmatprep.subr.mxu0 0.0
  %344 = vmatpush1.msra.mxu0 %v221
  %345 = vmatprep.subr.mxu0 0.0
  %346 = vmatpush1.msra.mxu0 %v218
  %347 = vmatprep.subr.mxu0 0.0
  %348 = vmatpush1.msra.mxu0 %v215
  %349 = vmatprep.subr.mxu0 0.0
  %350 = vmatpush2.msra.mxu0 0.0
  %351 = vmatprep.subr.mxu0 0.0
  %352 = vmatpush2.msra.mxu0 0.0
  %353 = vmatprep.subr.mxu0 0.0
  %354 = vmatpush2.msra.mxu0 0.0
  %355 = vmatprep.subr.mxu0 0.0
  %356 = vmatpush2.msra.mxu0 0.0
  %357 = vmatprep.subr.mxu0 0.0
  %358 = vmatpush2.msra.mxu0 0.0
  %359 = vmatprep.subr.mxu0 0.0
  %360 = vmatpush2.msra.mxu0 0.0
  %361 = vmatprep.subr.mxu0 0.0
  %362 = vmatpush2.msra.mxu0 0.0
  %363 = vmatprep.subr.mxu0 0.0
  %364 = vmatpush2.msra.mxu0 0.0
  %365 = vmatprep.subr.mxu0 0.0
  %366 = vmatpush2.msra.mxu0 0.0
  %367 = vmatprep.subr.mxu0 0.0
  %368 = vmatpush2.msra.mxu0 0.0
  %369 = vmatprep.subr.mxu0 0.0
  %370 = vmatpush2.msra.mxu0 0.0
  %371 = vmatprep.subr.mxu0 0.0
  %372 = vmatpush2.msra.mxu0 0.0
  %373 = vmatprep.subr.mxu0 0.0
  %374 = vmatpush2.msra.mxu0 0.0
  %375 = vmatprep.subr.mxu0 0.0
  %376 = vmatpush2.msra.mxu0 0.0
  %377 = vmatprep.subr.mxu0 0.0
  %378 = vmatpush2.msra.mxu0 0.0
  %379 = vmatprep.subr.mxu0 0.0
  %380 = vmatpush2.msra.mxu0 0.0
  %381 = vmatprep.mubr.f32.mxu0 0.0
  %382 = vmatmul.mubr.f32.gmra.mxu0 %v31
  %v383 = vpop.f32.mrf.mxu0
  %v384 = vadd.f32 0.0, %v383
  %v385 = vpop.f32.mrf.mxu0
  %386 = vmatprep.mubr.f32.mxu0 0.0
  %387 = vmatmul.mubr.f32.gmra.mxu0 %v34
  %v388 = vpop.f32.mrf.mxu0
  %v389 = vadd.f32 0.0, %v388
  %v390 = vpop.f32.mrf.mxu0
  %391 = vmatprep.mubr.f32.mxu0 0.0
  %392 = vmatmul.mubr.f32.gmra.mxu0 %v37
  %v393 = vpop.f32.mrf.mxu0
  %v394 = vadd.f32 0.0, %v393
  %v395 = vpop.f32.mrf.mxu0
  %396 = vdwg.mxu0
  %v397 = vmax.f32 %v116, %v301
  %v398 = vmax.f32 %v118, %v303
  %v399 = vmax.f32 %v199, %v384
  %v400 = vmax.f32 %v122, %v307
  %v401 = vmax.f32 %v124, %v309
  %v402 = vmax.f32 %v204, %v389
  %v403 = vmax.f32 %v128, %v313
  %v404 = vmax.f32 %v130, %v315
  %v405 = vmax.f32 %v209, %v394
  %s406 = scalar_lea.vmem %s2, 192
  %v407 = vld [vmem:[%s406] sm:$0xff]
  %v408 = vld [vmem:[%s406 + $0x8] sm:$0xff]
  %v409 = vld [vmem:[%s406 + $0x10] sm:$0xff]
  %v410 = vld [vmem:[%s406 + $0x18] sm:$0xff]
  %v411 = vld [vmem:[%s406 + $0x20] sm:$0xff]
  %v412 = vld [vmem:[%s406 + $0x28] sm:$0xff]
  %v413 = vld [vmem:[%s406 + $0x30] sm:$0xff]
  %v414 = vld [vmem:[%s406 + $0x38] sm:$0xff]
  %v415 = vld [vmem:[%s406 + $0x40] sm:$0xff]
  %v416 = vld [vmem:[%s406 + $0x48] sm:$0x1]
  %v417 = vld [vmem:[%s406 + $0x50] sm:$0x1]
  %v418 = vld [vmem:[%s406 + $0x58] sm:$0x1]
  %v420 = vsel %vm39, %v416, 0
  %v423 = vsel %vm39, %v417, 0
  %v426 = vsel %vm39, %v418, 0
  %428 = vmatprep.subr.mxu0 0.0
  %429 = vmatpush1.msra.mxu0 0.0
  %430 = vmatprep.subr.mxu0 0.0
  %431 = vmatpush1.msra.mxu0 0.0
  %432 = vmatprep.subr.mxu0 0.0
  %433 = vmatpush1.msra.mxu0 0.0
  %434 = vmatprep.subr.mxu0 0.0
  %435 = vmatpush1.msra.mxu0 0.0
  %436 = vmatprep.subr.mxu0 0.0
  %437 = vmatpush1.msra.mxu0 0.0
  %438 = vmatprep.subr.mxu0 0.0
  %439 = vmatpush1.msra.mxu0 0.0
  %440 = vmatprep.subr.mxu0 0.0
  %441 = vmatpush1.msra.mxu0 0.0
  %442 = vmatprep.subr.mxu0 0.0
  %443 = vmatpush1.msra.mxu0 0.0
  %444 = vmatprep.subr.mxu0 0.0
  %445 = vmatpush1.msra.mxu0 0.0
  %446 = vmatprep.subr.mxu0 0.0
  %447 = vmatpush1.msra.mxu0 0.0
  %448 = vmatprep.subr.mxu0 0.0
  %449 = vmatpush1.msra.mxu0 0.0
  %450 = vmatprep.subr.mxu0 0.0
  %451 = vmatpush1.msra.mxu0 0.0
  %452 = vmatprep.subr.mxu0 %v423
  %453 = vmatpush1.msra.mxu0 %v420
  %454 = vmatprep.subr.mxu0 %v414
  %455 = vmatpush1.msra.mxu0 %v413
  %456 = vmatprep.subr.mxu0 %v411
  %457 = vmatpush1.msra.mxu0 %v410
  %458 = vmatprep.subr.mxu0 %v408
  %459 = vmatpush1.msra.mxu0 %v407
  %460 = vmatprep.subr.mxu0 0.0
  %461 = vmatpush2.msra.mxu0 0.0
  %462 = vmatprep.subr.mxu0 0.0
  %463 = vmatpush2.msra.mxu0 0.0
  %464 = vmatprep.subr.mxu0 0.0
  %465 = vmatpush2.msra.mxu0 0.0
  %466 = vmatprep.subr.mxu0 0.0
  %467 = vmatpush2.msra.mxu0 0.0
  %468 = vmatprep.subr.mxu0 0.0
  %469 = vmatpush2.msra.mxu0 0.0
  %470 = vmatprep.subr.mxu0 0.0
  %471 = vmatpush2.msra.mxu0 0.0
  %472 = vmatprep.subr.mxu0 0.0
  %473 = vmatpush2.msra.mxu0 0.0
  %474 = vmatprep.subr.mxu0 0.0
  %475 = vmatpush2.msra.mxu0 0.0
  %476 = vmatprep.subr.mxu0 0.0
  %477 = vmatpush2.msra.mxu0 0.0
  %478 = vmatprep.subr.mxu0 0.0
  %479 = vmatpush2.msra.mxu0 0.0
  %480 = vmatprep.subr.mxu0 0.0
  %481 = vmatpush2.msra.mxu0 0.0
  %482 = vmatprep.subr.mxu0 0.0
  %483 = vmatpush2.msra.mxu0 0.0
  %484 = vmatprep.subr.mxu0 0.0
  %485 = vmatpush2.msra.mxu0 0.0
  %486 = vmatprep.subr.mxu0 0.0
  %487 = vmatpush2.msra.mxu0 0.0
  %488 = vmatprep.subr.mxu0 0.0
  %489 = vmatpush2.msra.mxu0 0.0
  %490 = vmatprep.subr.mxu0 0.0
  %491 = vmatpush2.msra.mxu0 0.0
  %492 = vmatprep.mubr.f32.mxu0 0.0
  %493 = vmatmul.mubr.f32.gmra.mxu0 %v31
  %v494 = vpop.f32.mrf.mxu0
  %v495 = vadd.f32 0.0, %v494
  %v496 = vpop.f32.mrf.mxu0
  %v497 = vadd.f32 0.0, %v496
  %498 = vmatprep.mubr.f32.mxu0 0.0
  %499 = vmatmul.mubr.f32.gmra.mxu0 %v34
  %v500 = vpop.f32.mrf.mxu0
  %v501 = vadd.f32 0.0, %v500
  %v502 = vpop.f32.mrf.mxu0
  %v503 = vadd.f32 0.0, %v502
  %504 = vmatprep.mubr.f32.mxu0 0.0
  %505 = vmatmul.mubr.f32.gmra.mxu0 %v37
  %v506 = vpop.f32.mrf.mxu0
  %v507 = vadd.f32 0.0, %v506
  %v508 = vpop.f32.mrf.mxu0
  %v509 = vadd.f32 0.0, %v508
  %510 = vdwg.mxu0
  %511 = vmatprep.subr.mxu0 0.0
  %512 = vmatpush1.msra.mxu0 0.0
  %513 = vmatprep.subr.mxu0 0.0
  %514 = vmatpush1.msra.mxu0 0.0
  %515 = vmatprep.subr.mxu0 0.0
  %516 = vmatpush1.msra.mxu0 0.0
  %517 = vmatprep.subr.mxu0 0.0
  %518 = vmatpush1.msra.mxu0 0.0
  %519 = vmatprep.subr.mxu0 0.0
  %520 = vmatpush1.msra.mxu0 0.0
  %521 = vmatprep.subr.mxu0 0.0
  %522 = vmatpush1.msra.mxu0 0.0
  %523 = vmatprep.subr.mxu0 0.0
  %524 = vmatpush1.msra.mxu0 0.0
  %525 = vmatprep.subr.mxu0 0.0
  %526 = vmatpush1.msra.mxu0 0.0
  %527 = vmatprep.subr.mxu0 0.0
  %528 = vmatpush1.msra.mxu0 0.0
  %529 = vmatprep.subr.mxu0 0.0
  %530 = vmatpush1.msra.mxu0 0.0
  %531 = vmatprep.subr.mxu0 0.0
  %532 = vmatpush1.msra.mxu0 0.0
  %533 = vmatprep.subr.mxu0 0.0
  %534 = vmatpush1.msra.mxu0 0.0
  %535 = vmatprep.subr.mxu0 0.0
  %536 = vmatpush1.msra.mxu0 %v426
  %537 = vmatprep.subr.mxu0 0.0
  %538 = vmatpush1.msra.mxu0 %v415
  %539 = vmatprep.subr.mxu0 0.0
  %540 = vmatpush1.msra.mxu0 %v412
  %541 = vmatprep.subr.mxu0 0.0
  %542 = vmatpush1.msra.mxu0 %v409
  %543 = vmatprep.subr.mxu0 0.0
  %544 = vmatpush2.msra.mxu0 0.0
  %545 = vmatprep.subr.mxu0 0.0
  %546 = vmatpush2.msra.mxu0 0.0
  %547 = vmatprep.subr.mxu0 0.0
  %548 = vmatpush2.msra.mxu0 0.0
  %549 = vmatprep.subr.mxu0 0.0
  %550 = vmatpush2.msra.mxu0 0.0
  %551 = vmatprep.subr.mxu0 0.0
  %552 = vmatpush2.msra.mxu0 0.0
  %553 = vmatprep.subr.mxu0 0.0
  %554 = vmatpush2.msra.mxu0 0.0
  %555 = vmatprep.subr.mxu0 0.0
  %556 = vmatpush2.msra.mxu0 0.0
  %557 = vmatprep.subr.mxu0 0.0
  %558 = vmatpush2.msra.mxu0 0.0
  %559 = vmatprep.subr.mxu0 0.0
  %560 = vmatpush2.msra.mxu0 0.0
  %561 = vmatprep.subr.mxu0 0.0
  %562 = vmatpush2.msra.mxu0 0.0
  %563 = vmatprep.subr.mxu0 0.0
  %564 = vmatpush2.msra.mxu0 0.0
  %565 = vmatprep.subr.mxu0 0.0
  %566 = vmatpush2.msra.mxu0 0.0
  %567 = vmatprep.subr.mxu0 0.0
  %568 = vmatpush2.msra.mxu0 0.0
  %569 = vmatprep.subr.mxu0 0.0
  %570 = vmatpush2.msra.mxu0 0.0
  %571 = vmatprep.subr.mxu0 0.0
  %572 = vmatpush2.msra.mxu0 0.0
  %573 = vmatprep.subr.mxu0 0.0
  %574 = vmatpush2.msra.mxu0 0.0
  %575 = vmatprep.mubr.f32.mxu0 0.0
  %576 = vmatmul.mubr.f32.gmra.mxu0 %v31
  %v577 = vpop.f32.mrf.mxu0
  %v578 = vadd.f32 0.0, %v577
  %v579 = vpop.f32.mrf.mxu0
  %580 = vmatprep.mubr.f32.mxu0 0.0
  %581 = vmatmul.mubr.f32.gmra.mxu0 %v34
  %v582 = vpop.f32.mrf.mxu0
  %v583 = vadd.f32 0.0, %v582
  %v584 = vpop.f32.mrf.mxu0
  %585 = vmatprep.mubr.f32.mxu0 0.0
  %586 = vmatmul.mubr.f32.gmra.mxu0 %v37
  %v587 = vpop.f32.mrf.mxu0
  %v588 = vadd.f32 0.0, %v587
  %v589 = vpop.f32.mrf.mxu0
  %590 = vdwg.mxu0
  %v591 = vmax.f32 %v397, %v495
  %v592 = vmax.f32 %v398, %v497
  %v593 = vmax.f32 %v399, %v578
  %v594 = vmax.f32 %v400, %v501
  %v595 = vmax.f32 %v401, %v503
  %v596 = vmax.f32 %v402, %v583
  %v597 = vmax.f32 %v403, %v507
  %v598 = vmax.f32 %v404, %v509
  %v599 = vmax.f32 %v405, %v588
  %s600 = scalar_lea.vmem %s2, 288
  %v601 = vld [vmem:[%s600] sm:$0xff]
  %v602 = vld [vmem:[%s600 + $0x8] sm:$0xff]
  %v603 = vld [vmem:[%s600 + $0x10] sm:$0xff]
  %v604 = vld [vmem:[%s600 + $0x18] sm:$0xff]
  %v605 = vld [vmem:[%s600 + $0x20] sm:$0xff]
  %v606 = vld [vmem:[%s600 + $0x28] sm:$0xff]
  %v607 = vld [vmem:[%s600 + $0x30] sm:$0xff]
  %v608 = vld [vmem:[%s600 + $0x38] sm:$0xff]
  %v609 = vld [vmem:[%s600 + $0x40] sm:$0xff]
  %v610 = vld [vmem:[%s600 + $0x48] sm:$0x1]
  %v611 = vld [vmem:[%s600 + $0x50] sm:$0x1]
  %v612 = vld [vmem:[%s600 + $0x58] sm:$0x1]
  %v614 = vsel %vm39, %v610, 0
  %v617 = vsel %vm39, %v611, 0
  %v620 = vsel %vm39, %v612, 0
  %622 = vmatprep.subr.mxu0 0.0
  %623 = vmatpush1.msra.mxu0 0.0
  %624 = vmatprep.subr.mxu0 0.0
  %625 = vmatpush1.msra.mxu0 0.0
  %626 = vmatprep.subr.mxu0 0.0
  %627 = vmatpush1.msra.mxu0 0.0
  %628 = vmatprep.subr.mxu0 0.0
  %629 = vmatpush1.msra.mxu0 0.0
  %630 = vmatprep.subr.mxu0 0.0
  %631 = vmatpush1.msra.mxu0 0.0
  %632 = vmatprep.subr.mxu0 0.0
  %633 = vmatpush1.msra.mxu0 0.0
  %634 = vmatprep.subr.mxu0 0.0
  %635 = vmatpush1.msra.mxu0 0.0
  %636 = vmatprep.subr.mxu0 0.0
  %637 = vmatpush1.msra.mxu0 0.0
  %638 = vmatprep.subr.mxu0 0.0
  %639 = vmatpush1.msra.mxu0 0.0
  %640 = vmatprep.subr.mxu0 0.0
  %641 = vmatpush1.msra.mxu0 0.0
  %642 = vmatprep.subr.mxu0 0.0
  %643 = vmatpush1.msra.mxu0 0.0
  %644 = vmatprep.subr.mxu0 0.0
  %645 = vmatpush1.msra.mxu0 0.0
  %646 = vmatprep.subr.mxu0 %v617
  %647 = vmatpush1.msra.mxu0 %v614
  %648 = vmatprep.subr.mxu0 %v608
  %649 = vmatpush1.msra.mxu0 %v607
  %650 = vmatprep.subr.mxu0 %v605
  %651 = vmatpush1.msra.mxu0 %v604
  %652 = vmatprep.subr.mxu0 %v602
  %653 = vmatpush1.msra.mxu0 %v601
  %654 = vmatprep.subr.mxu0 0.0
  %655 = vmatpush2.msra.mxu0 0.0
  %656 = vmatprep.subr.mxu0 0.0
  %657 = vmatpush2.msra.mxu0 0.0
  %658 = vmatprep.subr.mxu0 0.0
  %659 = vmatpush2.msra.mxu0 0.0
  %660 = vmatprep.subr.mxu0 0.0
  %661 = vmatpush2.msra.mxu0 0.0
  %662 = vmatprep.subr.mxu0 0.0
  %663 = vmatpush2.msra.mxu0 0.0
  %664 = vmatprep.subr.mxu0 0.0
  %665 = vmatpush2.msra.mxu0 0.0
  %666 = vmatprep.subr.mxu0 0.0
  %667 = vmatpush2.msra.mxu0 0.0
  %668 = vmatprep.subr.mxu0 0.0
  %669 = vmatpush2.msra.mxu0 0.0
  %670 = vmatprep.subr.mxu0 0.0
  %671 = vmatpush2.msra.mxu0 0.0
  %672 = vmatprep.subr.mxu0 0.0
  %673 = vmatpush2.msra.mxu0 0.0
  %674 = vmatprep.subr.mxu0 0.0
  %675 = vmatpush2.msra.mxu0 0.0
  %676 = vmatprep.subr.mxu0 0.0
  %677 = vmatpush2.msra.mxu0 0.0
  %678 = vmatprep.subr.mxu0 0.0
  %679 = vmatpush2.msra.mxu0 0.0
  %680 = vmatprep.subr.mxu0 0.0
  %681 = vmatpush2.msra.mxu0 0.0
  %682 = vmatprep.subr.mxu0 0.0
  %683 = vmatpush2.msra.mxu0 0.0
  %684 = vmatprep.subr.mxu0 0.0
  %685 = vmatpush2.msra.mxu0 0.0
  %686 = vmatprep.mubr.f32.mxu0 0.0
  %687 = vmatmul.mubr.f32.gmra.mxu0 %v31
  %v688 = vpop.f32.mrf.mxu0
  %v689 = vadd.f32 0.0, %v688
  %v690 = vpop.f32.mrf.mxu0
  %v691 = vadd.f32 0.0, %v690
  %692 = vmatprep.mubr.f32.mxu0 0.0
  %693 = vmatmul.mubr.f32.gmra.mxu0 %v34
  %v694 = vpop.f32.mrf.mxu0
  %v695 = vadd.f32 0.0, %v694
  %v696 = vpop.f32.mrf.mxu0
  %v697 = vadd.f32 0.0, %v696
  %698 = vmatprep.mubr.f32.mxu0 0.0
  %699 = vmatmul.mubr.f32.gmra.mxu0 %v37
  %v700 = vpop.f32.mrf.mxu0
  %v701 = vadd.f32 0.0, %v700
  %v702 = vpop.f32.mrf.mxu0
  %v703 = vadd.f32 0.0, %v702
  %704 = vdwg.mxu0
  %705 = vmatprep.subr.mxu0 0.0
  %706 = vmatpush1.msra.mxu0 0.0
  %707 = vmatprep.subr.mxu0 0.0
  %708 = vmatpush1.msra.mxu0 0.0
  %709 = vmatprep.subr.mxu0 0.0
  %710 = vmatpush1.msra.mxu0 0.0
  %711 = vmatprep.subr.mxu0 0.0
  %712 = vmatpush1.msra.mxu0 0.0
  %713 = vmatprep.subr.mxu0 0.0
  %714 = vmatpush1.msra.mxu0 0.0
  %715 = vmatprep.subr.mxu0 0.0
  %716 = vmatpush1.msra.mxu0 0.0
  %717 = vmatprep.subr.mxu0 0.0
  %718 = vmatpush1.msra.mxu0 0.0
  %719 = vmatprep.subr.mxu0 0.0
  %720 = vmatpush1.msra.mxu0 0.0
  %721 = vmatprep.subr.mxu0 0.0
  %722 = vmatpush1.msra.mxu0 0.0
  %723 = vmatprep.subr.mxu0 0.0
  %724 = vmatpush1.msra.mxu0 0.0
  %725 = vmatprep.subr.mxu0 0.0
  %726 = vmatpush1.msra.mxu0 0.0
  %727 = vmatprep.subr.mxu0 0.0
  %728 = vmatpush1.msra.mxu0 0.0
  %729 = vmatprep.subr.mxu0 0.0
  %730 = vmatpush1.msra.mxu0 %v620
  %731 = vmatprep.subr.mxu0 0.0
  %732 = vmatpush1.msra.mxu0 %v609
  %733 = vmatprep.subr.mxu0 0.0
  %734 = vmatpush1.msra.mxu0 %v606
  %735 = vmatprep.subr.mxu0 0.0
  %736 = vmatpush1.msra.mxu0 %v603
  %737 = vmatprep.subr.mxu0 0.0
  %738 = vmatpush2.msra.mxu0 0.0
  %739 = vmatprep.subr.mxu0 0.0
  %740 = vmatpush2.msra.mxu0 0.0
  %741 = vmatprep.subr.mxu0 0.0
  %742 = vmatpush2.msra.mxu0 0.0
  %743 = vmatprep.subr.mxu0 0.0
  %744 = vmatpush2.msra.mxu0 0.0
  %745 = vmatprep.subr.mxu0 0.0
  %746 = vmatpush2.msra.mxu0 0.0
  %747 = vmatprep.subr.mxu0 0.0
  %748 = vmatpush2.msra.mxu0 0.0
  %749 = vmatprep.subr.mxu0 0.0
  %750 = vmatpush2.msra.mxu0 0.0
  %751 = vmatprep.subr.mxu0 0.0
  %752 = vmatpush2.msra.mxu0 0.0
  %753 = vmatprep.subr.mxu0 0.0
  %754 = vmatpush2.msra.mxu0 0.0
  %755 = vmatprep.subr.mxu0 0.0
  %756 = vmatpush2.msra.mxu0 0.0
  %757 = vmatprep.subr.mxu0 0.0
  %758 = vmatpush2.msra.mxu0 0.0
  %759 = vmatprep.subr.mxu0 0.0
  %760 = vmatpush2.msra.mxu0 0.0
  %761 = vmatprep.subr.mxu0 0.0
  %762 = vmatpush2.msra.mxu0 0.0
  %763 = vmatprep.subr.mxu0 0.0
  %764 = vmatpush2.msra.mxu0 0.0
  %765 = vmatprep.subr.mxu0 0.0
  %766 = vmatpush2.msra.mxu0 0.0
  %767 = vmatprep.subr.mxu0 0.0
  %768 = vmatpush2.msra.mxu0 0.0
  %769 = vmatprep.mubr.f32.mxu0 0.0
  %770 = vmatmul.mubr.f32.gmra.mxu0 %v31
  %v771 = vpop.f32.mrf.mxu0
  %v772 = vadd.f32 0.0, %v771
  %v773 = vpop.f32.mrf.mxu0
  %774 = vmatprep.mubr.f32.mxu0 0.0
  %775 = vmatmul.mubr.f32.gmra.mxu0 %v34
  %v776 = vpop.f32.mrf.mxu0
  %v777 = vadd.f32 0.0, %v776
  %v778 = vpop.f32.mrf.mxu0
  %779 = vmatprep.mubr.f32.mxu0 0.0
  %780 = vmatmul.mubr.f32.gmra.mxu0 %v37
  %v781 = vpop.f32.mrf.mxu0
  %v782 = vadd.f32 0.0, %v781
  %v783 = vpop.f32.mrf.mxu0
  %784 = vdwg.mxu0
  %v785 = vmax.f32 %v591, %v689
  %v786 = vmax.f32 %v592, %v691
  %v787 = vmax.f32 %v593, %v772
  %v788 = vmax.f32 %v594, %v695
  %v789 = vmax.f32 %v595, %v697
  %v790 = vmax.f32 %v596, %v777
  %v791 = vmax.f32 %v597, %v701
  %v792 = vmax.f32 %v598, %v703
  %v793 = vmax.f32 %v599, %v782
  %v794 = vld [vmem:[%s1] sm:$0xff]
  %v795 = vld [vmem:[%s1 + $0x8] sm:$0xff]
  %v796 = vld [vmem:[%s1 + $0x10] sm:$0xf]
  %798 = vset.pattern.permute.xlu0 0
  %799 = vperm.xlu0 %798, %v794
  %v800 = vpop.permute.xlu0 %799
  %803 = vset.pattern.permute.xlu0 0
  %804 = vperm.xlu0 %803, %v795
  %v805 = vpop.permute.xlu0 %804
  %808 = vset.pattern.permute.xlu0 0
  %809 = vperm.xlu0 %808, %v796
  %v810 = vpop.permute.xlu0 %809
  %v812 = vadd.f32 %v785, %v800
  %v813 = vadd.f32 %v786, %v800
  %v814 = vadd.f32 %v787, %v800
  %v815 = vadd.f32 %v788, %v805
  %v816 = vadd.f32 %v789, %v805
  %v817 = vadd.f32 %v790, %v805
  %v818 = vadd.f32 %v791, %v810
  %v819 = vadd.f32 %v792, %v810
  %v820 = vadd.f32 %v793, %v810
  %v821 = vmax.f32 %v812, 0.0
  %v822 = vmax.f32 %v813, 0.0
  %v823 = vmax.f32 %v814, 0.0
  %v824 = vmax.f32 %v815, 0.0
  %v825 = vmax.f32 %v816, 0.0
  %v826 = vmax.f32 %v817, 0.0
  %v827 = vmax.f32 %v818, 0.0
  %v828 = vmax.f32 %v819, 0.0
  %v829 = vmax.f32 %v820, 0.0
  %830 = vst [vmem:[%s3] sm:$0xff] %v821
  %831 = vst [vmem:[%s3 + $0x8] sm:$0xff] %v822
  %vm832 = vcmask 261120
  %833 = vst.msk [vmem:[%s3 + $0x10] sm:$0xff] %vm832, %v823
  %834 = vst [vmem:[%s3 + $0x18] sm:$0xff] %v824
  %835 = vst [vmem:[%s3 + $0x20] sm:$0xff] %v825
  %836 = vst.msk [vmem:[%s3 + $0x28] sm:$0xff] %vm832, %v826
  %837 = vst [vmem:[%s3 + $0x30] sm:$0xf] %v827
  %838 = vst [vmem:[%s3 + $0x38] sm:$0xf] %v828
  %vm839 = vcmask 257024
  %840 = vst.msk [vmem:[%s3 + $0x40] sm:$0xf] %vm839, %v829
  // Predicated region
  $region14: #{network_forward.3} parent=0 // pred_check
    _
  $region15: #{network_forward.3} parent=0 // pred_check_branch
    %842 = sbr.rel (0) target = $region17
  $region16: #{network_forward.3} parent=0 // pred_region
    _
  $region17: #{network_forward.3} parent=0 // pred_fallthru
    _
  // Predicated region
  $region18: #{network_forward.3} parent=0 // pred_check
    _
  $region19: #{network_forward.3} parent=0 // pred_check_branch
    %844 = sbr.rel (0) target = $region21
  $region20: #{network_forward.3} parent=0 // pred_region
    _
  $region21: #{network_forward.3} parent=0 // pred_fallthru
    _

// kernel: network_forward.4
$region0: #{network_forward.4}
  #allocation0 [shape = 'u32[]', space=smem, size = 0x4, offset = 0x4, fixed_abs, tag = 'smem constant byte address 0x4 - core index']
  #allocation1 [shape = 'u32[144,128]{1,0:T(1,128)}', space=vmem, size = 0x12000, scoped, tag = 'internal scratch']
  %s0 = inlined_call_operand.vmem [shape: f32[50,500], index: 0, kind: input, shape index: {}]
  %s1 = inlined_call_operand.vmem [shape: f32[50,1], index: 1, kind: input, shape index: {}]
  %s2 = inlined_call_operand.vmem [shape: f32[4,500,32], index: 2, kind: input, shape index: {}]
  %s3 = inlined_call_operand.vmem [shape: f32[50,32], index: 3, kind: output, shape index: {}]
  %s4 = sld [smem:[#allocation0]]
  $region22: #{network_forward.4} parent=0
    _
  %s6 = ssub.s32 1, %s4
  %s7 = scalar_select 0, %s6, %s4
  // Predicated region
  $region2: #{network_forward.4} parent=0 // pred_check
    _
  $region3: #{network_forward.4} parent=0 // pred_check_branch
    %9 = sbr.rel (0) target = $region5
  $region4: #{network_forward.4} parent=0 // pred_region
    _
  $region5: #{network_forward.4} parent=0 // pred_fallthru
    _
  // Predicated region
  $region6: #{network_forward.4} parent=0 // pred_check
    _
  $region7: #{network_forward.4} parent=0 // pred_check_branch
    %11 = sbr.rel (0) target = $region9
  $region8: #{network_forward.4} parent=0 // pred_region
    _
  $region9: #{network_forward.4} parent=0 // pred_fallthru
    _
  // Predicated region
  $region10: #{network_forward.4} parent=0 // pred_check
    _
  $region11: #{network_forward.4} parent=0 // pred_check_branch
    %13 = sbr.rel (0) target = $region13
  $region12: #{network_forward.4} parent=0 // pred_region
    _
  $region13: #{network_forward.4} parent=0 // pred_fallthru
    _
  %v14 = vld [vmem:[%s0] sm:$0xff]
  %v15 = vld [vmem:[%s0 + $0x8] sm:$0xff]
  %v16 = vld [vmem:[%s0 + $0x10] sm:$0xff]
  %v17 = vld [vmem:[%s0 + $0x18] sm:$0xff]
  %v18 = vld [vmem:[%s0 + $0x20] sm:$0xff]
  %v19 = vld [vmem:[%s0 + $0x28] sm:$0xff]
  %v20 = vld [vmem:[%s0 + $0x30] sm:$0xff]
  %v21 = vld [vmem:[%s0 + $0x38] sm:$0xff]
  %v22 = vld [vmem:[%s0 + $0x40] sm:$0xff]
  %v23 = vld [vmem:[%s0 + $0x48] sm:$0xff]
  %v24 = vld [vmem:[%s0 + $0x50] sm:$0xff]
  %v25 = vld [vmem:[%s0 + $0x58] sm:$0xff]
  %v26 = vld [vmem:[%s0 + $0x60] sm:$0xff]
  %v27 = vld [vmem:[%s0 + $0x68] sm:$0xff]
  %v28 = vld [vmem:[%s0 + $0x70] sm:$0xff]
  %v29 = vld [vmem:[%s0 + $0x78] sm:$0xff]
  %v30 = vld [vmem:[%s0 + $0x80] sm:$0xff]
  %v31 = vld [vmem:[%s0 + $0x88] sm:$0xff]
  %v32 = vld [vmem:[%s0 + $0x90] sm:$0xff]
  %v33 = vld [vmem:[%s0 + $0x98] sm:$0xff]
  %v34 = vld [vmem:[%s0 + $0xa0] sm:$0xff]
  %v35 = vld [vmem:[%s0 + $0xa8] sm:$0xff]
  %v36 = vld [vmem:[%s0 + $0xb0] sm:$0xff]
  %v37 = vld [vmem:[%s0 + $0xb8] sm:$0xff]
  %v38 = vld [vmem:[%s0 + $0xc0] sm:$0x3]
  %v39 = vld [vmem:[%s0 + $0xc8] sm:$0x3]
  %v40 = vld [vmem:[%s0 + $0xd0] sm:$0x3]
  %v41 = vld [vmem:[%s0 + $0xd8] sm:$0x3]
  %v42 = vld [vmem:[%s2] sm:$0xff]
  %v43 = vld [vmem:[%s2 + $0x8] sm:$0xff]
  %v44 = vld [vmem:[%s2 + $0x10] sm:$0xff]
  %v45 = vld [vmem:[%s2 + $0x18] sm:$0xff]
  %v46 = vld [vmem:[%s2 + $0x20] sm:$0xff]
  %v47 = vld [vmem:[%s2 + $0x28] sm:$0xff]
  %v48 = vld [vmem:[%s2 + $0x30] sm:$0xff]
  %v49 = vld [vmem:[%s2 + $0x38] sm:$0xff]
  %v50 = vld [vmem:[%s2 + $0x40] sm:$0xff]
  %v51 = vld [vmem:[%s2 + $0x48] sm:$0xff]
  %v52 = vld [vmem:[%s2 + $0x50] sm:$0xff]
  %v53 = vld [vmem:[%s2 + $0x58] sm:$0xff]
  %v54 = vld [vmem:[%s2 + $0x60] sm:$0xff]
  %v55 = vld [vmem:[%s2 + $0x68] sm:$0xff]
  %v56 = vld [vmem:[%s2 + $0x70] sm:$0xff]
  %v57 = vld [vmem:[%s2 + $0x78] sm:$0xff]
  %v58 = vld [vmem:[%s2 + $0x80] sm:$0xff]
  %v59 = vld [vmem:[%s2 + $0x88] sm:$0xff]
  %v60 = vld [vmem:[%s2 + $0x90] sm:$0xff]
  %v61 = vld [vmem:[%s2 + $0x98] sm:$0xff]
  %v62 = vld [vmem:[%s2 + $0xa0] sm:$0xff]
  %v63 = vld [vmem:[%s2 + $0xa8] sm:$0xff]
  %v64 = vld [vmem:[%s2 + $0xb0] sm:$0xff]
  %v65 = vld [vmem:[%s2 + $0xb8] sm:$0xff]
  %v66 = vld [vmem:[%s2 + $0xc0] sm:$0xff]
  %v67 = vld [vmem:[%s2 + $0xc8] sm:$0xff]
  %v68 = vld [vmem:[%s2 + $0xd0] sm:$0xff]
  %v69 = vld [vmem:[%s2 + $0xd8] sm:$0xff]
  %v70 = vld [vmem:[%s2 + $0xe0] sm:$0xff]
  %v71 = vld [vmem:[%s2 + $0xe8] sm:$0xff]
  %v72 = vld [vmem:[%s2 + $0xf0] sm:$0xff]
  %v73 = vld [vmem:[%s2 + $0xf8] sm:$0xff]
  %v74 = vld [vmem:[%s2 + $0x100] sm:$0xff]
  %v75 = vld [vmem:[%s2 + $0x108] sm:$0xff]
  %v76 = vld [vmem:[%s2 + $0x110] sm:$0xff]
  %v77 = vld [vmem:[%s2 + $0x118] sm:$0xff]
  %v78 = vld [vmem:[%s2 + $0x120] sm:$0xff]
  %v79 = vld [vmem:[%s2 + $0x128] sm:$0xff]
  %v80 = vld [vmem:[%s2 + $0x130] sm:$0xff]
  %v81 = vld [vmem:[%s2 + $0x138] sm:$0xff]
  %v82 = vld [vmem:[%s2 + $0x140] sm:$0xff]
  %v83 = vld [vmem:[%s2 + $0x148] sm:$0xff]
  %v84 = vld [vmem:[%s2 + $0x150] sm:$0xff]
  %v85 = vld [vmem:[%s2 + $0x158] sm:$0xff]
  %v86 = vld [vmem:[%s2 + $0x160] sm:$0xff]
  %v87 = vld [vmem:[%s2 + $0x168] sm:$0xff]
  %v88 = vld [vmem:[%s2 + $0x170] sm:$0xff]
  %v89 = vld [vmem:[%s2 + $0x178] sm:$0xff]
  %v90 = vld [vmem:[%s2 + $0x180] sm:$0xff]
  %v91 = vld [vmem:[%s2 + $0x188] sm:$0xff]
  %v92 = vld [vmem:[%s2 + $0x190] sm:$0xff]
  %v93 = vld [vmem:[%s2 + $0x198] sm:$0xff]
  %v94 = vld [vmem:[%s2 + $0x1a0] sm:$0xff]
  %v95 = vld [vmem:[%s2 + $0x1a8] sm:$0xff]
  %v96 = vld [vmem:[%s2 + $0x1b0] sm:$0xff]
  %v97 = vld [vmem:[%s2 + $0x1b8] sm:$0xff]
  %v98 = vld [vmem:[%s2 + $0x1c0] sm:$0xff]
  %v99 = vld [vmem:[%s2 + $0x1c8] sm:$0xff]
  %v100 = vld [vmem:[%s2 + $0x1d0] sm:$0xff]
  %v101 = vld [vmem:[%s2 + $0x1d8] sm:$0xff]
  %v102 = vld [vmem:[%s2 + $0x1e0] sm:$0xff]
  %v103 = vld [vmem:[%s2 + $0x1e8] sm:$0xff]
  %v104 = vld [vmem:[%s2 + $0x1f0] sm:$0xf]
  %vm105 = vcmask 949248
  %v107 = vsel %vm105, %v17, 0
  %v110 = vsel %vm105, %v21, 0
  %v113 = vsel %vm105, %v25, 0
  %v116 = vsel %vm105, %v29, 0
  %v119 = vsel %vm105, %v33, 0
  %v122 = vsel %vm105, %v37, 0
  %v125 = vsel %vm105, %v41, 0
  %vm127 = vcmask 1043456
  %v129 = vsel %vm127, %v104, 0
  %131 = vmatprep.subr.mxu0 0.0
  %132 = vmatpush1.msra.mxu0 %v57
  %133 = vmatprep.subr.mxu0 0.0
  %134 = vmatpush1.msra.mxu0 %v56
  %135 = vmatprep.subr.mxu0 0.0
  %136 = vmatpush1.msra.mxu0 %v55
  %137 = vmatprep.subr.mxu0 0.0
  %138 = vmatpush1.msra.mxu0 %v54
  %139 = vmatprep.subr.mxu0 0.0
  %140 = vmatpush1.msra.mxu0 %v53
  %141 = vmatprep.subr.mxu0 0.0
  %142 = vmatpush1.msra.mxu0 %v52
  %143 = vmatprep.subr.mxu0 0.0
  %144 = vmatpush1.msra.mxu0 %v51
  %145 = vmatprep.subr.mxu0 0.0
  %146 = vmatpush1.msra.mxu0 %v50
  %147 = vmatprep.subr.mxu0 0.0
  %148 = vmatpush1.msra.mxu0 %v49
  %149 = vmatprep.subr.mxu0 0.0
  %150 = vmatpush1.msra.mxu0 %v48
  %151 = vmatprep.subr.mxu0 0.0
  %152 = vmatpush1.msra.mxu0 %v47
  %153 = vmatprep.subr.mxu0 0.0
  %154 = vmatpush1.msra.mxu0 %v46
  %155 = vmatprep.subr.mxu0 0.0
  %156 = vmatpush1.msra.mxu0 %v45
  %157 = vmatprep.subr.mxu0 0.0
  %158 = vmatpush1.msra.mxu0 %v44
  %159 = vmatprep.subr.mxu0 0.0
  %160 = vmatpush1.msra.mxu0 %v43
  %161 = vmatprep.subr.mxu0 0.0
  %162 = vmatpush1.msra.mxu0 %v42
  %163 = vmatprep.subr.mxu0 0.0
  %164 = vmatpush2.msra.mxu0 %v73
  %165 = vmatprep.subr.mxu0 0.0
  %166 = vmatpush2.msra.mxu0 %v72
  %167 = vmatprep.subr.mxu0 0.0
  %168 = vmatpush2.msra.mxu0 %v71
  %169 = vmatprep.subr.mxu0 0.0
  %170 = vmatpush2.msra.mxu0 %v70
  %171 = vmatprep.subr.mxu0 0.0
  %172 = vmatpush2.msra.mxu0 %v69
  %173 = vmatprep.subr.mxu0 0.0
  %174 = vmatpush2.msra.mxu0 %v68
  %175 = vmatprep.subr.mxu0 0.0
  %176 = vmatpush2.msra.mxu0 %v67
  %177 = vmatprep.subr.mxu0 0.0
  %178 = vmatpush2.msra.mxu0 %v66
  %179 = vmatprep.subr.mxu0 0.0
  %180 = vmatpush2.msra.mxu0 %v65
  %181 = vmatprep.subr.mxu0 0.0
  %182 = vmatpush2.msra.mxu0 %v64
  %183 = vmatprep.subr.mxu0 0.0
  %184 = vmatpush2.msra.mxu0 %v63
  %185 = vmatprep.subr.mxu0 0.0
  %186 = vmatpush2.msra.mxu0 %v62
  %187 = vmatprep.subr.mxu0 0.0
  %188 = vmatpush2.msra.mxu0 %v61
  %189 = vmatprep.subr.mxu0 0.0
  %190 = vmatpush2.msra.mxu0 %v60
  %191 = vmatprep.subr.mxu0 0.0
  %192 = vmatpush2.msra.mxu0 %v59
  %193 = vmatprep.subr.mxu0 0.0
  %194 = vmatpush2.msra.mxu0 %v58
  %195 = vmatprep.mubr.f32.mxu0 %v15
  %196 = vmatmul.mubr.f32.gmra.mxu0 %v14
  %v197 = vpop.f32.mrf.mxu0
  %v198 = vadd.f32 0.0, %v197
  %v199 = vpop.f32.mrf.mxu0
  %200 = vmatprep.mubr.f32.mxu0 %v19
  %201 = vmatmul.mubr.f32.gmra.mxu0 %v18
  %v202 = vpop.f32.mrf.mxu0
  %v203 = vadd.f32 0.0, %v202
  %v204 = vpop.f32.mrf.mxu0
  %205 = vmatprep.mubr.f32.mxu0 %v23
  %206 = vmatmul.mubr.f32.gmra.mxu0 %v22
  %v207 = vpop.f32.mrf.mxu0
  %v208 = vadd.f32 0.0, %v207
  %v209 = vpop.f32.mrf.mxu0
  %210 = vmatprep.mubr.f32.mxu0 %v27
  %211 = vmatmul.mubr.f32.gmra.mxu0 %v26
  %v212 = vpop.f32.mrf.mxu0
  %v213 = vadd.f32 0.0, %v212
  %v214 = vpop.f32.mrf.mxu0
  %215 = vmatprep.mubr.f32.mxu0 %v31
  %216 = vmatmul.mubr.f32.gmra.mxu0 %v30
  %v217 = vpop.f32.mrf.mxu0
  %v218 = vadd.f32 0.0, %v217
  %v219 = vpop.f32.mrf.mxu0
  %220 = vmatprep.mubr.f32.mxu0 %v35
  %221 = vmatmul.mubr.f32.gmra.mxu0 %v34
  %v222 = vpop.f32.mrf.mxu0
  %v223 = vadd.f32 0.0, %v222
  %v224 = vpop.f32.mrf.mxu0
  %225 = vmatprep.mubr.f32.mxu0 %v39
  %226 = vmatmul.mubr.f32.gmra.mxu0 %v38
  %v227 = vpop.f32.mrf.mxu0
  %v228 = vadd.f32 0.0, %v227
  %v229 = vpop.f32.mrf.mxu0
  %230 = vdwg.mxu0
  %231 = vmatprep.subr.mxu0 0.0
  %232 = vmatpush1.msra.mxu0 %v89
  %233 = vmatprep.subr.mxu0 0.0
  %234 = vmatpush1.msra.mxu0 %v88
  %235 = vmatprep.subr.mxu0 0.0
  %236 = vmatpush1.msra.mxu0 %v87
  %237 = vmatprep.subr.mxu0 0.0
  %238 = vmatpush1.msra.mxu0 %v86
  %239 = vmatprep.subr.mxu0 0.0
  %240 = vmatpush1.msra.mxu0 %v85
  %241 = vmatprep.subr.mxu0 0.0
  %242 = vmatpush1.msra.mxu0 %v84
  %243 = vmatprep.subr.mxu0 0.0
  %244 = vmatpush1.msra.mxu0 %v83
  %245 = vmatprep.subr.mxu0 0.0
  %246 = vmatpush1.msra.mxu0 %v82
  %247 = vmatprep.subr.mxu0 0.0
  %248 = vmatpush1.msra.mxu0 %v81
  %249 = vmatprep.subr.mxu0 0.0
  %250 = vmatpush1.msra.mxu0 %v80
  %251 = vmatprep.subr.mxu0 0.0
  %252 = vmatpush1.msra.mxu0 %v79
  %253 = vmatprep.subr.mxu0 0.0
  %254 = vmatpush1.msra.mxu0 %v78
  %255 = vmatprep.subr.mxu0 0.0
  %256 = vmatpush1.msra.mxu0 %v77
  %257 = vmatprep.subr.mxu0 0.0
  %258 = vmatpush1.msra.mxu0 %v76
  %259 = vmatprep.subr.mxu0 0.0
  %260 = vmatpush1.msra.mxu0 %v75
  %261 = vmatprep.subr.mxu0 0.0
  %262 = vmatpush1.msra.mxu0 %v74
  %263 = vmatprep.subr.mxu0 0.0
  %264 = vmatpush2.msra.mxu0 0.0
  %265 = vmatprep.subr.mxu0 0.0
  %266 = vmatpush2.msra.mxu0 %v129
  %267 = vmatprep.subr.mxu0 0.0
  %268 = vmatpush2.msra.mxu0 %v103
  %269 = vmatprep.subr.mxu0 0.0
  %270 = vmatpush2.msra.mxu0 %v102
  %271 = vmatprep.subr.mxu0 0.0
  %272 = vmatpush2.msra.mxu0 %v101
  %273 = vmatprep.subr.mxu0 0.0
  %274 = vmatpush2.msra.mxu0 %v100
  %275 = vmatprep.subr.mxu0 0.0
  %276 = vmatpush2.msra.mxu0 %v99
  %277 = vmatprep.subr.mxu0 0.0
  %278 = vmatpush2.msra.mxu0 %v98
  %279 = vmatprep.subr.mxu0 0.0
  %280 = vmatpush2.msra.mxu0 %v97
  %281 = vmatprep.subr.mxu0 0.0
  %282 = vmatpush2.msra.mxu0 %v96
  %283 = vmatprep.subr.mxu0 0.0
  %284 = vmatpush2.msra.mxu0 %v95
  %285 = vmatprep.subr.mxu0 0.0
  %286 = vmatpush2.msra.mxu0 %v94
  %287 = vmatprep.subr.mxu0 0.0
  %288 = vmatpush2.msra.mxu0 %v93
  %289 = vmatprep.subr.mxu0 0.0
  %290 = vmatpush2.msra.mxu0 %v92
  %291 = vmatprep.subr.mxu0 0.0
  %292 = vmatpush2.msra.mxu0 %v91
  %293 = vmatprep.subr.mxu0 0.0
  %294 = vmatpush2.msra.mxu0 %v90
  %295 = vmatprep.mubr.f32.mxu0 %v107
  %296 = vmatmul.mubr.f32.gmra.mxu0 %v16
  %v297 = vpop.f32.mrf.mxu0
  %v298 = vadd.f32 %v198, %v297
  %v299 = vpop.f32.mrf.mxu0
  %300 = vmatprep.mubr.f32.mxu0 %v110
  %301 = vmatmul.mubr.f32.gmra.mxu0 %v20
  %v302 = vpop.f32.mrf.mxu0
  %v303 = vadd.f32 %v203, %v302
  %v304 = vpop.f32.mrf.mxu0
  %305 = vmatprep.mubr.f32.mxu0 %v113
  %306 = vmatmul.mubr.f32.gmra.mxu0 %v24
  %v307 = vpop.f32.mrf.mxu0
  %v308 = vadd.f32 %v208, %v307
  %v309 = vpop.f32.mrf.mxu0
  %310 = vmatprep.mubr.f32.mxu0 %v116
  %311 = vmatmul.mubr.f32.gmra.mxu0 %v28
  %v312 = vpop.f32.mrf.mxu0
  %v313 = vadd.f32 %v213, %v312
  %v314 = vpop.f32.mrf.mxu0
  %315 = vmatprep.mubr.f32.mxu0 %v119
  %316 = vmatmul.mubr.f32.gmra.mxu0 %v32
  %v317 = vpop.f32.mrf.mxu0
  %v318 = vadd.f32 %v218, %v317
  %v319 = vpop.f32.mrf.mxu0
  %320 = vmatprep.mubr.f32.mxu0 %v122
  %321 = vmatmul.mubr.f32.gmra.mxu0 %v36
  %v322 = vpop.f32.mrf.mxu0
  %v323 = vadd.f32 %v223, %v322
  %v324 = vpop.f32.mrf.mxu0
  %325 = vmatprep.mubr.f32.mxu0 %v125
  %326 = vmatmul.mubr.f32.gmra.mxu0 %v40
  %v327 = vpop.f32.mrf.mxu0
  %v328 = vadd.f32 %v228, %v327
  %v329 = vpop.f32.mrf.mxu0
  %330 = vdwg.mxu0
  %s331 = scalar_lea.vmem %s2, 504
  %v332 = vld [vmem:[%s331] sm:$0xff]
  %v333 = vld [vmem:[%s331 + $0x8] sm:$0xff]
  %v334 = vld [vmem:[%s331 + $0x10] sm:$0xff]
  %v335 = vld [vmem:[%s331 + $0x18] sm:$0xff]
  %v336 = vld [vmem:[%s331 + $0x20] sm:$0xff]
  %v337 = vld [vmem:[%s331 + $0x28] sm:$0xff]
  %v338 = vld [vmem:[%s331 + $0x30] sm:$0xff]
  %v339 = vld [vmem:[%s331 + $0x38] sm:$0xff]
  %v340 = vld [vmem:[%s331 + $0x40] sm:$0xff]
  %v341 = vld [vmem:[%s331 + $0x48] sm:$0xff]
  %v342 = vld [vmem:[%s331 + $0x50] sm:$0xff]
  %v343 = vld [vmem:[%s331 + $0x58] sm:$0xff]
  %v344 = vld [vmem:[%s331 + $0x60] sm:$0xff]
  %v345 = vld [vmem:[%s331 + $0x68] sm:$0xff]
  %v346 = vld [vmem:[%s331 + $0x70] sm:$0xff]
  %v347 = vld [vmem:[%s331 + $0x78] sm:$0xff]
  %v348 = vld [vmem:[%s331 + $0x80] sm:$0xff]
  %v349 = vld [vmem:[%s331 + $0x88] sm:$0xff]
  %v350 = vld [vmem:[%s331 + $0x90] sm:$0xff]
  %v351 = vld [vmem:[%s331 + $0x98] sm:$0xff]
  %v352 = vld [vmem:[%s331 + $0xa0] sm:$0xff]
  %v353 = vld [vmem:[%s331 + $0xa8] sm:$0xff]
  %v354 = vld [vmem:[%s331 + $0xb0] sm:$0xff]
  %v355 = vld [vmem:[%s331 + $0xb8] sm:$0xff]
  %v356 = vld [vmem:[%s331 + $0xc0] sm:$0xff]
  %v357 = vld [vmem:[%s331 + $0xc8] sm:$0xff]
  %v358 = vld [vmem:[%s331 + $0xd0] sm:$0xff]
  %v359 = vld [vmem:[%s331 + $0xd8] sm:$0xff]
  %v360 = vld [vmem:[%s331 + $0xe0] sm:$0xff]
  %v361 = vld [vmem:[%s331 + $0xe8] sm:$0xff]
  %v362 = vld [vmem:[%s331 + $0xf0] sm:$0xff]
  %v363 = vld [vmem:[%s331 + $0xf8] sm:$0xff]
  %v364 = vld [vmem:[%s331 + $0x100] sm:$0xff]
  %v365 = vld [vmem:[%s331 + $0x108] sm:$0xff]
  %v366 = vld [vmem:[%s331 + $0x110] sm:$0xff]
  %v367 = vld [vmem:[%s331 + $0x118] sm:$0xff]
  %v368 = vld [vmem:[%s331 + $0x120] sm:$0xff]
  %v369 = vld [vmem:[%s331 + $0x128] sm:$0xff]
  %v370 = vld [vmem:[%s331 + $0x130] sm:$0xff]
  %v371 = vld [vmem:[%s331 + $0x138] sm:$0xff]
  %v372 = vld [vmem:[%s331 + $0x140] sm:$0xff]
  %v373 = vld [vmem:[%s331 + $0x148] sm:$0xff]
  %v374 = vld [vmem:[%s331 + $0x150] sm:$0xff]
  %v375 = vld [vmem:[%s331 + $0x158] sm:$0xff]
  %v376 = vld [vmem:[%s331 + $0x160] sm:$0xff]
  %v377 = vld [vmem:[%s331 + $0x168] sm:$0xff]
  %v378 = vld [vmem:[%s331 + $0x170] sm:$0xff]
  %v379 = vld [vmem:[%s331 + $0x178] sm:$0xff]
  %v380 = vld [vmem:[%s331 + $0x180] sm:$0xff]
  %v381 = vld [vmem:[%s331 + $0x188] sm:$0xff]
  %v382 = vld [vmem:[%s331 + $0x190] sm:$0xff]
  %v383 = vld [vmem:[%s331 + $0x198] sm:$0xff]
  %v384 = vld [vmem:[%s331 + $0x1a0] sm:$0xff]
  %v385 = vld [vmem:[%s331 + $0x1a8] sm:$0xff]
  %v386 = vld [vmem:[%s331 + $0x1b0] sm:$0xff]
  %v387 = vld [vmem:[%s331 + $0x1b8] sm:$0xff]
  %v388 = vld [vmem:[%s331 + $0x1c0] sm:$0xff]
  %v389 = vld [vmem:[%s331 + $0x1c8] sm:$0xff]
  %v390 = vld [vmem:[%s331 + $0x1d0] sm:$0xff]
  %v391 = vld [vmem:[%s331 + $0x1d8] sm:$0xff]
  %v392 = vld [vmem:[%s331 + $0x1e0] sm:$0xff]
  %v393 = vld [vmem:[%s331 + $0x1e8] sm:$0xff]
  %v394 = vld [vmem:[%s331 + $0x1f0] sm:$0xf]
  %v396 = vsel %vm127, %v394, 0
  %398 = vmatprep.subr.mxu0 0.0
  %399 = vmatpush1.msra.mxu0 %v347
  %400 = vmatprep.subr.mxu0 0.0
  %401 = vmatpush1.msra.mxu0 %v346
  %402 = vmatprep.subr.mxu0 0.0
  %403 = vmatpush1.msra.mxu0 %v345
  %404 = vmatprep.subr.mxu0 0.0
  %405 = vmatpush1.msra.mxu0 %v344
  %406 = vmatprep.subr.mxu0 0.0
  %407 = vmatpush1.msra.mxu0 %v343
  %408 = vmatprep.subr.mxu0 0.0
  %409 = vmatpush1.msra.mxu0 %v342
  %410 = vmatprep.subr.mxu0 0.0
  %411 = vmatpush1.msra.mxu0 %v341
  %412 = vmatprep.subr.mxu0 0.0
  %413 = vmatpush1.msra.mxu0 %v340
  %414 = vmatprep.subr.mxu0 0.0
  %415 = vmatpush1.msra.mxu0 %v339
  %416 = vmatprep.subr.mxu0 0.0
  %417 = vmatpush1.msra.mxu0 %v338
  %418 = vmatprep.subr.mxu0 0.0
  %419 = vmatpush1.msra.mxu0 %v337
  %420 = vmatprep.subr.mxu0 0.0
  %421 = vmatpush1.msra.mxu0 %v336
  %422 = vmatprep.subr.mxu0 0.0
  %423 = vmatpush1.msra.mxu0 %v335
  %424 = vmatprep.subr.mxu0 0.0
  %425 = vmatpush1.msra.mxu0 %v334
  %426 = vmatprep.subr.mxu0 0.0
  %427 = vmatpush1.msra.mxu0 %v333
  %428 = vmatprep.subr.mxu0 0.0
  %429 = vmatpush1.msra.mxu0 %v332
  %430 = vmatprep.subr.mxu0 0.0
  %431 = vmatpush2.msra.mxu0 %v363
  %432 = vmatprep.subr.mxu0 0.0
  %433 = vmatpush2.msra.mxu0 %v362
  %434 = vmatprep.subr.mxu0 0.0
  %435 = vmatpush2.msra.mxu0 %v361
  %436 = vmatprep.subr.mxu0 0.0
  %437 = vmatpush2.msra.mxu0 %v360
  %438 = vmatprep.subr.mxu0 0.0
  %439 = vmatpush2.msra.mxu0 %v359
  %440 = vmatprep.subr.mxu0 0.0
  %441 = vmatpush2.msra.mxu0 %v358
  %442 = vmatprep.subr.mxu0 0.0
  %443 = vmatpush2.msra.mxu0 %v357
  %444 = vmatprep.subr.mxu0 0.0
  %445 = vmatpush2.msra.mxu0 %v356
  %446 = vmatprep.subr.mxu0 0.0
  %447 = vmatpush2.msra.mxu0 %v355
  %448 = vmatprep.subr.mxu0 0.0
  %449 = vmatpush2.msra.mxu0 %v354
  %450 = vmatprep.subr.mxu0 0.0
  %451 = vmatpush2.msra.mxu0 %v353
  %452 = vmatprep.subr.mxu0 0.0
  %453 = vmatpush2.msra.mxu0 %v352
  %454 = vmatprep.subr.mxu0 0.0
  %455 = vmatpush2.msra.mxu0 %v351
  %456 = vmatprep.subr.mxu0 0.0
  %457 = vmatpush2.msra.mxu0 %v350
  %458 = vmatprep.subr.mxu0 0.0
  %459 = vmatpush2.msra.mxu0 %v349
  %460 = vmatprep.subr.mxu0 0.0
  %461 = vmatpush2.msra.mxu0 %v348
  %462 = vmatprep.mubr.f32.mxu0 %v15
  %463 = vmatmul.mubr.f32.gmra.mxu0 %v14
  %v464 = vpop.f32.mrf.mxu0
  %v465 = vadd.f32 0.0, %v464
  %v466 = vpop.f32.mrf.mxu0
  %467 = vmatprep.mubr.f32.mxu0 %v19
  %468 = vmatmul.mubr.f32.gmra.mxu0 %v18
  %v469 = vpop.f32.mrf.mxu0
  %v470 = vadd.f32 0.0, %v469
  %v471 = vpop.f32.mrf.mxu0
  %472 = vmatprep.mubr.f32.mxu0 %v23
  %473 = vmatmul.mubr.f32.gmra.mxu0 %v22
  %v474 = vpop.f32.mrf.mxu0
  %v475 = vadd.f32 0.0, %v474
  %v476 = vpop.f32.mrf.mxu0
  %477 = vmatprep.mubr.f32.mxu0 %v27
  %478 = vmatmul.mubr.f32.gmra.mxu0 %v26
  %v479 = vpop.f32.mrf.mxu0
  %v480 = vadd.f32 0.0, %v479
  %v481 = vpop.f32.mrf.mxu0
  %482 = vmatprep.mubr.f32.mxu0 %v31
  %483 = vmatmul.mubr.f32.gmra.mxu0 %v30
  %v484 = vpop.f32.mrf.mxu0
  %v485 = vadd.f32 0.0, %v484
  %v486 = vpop.f32.mrf.mxu0
  %487 = vmatprep.mubr.f32.mxu0 %v35
  %488 = vmatmul.mubr.f32.gmra.mxu0 %v34
  %v489 = vpop.f32.mrf.mxu0
  %v490 = vadd.f32 0.0, %v489
  %v491 = vpop.f32.mrf.mxu0
  %492 = vmatprep.mubr.f32.mxu0 %v39
  %493 = vmatmul.mubr.f32.gmra.mxu0 %v38
  %v494 = vpop.f32.mrf.mxu0
  %v495 = vadd.f32 0.0, %v494
  %v496 = vpop.f32.mrf.mxu0
  %497 = vdwg.mxu0
  %498 = vmatprep.subr.mxu0 0.0
  %499 = vmatpush1.msra.mxu0 %v379
  %500 = vmatprep.subr.mxu0 0.0
  %501 = vmatpush1.msra.mxu0 %v378
  %502 = vmatprep.subr.mxu0 0.0
  %503 = vmatpush1.msra.mxu0 %v377
  %504 = vmatprep.subr.mxu0 0.0
  %505 = vmatpush1.msra.mxu0 %v376
  %506 = vmatprep.subr.mxu0 0.0
  %507 = vmatpush1.msra.mxu0 %v375
  %508 = vmatprep.subr.mxu0 0.0
  %509 = vmatpush1.msra.mxu0 %v374
  %510 = vmatprep.subr.mxu0 0.0
  %511 = vmatpush1.msra.mxu0 %v373
  %512 = vmatprep.subr.mxu0 0.0
  %513 = vmatpush1.msra.mxu0 %v372
  %514 = vmatprep.subr.mxu0 0.0
  %515 = vmatpush1.msra.mxu0 %v371
  %516 = vmatprep.subr.mxu0 0.0
  %517 = vmatpush1.msra.mxu0 %v370
  %518 = vmatprep.subr.mxu0 0.0
  %519 = vmatpush1.msra.mxu0 %v369
  %520 = vmatprep.subr.mxu0 0.0
  %521 = vmatpush1.msra.mxu0 %v368
  %522 = vmatprep.subr.mxu0 0.0
  %523 = vmatpush1.msra.mxu0 %v367
  %524 = vmatprep.subr.mxu0 0.0
  %525 = vmatpush1.msra.mxu0 %v366
  %526 = vmatprep.subr.mxu0 0.0
  %527 = vmatpush1.msra.mxu0 %v365
  %528 = vmatprep.subr.mxu0 0.0
  %529 = vmatpush1.msra.mxu0 %v364
  %530 = vmatprep.subr.mxu0 0.0
  %531 = vmatpush2.msra.mxu0 0.0
  %532 = vmatprep.subr.mxu0 0.0
  %533 = vmatpush2.msra.mxu0 %v396
  %534 = vmatprep.subr.mxu0 0.0
  %535 = vmatpush2.msra.mxu0 %v393
  %536 = vmatprep.subr.mxu0 0.0
  %537 = vmatpush2.msra.mxu0 %v392
  %538 = vmatprep.subr.mxu0 0.0
  %539 = vmatpush2.msra.mxu0 %v391
  %540 = vmatprep.subr.mxu0 0.0
  %541 = vmatpush2.msra.mxu0 %v390
  %542 = vmatprep.subr.mxu0 0.0
  %543 = vmatpush2.msra.mxu0 %v389
  %544 = vmatprep.subr.mxu0 0.0
  %545 = vmatpush2.msra.mxu0 %v388
  %546 = vmatprep.subr.mxu0 0.0
  %547 = vmatpush2.msra.mxu0 %v387
  %548 = vmatprep.subr.mxu0 0.0
  %549 = vmatpush2.msra.mxu0 %v386
  %550 = vmatprep.subr.mxu0 0.0
  %551 = vmatpush2.msra.mxu0 %v385
  %552 = vmatprep.subr.mxu0 0.0
  %553 = vmatpush2.msra.mxu0 %v384
  %554 = vmatprep.subr.mxu0 0.0
  %555 = vmatpush2.msra.mxu0 %v383
  %556 = vmatprep.subr.mxu0 0.0
  %557 = vmatpush2.msra.mxu0 %v382
  %558 = vmatprep.subr.mxu0 0.0
  %559 = vmatpush2.msra.mxu0 %v381
  %560 = vmatprep.subr.mxu0 0.0
  %561 = vmatpush2.msra.mxu0 %v380
  %562 = vmatprep.mubr.f32.mxu0 %v107
  %563 = vmatmul.mubr.f32.gmra.mxu0 %v16
  %v564 = vpop.f32.mrf.mxu0
  %v565 = vadd.f32 %v465, %v564
  %v566 = vpop.f32.mrf.mxu0
  %567 = vmatprep.mubr.f32.mxu0 %v110
  %568 = vmatmul.mubr.f32.gmra.mxu0 %v20
  %v569 = vpop.f32.mrf.mxu0
  %v570 = vadd.f32 %v470, %v569
  %v571 = vpop.f32.mrf.mxu0
  %572 = vmatprep.mubr.f32.mxu0 %v113
  %573 = vmatmul.mubr.f32.gmra.mxu0 %v24
  %v574 = vpop.f32.mrf.mxu0
  %v575 = vadd.f32 %v475, %v574
  %v576 = vpop.f32.mrf.mxu0
  %577 = vmatprep.mubr.f32.mxu0 %v116
  %578 = vmatmul.mubr.f32.gmra.mxu0 %v28
  %v579 = vpop.f32.mrf.mxu0
  %v580 = vadd.f32 %v480, %v579
  %v581 = vpop.f32.mrf.mxu0
  %582 = vmatprep.mubr.f32.mxu0 %v119
  %583 = vmatmul.mubr.f32.gmra.mxu0 %v32
  %v584 = vpop.f32.mrf.mxu0
  %v585 = vadd.f32 %v485, %v584
  %v586 = vpop.f32.mrf.mxu0
  %587 = vmatprep.mubr.f32.mxu0 %v122
  %588 = vmatmul.mubr.f32.gmra.mxu0 %v36
  %v589 = vpop.f32.mrf.mxu0
  %v590 = vadd.f32 %v490, %v589
  %v591 = vpop.f32.mrf.mxu0
  %592 = vmatprep.mubr.f32.mxu0 %v125
  %593 = vmatmul.mubr.f32.gmra.mxu0 %v40
  %v594 = vpop.f32.mrf.mxu0
  %v595 = vadd.f32 %v495, %v594
  %v596 = vpop.f32.mrf.mxu0
  %597 = vdwg.mxu0
  %v598 = vmax.f32 %v298, %v565
  %v599 = vmax.f32 %v303, %v570
  %v600 = vmax.f32 %v308, %v575
  %v601 = vmax.f32 %v313, %v580
  %v602 = vmax.f32 %v318, %v585
  %v603 = vmax.f32 %v323, %v590
  %v604 = vmax.f32 %v328, %v595
  %s605 = scalar_lea.vmem %s2, 1008
  %v606 = vld [vmem:[%s605] sm:$0xff]
  %v607 = vld [vmem:[%s605 + $0x8] sm:$0xff]
  %v608 = vld [vmem:[%s605 + $0x10] sm:$0xff]
  %v609 = vld [vmem:[%s605 + $0x18] sm:$0xff]
  %v610 = vld [vmem:[%s605 + $0x20] sm:$0xff]
  %v611 = vld [vmem:[%s605 + $0x28] sm:$0xff]
  %v612 = vld [vmem:[%s605 + $0x30] sm:$0xff]
  %v613 = vld [vmem:[%s605 + $0x38] sm:$0xff]
  %v614 = vld [vmem:[%s605 + $0x40] sm:$0xff]
  %v615 = vld [vmem:[%s605 + $0x48] sm:$0xff]
  %v616 = vld [vmem:[%s605 + $0x50] sm:$0xff]
  %v617 = vld [vmem:[%s605 + $0x58] sm:$0xff]
  %v618 = vld [vmem:[%s605 + $0x60] sm:$0xff]
  %v619 = vld [vmem:[%s605 + $0x68] sm:$0xff]
  %v620 = vld [vmem:[%s605 + $0x70] sm:$0xff]
  %v621 = vld [vmem:[%s605 + $0x78] sm:$0xff]
  %v622 = vld [vmem:[%s605 + $0x80] sm:$0xff]
  %v623 = vld [vmem:[%s605 + $0x88] sm:$0xff]
  %v624 = vld [vmem:[%s605 + $0x90] sm:$0xff]
  %v625 = vld [vmem:[%s605 + $0x98] sm:$0xff]
  %v626 = vld [vmem:[%s605 + $0xa0] sm:$0xff]
  %v627 = vld [vmem:[%s605 + $0xa8] sm:$0xff]
  %v628 = vld [vmem:[%s605 + $0xb0] sm:$0xff]
  %v629 = vld [vmem:[%s605 + $0xb8] sm:$0xff]
  %v630 = vld [vmem:[%s605 + $0xc0] sm:$0xff]
  %v631 = vld [vmem:[%s605 + $0xc8] sm:$0xff]
  %v632 = vld [vmem:[%s605 + $0xd0] sm:$0xff]
  %v633 = vld [vmem:[%s605 + $0xd8] sm:$0xff]
  %v634 = vld [vmem:[%s605 + $0xe0] sm:$0xff]
  %v635 = vld [vmem:[%s605 + $0xe8] sm:$0xff]
  %v636 = vld [vmem:[%s605 + $0xf0] sm:$0xff]
  %v637 = vld [vmem:[%s605 + $0xf8] sm:$0xff]
  %v638 = vld [vmem:[%s605 + $0x100] sm:$0xff]
  %v639 = vld [vmem:[%s605 + $0x108] sm:$0xff]
  %v640 = vld [vmem:[%s605 + $0x110] sm:$0xff]
  %v641 = vld [vmem:[%s605 + $0x118] sm:$0xff]
  %v642 = vld [vmem:[%s605 + $0x120] sm:$0xff]
  %v643 = vld [vmem:[%s605 + $0x128] sm:$0xff]
  %v644 = vld [vmem:[%s605 + $0x130] sm:$0xff]
  %v645 = vld [vmem:[%s605 + $0x138] sm:$0xff]
  %v646 = vld [vmem:[%s605 + $0x140] sm:$0xff]
  %v647 = vld [vmem:[%s605 + $0x148] sm:$0xff]
  %v648 = vld [vmem:[%s605 + $0x150] sm:$0xff]
  %v649 = vld [vmem:[%s605 + $0x158] sm:$0xff]
  %v650 = vld [vmem:[%s605 + $0x160] sm:$0xff]
  %v651 = vld [vmem:[%s605 + $0x168] sm:$0xff]
  %v652 = vld [vmem:[%s605 + $0x170] sm:$0xff]
  %v653 = vld [vmem:[%s605 + $0x178] sm:$0xff]
  %v654 = vld [vmem:[%s605 + $0x180] sm:$0xff]
  %v655 = vld [vmem:[%s605 + $0x188] sm:$0xff]
  %v656 = vld [vmem:[%s605 + $0x190] sm:$0xff]
  %v657 = vld [vmem:[%s605 + $0x198] sm:$0xff]
  %v658 = vld [vmem:[%s605 + $0x1a0] sm:$0xff]
  %v659 = vld [vmem:[%s605 + $0x1a8] sm:$0xff]
  %v660 = vld [vmem:[%s605 + $0x1b0] sm:$0xff]
  %v661 = vld [vmem:[%s605 + $0x1b8] sm:$0xff]
  %v662 = vld [vmem:[%s605 + $0x1c0] sm:$0xff]
  %v663 = vld [vmem:[%s605 + $0x1c8] sm:$0xff]
  %v664 = vld [vmem:[%s605 + $0x1d0] sm:$0xff]
  %v665 = vld [vmem:[%s605 + $0x1d8] sm:$0xff]
  %v666 = vld [vmem:[%s605 + $0x1e0] sm:$0xff]
  %v667 = vld [vmem:[%s605 + $0x1e8] sm:$0xff]
  %v668 = vld [vmem:[%s605 + $0x1f0] sm:$0xf]
  %v670 = vsel %vm127, %v668, 0
  %672 = vmatprep.subr.mxu0 0.0
  %673 = vmatpush1.msra.mxu0 %v621
  %674 = vmatprep.subr.mxu0 0.0
  %675 = vmatpush1.msra.mxu0 %v620
  %676 = vmatprep.subr.mxu0 0.0
  %677 = vmatpush1.msra.mxu0 %v619
  %678 = vmatprep.subr.mxu0 0.0
  %679 = vmatpush1.msra.mxu0 %v618
  %680 = vmatprep.subr.mxu0 0.0
  %681 = vmatpush1.msra.mxu0 %v617
  %682 = vmatprep.subr.mxu0 0.0
  %683 = vmatpush1.msra.mxu0 %v616
  %684 = vmatprep.subr.mxu0 0.0
  %685 = vmatpush1.msra.mxu0 %v615
  %686 = vmatprep.subr.mxu0 0.0
  %687 = vmatpush1.msra.mxu0 %v614
  %688 = vmatprep.subr.mxu0 0.0
  %689 = vmatpush1.msra.mxu0 %v613
  %690 = vmatprep.subr.mxu0 0.0
  %691 = vmatpush1.msra.mxu0 %v612
  %692 = vmatprep.subr.mxu0 0.0
  %693 = vmatpush1.msra.mxu0 %v611
  %694 = vmatprep.subr.mxu0 0.0
  %695 = vmatpush1.msra.mxu0 %v610
  %696 = vmatprep.subr.mxu0 0.0
  %697 = vmatpush1.msra.mxu0 %v609
  %698 = vmatprep.subr.mxu0 0.0
  %699 = vmatpush1.msra.mxu0 %v608
  %700 = vmatprep.subr.mxu0 0.0
  %701 = vmatpush1.msra.mxu0 %v607
  %702 = vmatprep.subr.mxu0 0.0
  %703 = vmatpush1.msra.mxu0 %v606
  %704 = vmatprep.subr.mxu0 0.0
  %705 = vmatpush2.msra.mxu0 %v637
  %706 = vmatprep.subr.mxu0 0.0
  %707 = vmatpush2.msra.mxu0 %v636
  %708 = vmatprep.subr.mxu0 0.0
  %709 = vmatpush2.msra.mxu0 %v635
  %710 = vmatprep.subr.mxu0 0.0
  %711 = vmatpush2.msra.mxu0 %v634
  %712 = vmatprep.subr.mxu0 0.0
  %713 = vmatpush2.msra.mxu0 %v633
  %714 = vmatprep.subr.mxu0 0.0
  %715 = vmatpush2.msra.mxu0 %v632
  %716 = vmatprep.subr.mxu0 0.0
  %717 = vmatpush2.msra.mxu0 %v631
  %718 = vmatprep.subr.mxu0 0.0
  %719 = vmatpush2.msra.mxu0 %v630
  %720 = vmatprep.subr.mxu0 0.0
  %721 = vmatpush2.msra.mxu0 %v629
  %722 = vmatprep.subr.mxu0 0.0
  %723 = vmatpush2.msra.mxu0 %v628
  %724 = vmatprep.subr.mxu0 0.0
  %725 = vmatpush2.msra.mxu0 %v627
  %726 = vmatprep.subr.mxu0 0.0
  %727 = vmatpush2.msra.mxu0 %v626
  %728 = vmatprep.subr.mxu0 0.0
  %729 = vmatpush2.msra.mxu0 %v625
  %730 = vmatprep.subr.mxu0 0.0
  %731 = vmatpush2.msra.mxu0 %v624
  %732 = vmatprep.subr.mxu0 0.0
  %733 = vmatpush2.msra.mxu0 %v623
  %734 = vmatprep.subr.mxu0 0.0
  %735 = vmatpush2.msra.mxu0 %v622
  %736 = vmatprep.mubr.f32.mxu0 %v15
  %737 = vmatmul.mubr.f32.gmra.mxu0 %v14
  %v738 = vpop.f32.mrf.mxu0
  %v739 = vadd.f32 0.0, %v738
  %v740 = vpop.f32.mrf.mxu0
  %741 = vmatprep.mubr.f32.mxu0 %v19
  %742 = vmatmul.mubr.f32.gmra.mxu0 %v18
  %v743 = vpop.f32.mrf.mxu0
  %v744 = vadd.f32 0.0, %v743
  %v745 = vpop.f32.mrf.mxu0
  %746 = vmatprep.mubr.f32.mxu0 %v23
  %747 = vmatmul.mubr.f32.gmra.mxu0 %v22
  %v748 = vpop.f32.mrf.mxu0
  %v749 = vadd.f32 0.0, %v748
  %v750 = vpop.f32.mrf.mxu0
  %751 = vmatprep.mubr.f32.mxu0 %v27
  %752 = vmatmul.mubr.f32.gmra.mxu0 %v26
  %v753 = vpop.f32.mrf.mxu0
  %v754 = vadd.f32 0.0, %v753
  %v755 = vpop.f32.mrf.mxu0
  %756 = vmatprep.mubr.f32.mxu0 %v31
  %757 = vmatmul.mubr.f32.gmra.mxu0 %v30
  %v758 = vpop.f32.mrf.mxu0
  %v759 = vadd.f32 0.0, %v758
  %v760 = vpop.f32.mrf.mxu0
  %761 = vmatprep.mubr.f32.mxu0 %v35
  %762 = vmatmul.mubr.f32.gmra.mxu0 %v34
  %v763 = vpop.f32.mrf.mxu0
  %v764 = vadd.f32 0.0, %v763
  %v765 = vpop.f32.mrf.mxu0
  %766 = vmatprep.mubr.f32.mxu0 %v39
  %767 = vmatmul.mubr.f32.gmra.mxu0 %v38
  %v768 = vpop.f32.mrf.mxu0
  %v769 = vadd.f32 0.0, %v768
  %v770 = vpop.f32.mrf.mxu0
  %771 = vdwg.mxu0
  %772 = vmatprep.subr.mxu0 0.0
  %773 = vmatpush1.msra.mxu0 %v653
  %774 = vmatprep.subr.mxu0 0.0
  %775 = vmatpush1.msra.mxu0 %v652
  %776 = vmatprep.subr.mxu0 0.0
  %777 = vmatpush1.msra.mxu0 %v651
  %778 = vmatprep.subr.mxu0 0.0
  %779 = vmatpush1.msra.mxu0 %v650
  %780 = vmatprep.subr.mxu0 0.0
  %781 = vmatpush1.msra.mxu0 %v649
  %782 = vmatprep.subr.mxu0 0.0
  %783 = vmatpush1.msra.mxu0 %v648
  %784 = vmatprep.subr.mxu0 0.0
  %785 = vmatpush1.msra.mxu0 %v647
  %786 = vmatprep.subr.mxu0 0.0
  %787 = vmatpush1.msra.mxu0 %v646
  %788 = vmatprep.subr.mxu0 0.0
  %789 = vmatpush1.msra.mxu0 %v645
  %790 = vmatprep.subr.mxu0 0.0
  %791 = vmatpush1.msra.mxu0 %v644
  %792 = vmatprep.subr.mxu0 0.0
  %793 = vmatpush1.msra.mxu0 %v643
  %794 = vmatprep.subr.mxu0 0.0
  %795 = vmatpush1.msra.mxu0 %v642
  %796 = vmatprep.subr.mxu0 0.0
  %797 = vmatpush1.msra.mxu0 %v641
  %798 = vmatprep.subr.mxu0 0.0
  %799 = vmatpush1.msra.mxu0 %v640
  %800 = vmatprep.subr.mxu0 0.0
  %801 = vmatpush1.msra.mxu0 %v639
  %802 = vmatprep.subr.mxu0 0.0
  %803 = vmatpush1.msra.mxu0 %v638
  %804 = vmatprep.subr.mxu0 0.0
  %805 = vmatpush2.msra.mxu0 0.0
  %806 = vmatprep.subr.mxu0 0.0
  %807 = vmatpush2.msra.mxu0 %v670
  %808 = vmatprep.subr.mxu0 0.0
  %809 = vmatpush2.msra.mxu0 %v667
  %810 = vmatprep.subr.mxu0 0.0
  %811 = vmatpush2.msra.mxu0 %v666
  %812 = vmatprep.subr.mxu0 0.0
  %813 = vmatpush2.msra.mxu0 %v665
  %814 = vmatprep.subr.mxu0 0.0
  %815 = vmatpush2.msra.mxu0 %v664
  %816 = vmatprep.subr.mxu0 0.0
  %817 = vmatpush2.msra.mxu0 %v663
  %818 = vmatprep.subr.mxu0 0.0
  %819 = vmatpush2.msra.mxu0 %v662
  %820 = vmatprep.subr.mxu0 0.0
  %821 = vmatpush2.msra.mxu0 %v661
  %822 = vmatprep.subr.mxu0 0.0
  %823 = vmatpush2.msra.mxu0 %v660
  %824 = vmatprep.subr.mxu0 0.0
  %825 = vmatpush2.msra.mxu0 %v659
  %826 = vmatprep.subr.mxu0 0.0
  %827 = vmatpush2.msra.mxu0 %v658
  %828 = vmatprep.subr.mxu0 0.0
  %829 = vmatpush2.msra.mxu0 %v657
  %830 = vmatprep.subr.mxu0 0.0
  %831 = vmatpush2.msra.mxu0 %v656
  %832 = vmatprep.subr.mxu0 0.0
  %833 = vmatpush2.msra.mxu0 %v655
  %834 = vmatprep.subr.mxu0 0.0
  %835 = vmatpush2.msra.mxu0 %v654
  %836 = vmatprep.mubr.f32.mxu0 %v107
  %837 = vmatmul.mubr.f32.gmra.mxu0 %v16
  %v838 = vpop.f32.mrf.mxu0
  %v839 = vadd.f32 %v739, %v838
  %v840 = vpop.f32.mrf.mxu0
  %841 = vmatprep.mubr.f32.mxu0 %v110
  %842 = vmatmul.mubr.f32.gmra.mxu0 %v20
  %v843 = vpop.f32.mrf.mxu0
  %v844 = vadd.f32 %v744, %v843
  %v845 = vpop.f32.mrf.mxu0
  %846 = vmatprep.mubr.f32.mxu0 %v113
  %847 = vmatmul.mubr.f32.gmra.mxu0 %v24
  %v848 = vpop.f32.mrf.mxu0
  %v849 = vadd.f32 %v749, %v848
  %v850 = vpop.f32.mrf.mxu0
  %851 = vmatprep.mubr.f32.mxu0 %v116
  %852 = vmatmul.mubr.f32.gmra.mxu0 %v28
  %v853 = vpop.f32.mrf.mxu0
  %v854 = vadd.f32 %v754, %v853
  %v855 = vpop.f32.mrf.mxu0
  %856 = vmatprep.mubr.f32.mxu0 %v119
  %857 = vmatmul.mubr.f32.gmra.mxu0 %v32
  %v858 = vpop.f32.mrf.mxu0
  %v859 = vadd.f32 %v759, %v858
  %v860 = vpop.f32.mrf.mxu0
  %861 = vmatprep.mubr.f32.mxu0 %v122
  %862 = vmatmul.mubr.f32.gmra.mxu0 %v36
  %v863 = vpop.f32.mrf.mxu0
  %v864 = vadd.f32 %v764, %v863
  %v865 = vpop.f32.mrf.mxu0
  %866 = vmatprep.mubr.f32.mxu0 %v125
  %867 = vmatmul.mubr.f32.gmra.mxu0 %v40
  %v868 = vpop.f32.mrf.mxu0
  %v869 = vadd.f32 %v769, %v868
  %v870 = vpop.f32.mrf.mxu0
  %871 = vdwg.mxu0
  %v872 = vmax.f32 %v598, %v839
  %v873 = vmax.f32 %v599, %v844
  %v874 = vmax.f32 %v600, %v849
  %v875 = vmax.f32 %v601, %v854
  %v876 = vmax.f32 %v602, %v859
  %v877 = vmax.f32 %v603, %v864
  %v878 = vmax.f32 %v604, %v869
  %s879 = scalar_lea.vmem %s2, 1512
  %v880 = vld [vmem:[%s879] sm:$0xff]
  %v881 = vld [vmem:[%s879 + $0x8] sm:$0xff]
  %v882 = vld [vmem:[%s879 + $0x10] sm:$0xff]
  %v883 = vld [vmem:[%s879 + $0x18] sm:$0xff]
  %v884 = vld [vmem:[%s879 + $0x20] sm:$0xff]
  %v885 = vld [vmem:[%s879 + $0x28] sm:$0xff]
  %v886 = vld [vmem:[%s879 + $0x30] sm:$0xff]
  %v887 = vld [vmem:[%s879 + $0x38] sm:$0xff]
  %v888 = vld [vmem:[%s879 + $0x40] sm:$0xff]
  %v889 = vld [vmem:[%s879 + $0x48] sm:$0xff]
  %v890 = vld [vmem:[%s879 + $0x50] sm:$0xff]
  %v891 = vld [vmem:[%s879 + $0x58] sm:$0xff]
  %v892 = vld [vmem:[%s879 + $0x60] sm:$0xff]
  %v893 = vld [vmem:[%s879 + $0x68] sm:$0xff]
  %v894 = vld [vmem:[%s879 + $0x70] sm:$0xff]
  %v895 = vld [vmem:[%s879 + $0x78] sm:$0xff]
  %v896 = vld [vmem:[%s879 + $0x80] sm:$0xff]
  %v897 = vld [vmem:[%s879 + $0x88] sm:$0xff]
  %v898 = vld [vmem:[%s879 + $0x90] sm:$0xff]
  %v899 = vld [vmem:[%s879 + $0x98] sm:$0xff]
  %v900 = vld [vmem:[%s879 + $0xa0] sm:$0xff]
  %v901 = vld [vmem:[%s879 + $0xa8] sm:$0xff]
  %v902 = vld [vmem:[%s879 + $0xb0] sm:$0xff]
  %v903 = vld [vmem:[%s879 + $0xb8] sm:$0xff]
  %v904 = vld [vmem:[%s879 + $0xc0] sm:$0xff]
  %v905 = vld [vmem:[%s879 + $0xc8] sm:$0xff]
  %v906 = vld [vmem:[%s879 + $0xd0] sm:$0xff]
  %v907 = vld [vmem:[%s879 + $0xd8] sm:$0xff]
  %v908 = vld [vmem:[%s879 + $0xe0] sm:$0xff]
  %v909 = vld [vmem:[%s879 + $0xe8] sm:$0xff]
  %v910 = vld [vmem:[%s879 + $0xf0] sm:$0xff]
  %v911 = vld [vmem:[%s879 + $0xf8] sm:$0xff]
  %v912 = vld [vmem:[%s879 + $0x100] sm:$0xff]
  %v913 = vld [vmem:[%s879 + $0x108] sm:$0xff]
  %v914 = vld [vmem:[%s879 + $0x110] sm:$0xff]
  %v915 = vld [vmem:[%s879 + $0x118] sm:$0xff]
  %v916 = vld [vmem:[%s879 + $0x120] sm:$0xff]
  %v917 = vld [vmem:[%s879 + $0x128] sm:$0xff]
  %v918 = vld [vmem:[%s879 + $0x130] sm:$0xff]
  %v919 = vld [vmem:[%s879 + $0x138] sm:$0xff]
  %v920 = vld [vmem:[%s879 + $0x140] sm:$0xff]
  %v921 = vld [vmem:[%s879 + $0x148] sm:$0xff]
  %v922 = vld [vmem:[%s879 + $0x150] sm:$0xff]
  %v923 = vld [vmem:[%s879 + $0x158] sm:$0xff]
  %v924 = vld [vmem:[%s879 + $0x160] sm:$0xff]
  %v925 = vld [vmem:[%s879 + $0x168] sm:$0xff]
  %v926 = vld [vmem:[%s879 + $0x170] sm:$0xff]
  %v927 = vld [vmem:[%s879 + $0x178] sm:$0xff]
  %v928 = vld [vmem:[%s879 + $0x180] sm:$0xff]
  %v929 = vld [vmem:[%s879 + $0x188] sm:$0xff]
  %v930 = vld [vmem:[%s879 + $0x190] sm:$0xff]
  %v931 = vld [vmem:[%s879 + $0x198] sm:$0xff]
  %v932 = vld [vmem:[%s879 + $0x1a0] sm:$0xff]
  %v933 = vld [vmem:[%s879 + $0x1a8] sm:$0xff]
  %v934 = vld [vmem:[%s879 + $0x1b0] sm:$0xff]
  %v935 = vld [vmem:[%s879 + $0x1b8] sm:$0xff]
  %v936 = vld [vmem:[%s879 + $0x1c0] sm:$0xff]
  %v937 = vld [vmem:[%s879 + $0x1c8] sm:$0xff]
  %v938 = vld [vmem:[%s879 + $0x1d0] sm:$0xff]
  %v939 = vld [vmem:[%s879 + $0x1d8] sm:$0xff]
  %v940 = vld [vmem:[%s879 + $0x1e0] sm:$0xff]
  %v941 = vld [vmem:[%s879 + $0x1e8] sm:$0xff]
  %v942 = vld [vmem:[%s879 + $0x1f0] sm:$0xf]
  %v944 = vsel %vm127, %v942, 0
  %946 = vmatprep.subr.mxu0 0.0
  %947 = vmatpush1.msra.mxu0 %v895
  %948 = vmatprep.subr.mxu0 0.0
  %949 = vmatpush1.msra.mxu0 %v894
  %950 = vmatprep.subr.mxu0 0.0
  %951 = vmatpush1.msra.mxu0 %v893
  %952 = vmatprep.subr.mxu0 0.0
  %953 = vmatpush1.msra.mxu0 %v892
  %954 = vmatprep.subr.mxu0 0.0
  %955 = vmatpush1.msra.mxu0 %v891
  %956 = vmatprep.subr.mxu0 0.0
  %957 = vmatpush1.msra.mxu0 %v890
  %958 = vmatprep.subr.mxu0 0.0
  %959 = vmatpush1.msra.mxu0 %v889
  %960 = vmatprep.subr.mxu0 0.0
  %961 = vmatpush1.msra.mxu0 %v888
  %962 = vmatprep.subr.mxu0 0.0
  %963 = vmatpush1.msra.mxu0 %v887
  %964 = vmatprep.subr.mxu0 0.0
  %965 = vmatpush1.msra.mxu0 %v886
  %966 = vmatprep.subr.mxu0 0.0
  %967 = vmatpush1.msra.mxu0 %v885
  %968 = vmatprep.subr.mxu0 0.0
  %969 = vmatpush1.msra.mxu0 %v884
  %970 = vmatprep.subr.mxu0 0.0
  %971 = vmatpush1.msra.mxu0 %v883
  %972 = vmatprep.subr.mxu0 0.0
  %973 = vmatpush1.msra.mxu0 %v882
  %974 = vmatprep.subr.mxu0 0.0
  %975 = vmatpush1.msra.mxu0 %v881
  %976 = vmatprep.subr.mxu0 0.0
  %977 = vmatpush1.msra.mxu0 %v880
  %978 = vmatprep.subr.mxu0 0.0
  %979 = vmatpush2.msra.mxu0 %v911
  %980 = vmatprep.subr.mxu0 0.0
  %981 = vmatpush2.msra.mxu0 %v910
  %982 = vmatprep.subr.mxu0 0.0
  %983 = vmatpush2.msra.mxu0 %v909
  %984 = vmatprep.subr.mxu0 0.0
  %985 = vmatpush2.msra.mxu0 %v908
  %986 = vmatprep.subr.mxu0 0.0
  %987 = vmatpush2.msra.mxu0 %v907
  %988 = vmatprep.subr.mxu0 0.0
  %989 = vmatpush2.msra.mxu0 %v906
  %990 = vmatprep.subr.mxu0 0.0
  %991 = vmatpush2.msra.mxu0 %v905
  %992 = vmatprep.subr.mxu0 0.0
  %993 = vmatpush2.msra.mxu0 %v904
  %994 = vmatprep.subr.mxu0 0.0
  %995 = vmatpush2.msra.mxu0 %v903
  %996 = vmatprep.subr.mxu0 0.0
  %997 = vmatpush2.msra.mxu0 %v902
  %998 = vmatprep.subr.mxu0 0.0
  %999 = vmatpush2.msra.mxu0 %v901
  %1000 = vmatprep.subr.mxu0 0.0
  %1001 = vmatpush2.msra.mxu0 %v900
  %1002 = vmatprep.subr.mxu0 0.0
  %1003 = vmatpush2.msra.mxu0 %v899
  %1004 = vmatprep.subr.mxu0 0.0
  %1005 = vmatpush2.msra.mxu0 %v898
  %1006 = vmatprep.subr.mxu0 0.0
  %1007 = vmatpush2.msra.mxu0 %v897
  %1008 = vmatprep.subr.mxu0 0.0
  %1009 = vmatpush2.msra.mxu0 %v896
  %1010 = vmatprep.mubr.f32.mxu0 %v15
  %1011 = vmatmul.mubr.f32.gmra.mxu0 %v14
  %v1012 = vpop.f32.mrf.mxu0
  %v1013 = vadd.f32 0.0, %v1012
  %v1014 = vpop.f32.mrf.mxu0
  %1015 = vmatprep.mubr.f32.mxu0 %v19
  %1016 = vmatmul.mubr.f32.gmra.mxu0 %v18
  %v1017 = vpop.f32.mrf.mxu0
  %v1018 = vadd.f32 0.0, %v1017
  %v1019 = vpop.f32.mrf.mxu0
  %1020 = vmatprep.mubr.f32.mxu0 %v23
  %1021 = vmatmul.mubr.f32.gmra.mxu0 %v22
  %v1022 = vpop.f32.mrf.mxu0
  %v1023 = vadd.f32 0.0, %v1022
  %v1024 = vpop.f32.mrf.mxu0
  %1025 = vmatprep.mubr.f32.mxu0 %v27
  %1026 = vmatmul.mubr.f32.gmra.mxu0 %v26
  %v1027 = vpop.f32.mrf.mxu0
  %v1028 = vadd.f32 0.0, %v1027
  %v1029 = vpop.f32.mrf.mxu0
  %1030 = vmatprep.mubr.f32.mxu0 %v31
  %1031 = vmatmul.mubr.f32.gmra.mxu0 %v30
  %v1032 = vpop.f32.mrf.mxu0
  %v1033 = vadd.f32 0.0, %v1032
  %v1034 = vpop.f32.mrf.mxu0
  %1035 = vmatprep.mubr.f32.mxu0 %v35
  %1036 = vmatmul.mubr.f32.gmra.mxu0 %v34
  %v1037 = vpop.f32.mrf.mxu0
  %v1038 = vadd.f32 0.0, %v1037
  %v1039 = vpop.f32.mrf.mxu0
  %1040 = vmatprep.mubr.f32.mxu0 %v39
  %1041 = vmatmul.mubr.f32.gmra.mxu0 %v38
  %v1042 = vpop.f32.mrf.mxu0
  %v1043 = vadd.f32 0.0, %v1042
  %v1044 = vpop.f32.mrf.mxu0
  %1045 = vdwg.mxu0
  %1046 = vmatprep.subr.mxu0 0.0
  %1047 = vmatpush1.msra.mxu0 %v927
  %1048 = vmatprep.subr.mxu0 0.0
  %1049 = vmatpush1.msra.mxu0 %v926
  %1050 = vmatprep.subr.mxu0 0.0
  %1051 = vmatpush1.msra.mxu0 %v925
  %1052 = vmatprep.subr.mxu0 0.0
  %1053 = vmatpush1.msra.mxu0 %v924
  %1054 = vmatprep.subr.mxu0 0.0
  %1055 = vmatpush1.msra.mxu0 %v923
  %1056 = vmatprep.subr.mxu0 0.0
  %1057 = vmatpush1.msra.mxu0 %v922
  %1058 = vmatprep.subr.mxu0 0.0
  %1059 = vmatpush1.msra.mxu0 %v921
  %1060 = vmatprep.subr.mxu0 0.0
  %1061 = vmatpush1.msra.mxu0 %v920
  %1062 = vmatprep.subr.mxu0 0.0
  %1063 = vmatpush1.msra.mxu0 %v919
  %1064 = vmatprep.subr.mxu0 0.0
  %1065 = vmatpush1.msra.mxu0 %v918
  %1066 = vmatprep.subr.mxu0 0.0
  %1067 = vmatpush1.msra.mxu0 %v917
  %1068 = vmatprep.subr.mxu0 0.0
  %1069 = vmatpush1.msra.mxu0 %v916
  %1070 = vmatprep.subr.mxu0 0.0
  %1071 = vmatpush1.msra.mxu0 %v915
  %1072 = vmatprep.subr.mxu0 0.0
  %1073 = vmatpush1.msra.mxu0 %v914
  %1074 = vmatprep.subr.mxu0 0.0
  %1075 = vmatpush1.msra.mxu0 %v913
  %1076 = vmatprep.subr.mxu0 0.0
  %1077 = vmatpush1.msra.mxu0 %v912
  %1078 = vmatprep.subr.mxu0 0.0
  %1079 = vmatpush2.msra.mxu0 0.0
  %1080 = vmatprep.subr.mxu0 0.0
  %1081 = vmatpush2.msra.mxu0 %v944
  %1082 = vmatprep.subr.mxu0 0.0
  %1083 = vmatpush2.msra.mxu0 %v941
  %1084 = vmatprep.subr.mxu0 0.0
  %1085 = vmatpush2.msra.mxu0 %v940
  %1086 = vmatprep.subr.mxu0 0.0
  %1087 = vmatpush2.msra.mxu0 %v939
  %1088 = vmatprep.subr.mxu0 0.0
  %1089 = vmatpush2.msra.mxu0 %v938
  %1090 = vmatprep.subr.mxu0 0.0
  %1091 = vmatpush2.msra.mxu0 %v937
  %1092 = vmatprep.subr.mxu0 0.0
  %1093 = vmatpush2.msra.mxu0 %v936
  %1094 = vmatprep.subr.mxu0 0.0
  %1095 = vmatpush2.msra.mxu0 %v935
  %1096 = vmatprep.subr.mxu0 0.0
  %1097 = vmatpush2.msra.mxu0 %v934
  %1098 = vmatprep.subr.mxu0 0.0
  %1099 = vmatpush2.msra.mxu0 %v933
  %1100 = vmatprep.subr.mxu0 0.0
  %1101 = vmatpush2.msra.mxu0 %v932
  %1102 = vmatprep.subr.mxu0 0.0
  %1103 = vmatpush2.msra.mxu0 %v931
  %1104 = vmatprep.subr.mxu0 0.0
  %1105 = vmatpush2.msra.mxu0 %v930
  %1106 = vmatprep.subr.mxu0 0.0
  %1107 = vmatpush2.msra.mxu0 %v929
  %1108 = vmatprep.subr.mxu0 0.0
  %1109 = vmatpush2.msra.mxu0 %v928
  %1110 = vmatprep.mubr.f32.mxu0 %v107
  %1111 = vmatmul.mubr.f32.gmra.mxu0 %v16
  %v1112 = vpop.f32.mrf.mxu0
  %v1113 = vadd.f32 %v1013, %v1112
  %v1114 = vpop.f32.mrf.mxu0
  %1115 = vmatprep.mubr.f32.mxu0 %v110
  %1116 = vmatmul.mubr.f32.gmra.mxu0 %v20
  %v1117 = vpop.f32.mrf.mxu0
  %v1118 = vadd.f32 %v1018, %v1117
  %v1119 = vpop.f32.mrf.mxu0
  %1120 = vmatprep.mubr.f32.mxu0 %v113
  %1121 = vmatmul.mubr.f32.gmra.mxu0 %v24
  %v1122 = vpop.f32.mrf.mxu0
  %v1123 = vadd.f32 %v1023, %v1122
  %v1124 = vpop.f32.mrf.mxu0
  %1125 = vmatprep.mubr.f32.mxu0 %v116
  %1126 = vmatmul.mubr.f32.gmra.mxu0 %v28
  %v1127 = vpop.f32.mrf.mxu0
  %v1128 = vadd.f32 %v1028, %v1127
  %v1129 = vpop.f32.mrf.mxu0
  %1130 = vmatprep.mubr.f32.mxu0 %v119
  %1131 = vmatmul.mubr.f32.gmra.mxu0 %v32
  %v1132 = vpop.f32.mrf.mxu0
  %v1133 = vadd.f32 %v1033, %v1132
  %v1134 = vpop.f32.mrf.mxu0
  %1135 = vmatprep.mubr.f32.mxu0 %v122
  %1136 = vmatmul.mubr.f32.gmra.mxu0 %v36
  %v1137 = vpop.f32.mrf.mxu0
  %v1138 = vadd.f32 %v1038, %v1137
  %v1139 = vpop.f32.mrf.mxu0
  %1140 = vmatprep.mubr.f32.mxu0 %v125
  %1141 = vmatmul.mubr.f32.gmra.mxu0 %v40
  %v1142 = vpop.f32.mrf.mxu0
  %v1143 = vadd.f32 %v1043, %v1142
  %v1144 = vpop.f32.mrf.mxu0
  %1145 = vdwg.mxu0
  %v1146 = vmax.f32 %v872, %v1113
  %v1147 = vmax.f32 %v873, %v1118
  %v1148 = vmax.f32 %v874, %v1123
  %v1149 = vmax.f32 %v875, %v1128
  %v1150 = vmax.f32 %v876, %v1133
  %v1151 = vmax.f32 %v877, %v1138
  %v1152 = vmax.f32 %v878, %v1143
  %v1153 = vld [vmem:[%s1] sm:$0xff]
  %v1154 = vld [vmem:[%s1 + $0x8] sm:$0xff]
  %v1155 = vld [vmem:[%s1 + $0x10] sm:$0xff]
  %v1156 = vld [vmem:[%s1 + $0x18] sm:$0xff]
  %v1157 = vld [vmem:[%s1 + $0x20] sm:$0xff]
  %v1158 = vld [vmem:[%s1 + $0x28] sm:$0xff]
  %v1159 = vld [vmem:[%s1 + $0x30] sm:$0x3]
  %1161 = vset.pattern.permute.xlu0 0
  %1162 = vperm.xlu0 %1161, %v1153
  %v1163 = vpop.permute.xlu0 %1162
  %1166 = vset.pattern.permute.xlu0 0
  %1167 = vperm.xlu0 %1166, %v1154
  %v1168 = vpop.permute.xlu0 %1167
  %1171 = vset.pattern.permute.xlu0 0
  %1172 = vperm.xlu0 %1171, %v1155
  %v1173 = vpop.permute.xlu0 %1172
  %1176 = vset.pattern.permute.xlu0 0
  %1177 = vperm.xlu0 %1176, %v1156
  %v1178 = vpop.permute.xlu0 %1177
  %1181 = vset.pattern.permute.xlu0 0
  %1182 = vperm.xlu0 %1181, %v1157
  %v1183 = vpop.permute.xlu0 %1182
  %1186 = vset.pattern.permute.xlu0 0
  %1187 = vperm.xlu0 %1186, %v1158
  %v1188 = vpop.permute.xlu0 %1187
  %1191 = vset.pattern.permute.xlu0 0
  %1192 = vperm.xlu0 %1191, %v1159
  %v1193 = vpop.permute.xlu0 %1192
  %v1195 = vadd.f32 %v1146, %v1163
  %v1196 = vadd.f32 %v1147, %v1168
  %v1197 = vadd.f32 %v1148, %v1173
  %v1198 = vadd.f32 %v1149, %v1178
  %v1199 = vadd.f32 %v1150, %v1183
  %v1200 = vadd.f32 %v1151, %v1188
  %v1201 = vadd.f32 %v1152, %v1193
  %v1202 = vmax.f32 %v1195, 0.0
  %v1203 = vmax.f32 %v1196, 0.0
  %v1204 = vmax.f32 %v1197, 0.0
  %v1205 = vmax.f32 %v1198, 0.0
  %v1206 = vmax.f32 %v1199, 0.0
  %v1207 = vmax.f32 %v1200, 0.0
  %v1208 = vmax.f32 %v1201, 0.0
  %vm1209 = vcmask 261120
  %1210 = vst.msk [vmem:[%s3] sm:$0xff] %vm1209, %v1202
  %1211 = vst.msk [vmem:[%s3 + $0x8] sm:$0xff] %vm1209, %v1203
  %1212 = vst.msk [vmem:[%s3 + $0x10] sm:$0xff] %vm1209, %v1204
  %1213 = vst.msk [vmem:[%s3 + $0x18] sm:$0xff] %vm1209, %v1205
  %1214 = vst.msk [vmem:[%s3 + $0x20] sm:$0xff] %vm1209, %v1206
  %1215 = vst.msk [vmem:[%s3 + $0x28] sm:$0xff] %vm1209, %v1207
  %vm1216 = vcmask 254976
  %1217 = vst.msk [vmem:[%s3 + $0x30] sm:$0x3] %vm1216, %v1208
  // Predicated region
  $region14: #{network_forward.4} parent=0 // pred_check
    _
  $region15: #{network_forward.4} parent=0 // pred_check_branch
    %1219 = sbr.rel (0) target = $region17
  $region16: #{network_forward.4} parent=0 // pred_region
    _
  $region17: #{network_forward.4} parent=0 // pred_fallthru
    _
  // Predicated region
  $region18: #{network_forward.4} parent=0 // pred_check
    _
  $region19: #{network_forward.4} parent=0 // pred_check_branch
    %1221 = sbr.rel (0) target = $region21
  $region20: #{network_forward.4} parent=0 // pred_region
    _
  $region21: #{network_forward.4} parent=0 // pred_fallthru
    _

// kernel: network_forward.5
$region0: #{network_forward.5}
  #allocation0 [shape = 'u32[]', space=smem, size = 0x4, offset = 0x4, fixed_abs, tag = 'smem constant byte address 0x4 - core index']
  #allocation1 [shape = 'u32[144,128]{1,0:T(1,128)}', space=vmem, size = 0x12000, scoped, tag = 'internal scratch']
  %s0 = inlined_call_operand.vmem [shape: f32[2,800], index: 0, kind: input, shape index: {}]
  %s1 = inlined_call_operand.vmem [shape: f32[800,500], index: 1, kind: input, shape index: {}]
  %s2 = inlined_call_operand.vmem [shape: f32[1,500], index: 2, kind: input, shape index: {}]
  %s3 = inlined_call_operand.vmem [shape: f32[500,128], index: 3, kind: input, shape index: {}]
  %s4 = inlined_call_operand.vmem [shape: f32[1,128], index: 4, kind: input, shape index: {}]
  %s5 = inlined_call_operand.hbm [shape: f32[2,128], index: 5, kind: output, shape index: {}]
  %s6 = sld [smem:[#allocation0]]
  $region30: #{network_forward.5} parent=0
    _
  %s8 = ssub.s32 1, %s6
  %s9 = scalar_select 0, %s8, %s6
  $region1: #{network_forward.5} parent=0
    #allocation2 [shape = 'u8[1024]{0}', space=vmem, size = 0x400, scoped, tag = 'output window, operand 0, single buffered']
    #allocation3 [shape = 's32[1]{0}', space=sflag, size = 0x4, scoped, tag = 'scoped memory for network_forward.5']
    %10 = vsyncpa [#allocation3], 0
    // Predicated region
    $region2: #{network_forward.5} parent=1 // pred_check
      _
    $region3: #{network_forward.5} parent=1 // pred_check_branch
      %12 = sbr.rel (0) target = $region5
    $region4: #{network_forward.5} parent=1 // pred_region
      _
    $region5: #{network_forward.5} parent=1 // pred_fallthru
      _
    // Predicated region
    $region6: #{network_forward.5} parent=1 // pred_check
      _
    $region7: #{network_forward.5} parent=1 // pred_check_branch
      %14 = sbr.rel (0) target = $region9
    $region8: #{network_forward.5} parent=1 // pred_region
      _
    $region9: #{network_forward.5} parent=1 // pred_fallthru
      _
    // Predicated region
    $region10: #{network_forward.5} parent=1 // pred_check
      _
    $region11: #{network_forward.5} parent=1 // pred_check_branch
      %16 = sbr.rel (0) target = $region13
    $region12: #{network_forward.5} parent=1 // pred_region
      _
    $region13: #{network_forward.5} parent=1 // pred_fallthru
      _
    // Predicated region
    $region14: #{network_forward.5} parent=1 // pred_check
      _
    $region15: #{network_forward.5} parent=1 // pred_check_branch
      %18 = sbr.rel (0) target = $region17
    $region16: #{network_forward.5} parent=1 // pred_region
      _
    $region17: #{network_forward.5} parent=1 // pred_fallthru
      _
    // Predicated region
    $region18: #{network_forward.5} parent=1 // pred_check
      _
    $region19: #{network_forward.5} parent=1 // pred_check_branch
      %20 = sbr.rel (0) target = $region21
    $region20: #{network_forward.5} parent=1 // pred_region
      _
    $region21: #{network_forward.5} parent=1 // pred_fallthru
      _
    %v21 = vld [vmem:[%s0] sm:$0xff]
    %v22 = vld [vmem:[%s0 + $0x8] sm:$0x3f]
    %v23 = vld [vmem:[%s1] sm:$0xff]
    %v24 = vld [vmem:[%s1 + $0x8] sm:$0xff]
    %v25 = vld [vmem:[%s1 + $0x10] sm:$0xff]
    %v26 = vld [vmem:[%s1 + $0x18] sm:$0xff]
    %v27 = vld [vmem:[%s1 + $0x20] sm:$0xff]
    %v28 = vld [vmem:[%s1 + $0x28] sm:$0xff]
    %v29 = vld [vmem:[%s1 + $0x30] sm:$0xff]
    %v30 = vld [vmem:[%s1 + $0x38] sm:$0xff]
    %v31 = vld [vmem:[%s1 + $0x40] sm:$0xff]
    %v32 = vld [vmem:[%s1 + $0x48] sm:$0xff]
    %v33 = vld [vmem:[%s1 + $0x50] sm:$0xff]
    %v34 = vld [vmem:[%s1 + $0x58] sm:$0xff]
    %v35 = vld [vmem:[%s1 + $0x60] sm:$0xff]
    %v36 = vld [vmem:[%s1 + $0x68] sm:$0xff]
    %v37 = vld [vmem:[%s1 + $0x70] sm:$0xff]
    %v38 = vld [vmem:[%s1 + $0x78] sm:$0xff]
    %v39 = vld [vmem:[%s1 + $0x80] sm:$0xff]
    %v40 = vld [vmem:[%s1 + $0x88] sm:$0xff]
    %v41 = vld [vmem:[%s1 + $0x90] sm:$0xff]
    %v42 = vld [vmem:[%s1 + $0x98] sm:$0xff]
    %v43 = vld [vmem:[%s1 + $0xa0] sm:$0xff]
    %v44 = vld [vmem:[%s1 + $0xa8] sm:$0xff]
    %v45 = vld [vmem:[%s1 + $0xb0] sm:$0xff]
    %v46 = vld [vmem:[%s1 + $0xb8] sm:$0xff]
    %v47 = vld [vmem:[%s1 + $0xc0] sm:$0xff]
    %v48 = vld [vmem:[%s1 + $0xc8] sm:$0xff]
    %v49 = vld [vmem:[%s1 + $0xd0] sm:$0xff]
    %v50 = vld [vmem:[%s1 + $0xd8] sm:$0xff]
    %v51 = vld [vmem:[%s1 + $0xe0] sm:$0xff]
    %v52 = vld [vmem:[%s1 + $0xe8] sm:$0xff]
    %v53 = vld [vmem:[%s1 + $0xf0] sm:$0xff]
    %v54 = vld [vmem:[%s1 + $0xf8] sm:$0xff]
    %v55 = vld [vmem:[%s1 + $0x100] sm:$0xff]
    %v56 = vld [vmem:[%s1 + $0x108] sm:$0xff]
    %v57 = vld [vmem:[%s1 + $0x110] sm:$0xff]
    %v58 = vld [vmem:[%s1 + $0x118] sm:$0xff]
    %v59 = vld [vmem:[%s1 + $0x120] sm:$0xff]
    %v60 = vld [vmem:[%s1 + $0x128] sm:$0xff]
    %v61 = vld [vmem:[%s1 + $0x130] sm:$0xff]
    %v62 = vld [vmem:[%s1 + $0x138] sm:$0xff]
    %v63 = vld [vmem:[%s1 + $0x140] sm:$0xff]
    %v64 = vld [vmem:[%s1 + $0x148] sm:$0xff]
    %v65 = vld [vmem:[%s1 + $0x150] sm:$0xff]
    %v66 = vld [vmem:[%s1 + $0x158] sm:$0xff]
    %v67 = vld [vmem:[%s1 + $0x160] sm:$0xff]
    %v68 = vld [vmem:[%s1 + $0x168] sm:$0xff]
    %v69 = vld [vmem:[%s1 + $0x170] sm:$0xff]
    %v70 = vld [vmem:[%s1 + $0x178] sm:$0xff]
    %v71 = vld [vmem:[%s1 + $0x180] sm:$0xff]
    %v72 = vld [vmem:[%s1 + $0x188] sm:$0xff]
    %v73 = vld [vmem:[%s1 + $0x190] sm:$0xff]
    %v74 = vld [vmem:[%s1 + $0x198] sm:$0xff]
    %v75 = vld [vmem:[%s1 + $0x1a0] sm:$0xff]
    %v76 = vld [vmem:[%s1 + $0x1a8] sm:$0xff]
    %v77 = vld [vmem:[%s1 + $0x1b0] sm:$0xff]
    %v78 = vld [vmem:[%s1 + $0x1b8] sm:$0xff]
    %v79 = vld [vmem:[%s1 + $0x1c0] sm:$0xff]
    %v80 = vld [vmem:[%s1 + $0x1c8] sm:$0xff]
    %v81 = vld [vmem:[%s1 + $0x1d0] sm:$0xff]
    %v82 = vld [vmem:[%s1 + $0x1d8] sm:$0xff]
    %v83 = vld [vmem:[%s1 + $0x1e0] sm:$0xff]
    %v84 = vld [vmem:[%s1 + $0x1e8] sm:$0xff]
    %v85 = vld [vmem:[%s1 + $0x1f0] sm:$0xff]
    %v86 = vld [vmem:[%s1 + $0x1f8] sm:$0xff]
    %v87 = vld [vmem:[%s1 + $0x200] sm:$0xff]
    %v88 = vld [vmem:[%s1 + $0x208] sm:$0xff]
    %v89 = vld [vmem:[%s1 + $0x210] sm:$0xff]
    %v90 = vld [vmem:[%s1 + $0x218] sm:$0xff]
    %v91 = vld [vmem:[%s1 + $0x220] sm:$0xff]
    %v92 = vld [vmem:[%s1 + $0x228] sm:$0xff]
    %v93 = vld [vmem:[%s1 + $0x230] sm:$0xff]
    %v94 = vld [vmem:[%s1 + $0x238] sm:$0xff]
    %v95 = vld [vmem:[%s1 + $0x240] sm:$0xff]
    %v96 = vld [vmem:[%s1 + $0x248] sm:$0xff]
    %v97 = vld [vmem:[%s1 + $0x250] sm:$0xff]
    %v98 = vld [vmem:[%s1 + $0x258] sm:$0xff]
    %v99 = vld [vmem:[%s1 + $0x260] sm:$0xff]
    %v100 = vld [vmem:[%s1 + $0x268] sm:$0xff]
    %v101 = vld [vmem:[%s1 + $0x270] sm:$0xff]
    %v102 = vld [vmem:[%s1 + $0x278] sm:$0xff]
    %v103 = vld [vmem:[%s1 + $0x280] sm:$0xff]
    %v104 = vld [vmem:[%s1 + $0x288] sm:$0xff]
    %v105 = vld [vmem:[%s1 + $0x290] sm:$0xff]
    %v106 = vld [vmem:[%s1 + $0x298] sm:$0xff]
    %v107 = vld [vmem:[%s1 + $0x2a0] sm:$0xff]
    %v108 = vld [vmem:[%s1 + $0x2a8] sm:$0xff]
    %v109 = vld [vmem:[%s1 + $0x2b0] sm:$0xff]
    %v110 = vld [vmem:[%s1 + $0x2b8] sm:$0xff]
    %v111 = vld [vmem:[%s1 + $0x2c0] sm:$0xff]
    %v112 = vld [vmem:[%s1 + $0x2c8] sm:$0xff]
    %v113 = vld [vmem:[%s1 + $0x2d0] sm:$0xff]
    %v114 = vld [vmem:[%s1 + $0x2d8] sm:$0xff]
    %v115 = vld [vmem:[%s1 + $0x2e0] sm:$0xff]
    %v116 = vld [vmem:[%s1 + $0x2e8] sm:$0xff]
    %v117 = vld [vmem:[%s1 + $0x2f0] sm:$0xff]
    %v118 = vld [vmem:[%s1 + $0x2f8] sm:$0xff]
    %v119 = vld [vmem:[%s1 + $0x300] sm:$0xff]
    %v120 = vld [vmem:[%s1 + $0x308] sm:$0xff]
    %v121 = vld [vmem:[%s1 + $0x310] sm:$0xff]
    %v122 = vld [vmem:[%s1 + $0x318] sm:$0xff]
    %v123 = vld [vmem:[%s1 + $0x320] sm:$0xff]
    %v124 = vld [vmem:[%s1 + $0x328] sm:$0xff]
    %v125 = vld [vmem:[%s1 + $0x330] sm:$0xff]
    %v126 = vld [vmem:[%s1 + $0x338] sm:$0xff]
    %v127 = vld [vmem:[%s1 + $0x340] sm:$0xff]
    %v128 = vld [vmem:[%s1 + $0x348] sm:$0xff]
    %v129 = vld [vmem:[%s1 + $0x350] sm:$0xff]
    %v130 = vld [vmem:[%s1 + $0x358] sm:$0xff]
    %v131 = vld [vmem:[%s1 + $0x360] sm:$0xff]
    %v132 = vld [vmem:[%s1 + $0x368] sm:$0xff]
    %v133 = vld [vmem:[%s1 + $0x370] sm:$0xff]
    %v134 = vld [vmem:[%s1 + $0x378] sm:$0xff]
    %v135 = vld [vmem:[%s1 + $0x380] sm:$0xff]
    %v136 = vld [vmem:[%s1 + $0x388] sm:$0xff]
    %v137 = vld [vmem:[%s1 + $0x390] sm:$0xff]
    %v138 = vld [vmem:[%s1 + $0x398] sm:$0xff]
    %v139 = vld [vmem:[%s1 + $0x3a0] sm:$0xff]
    %v140 = vld [vmem:[%s1 + $0x3a8] sm:$0xff]
    %v141 = vld [vmem:[%s1 + $0x3b0] sm:$0xff]
    %v142 = vld [vmem:[%s1 + $0x3b8] sm:$0xff]
    %v143 = vld [vmem:[%s1 + $0x3c0] sm:$0xff]
    %v144 = vld [vmem:[%s1 + $0x3c8] sm:$0xff]
    %v145 = vld [vmem:[%s1 + $0x3d0] sm:$0xff]
    %v146 = vld [vmem:[%s1 + $0x3d8] sm:$0xff]
    %v147 = vld [vmem:[%s1 + $0x3e0] sm:$0xff]
    %v148 = vld [vmem:[%s1 + $0x3e8] sm:$0xff]
    %v149 = vld [vmem:[%s1 + $0x3f0] sm:$0xff]
    %v150 = vld [vmem:[%s1 + $0x3f8] sm:$0xff]
    %v151 = vld [vmem:[%s1 + $0x400] sm:$0xff]
    %v152 = vld [vmem:[%s1 + $0x408] sm:$0xff]
    %v153 = vld [vmem:[%s1 + $0x410] sm:$0xff]
    %v154 = vld [vmem:[%s1 + $0x418] sm:$0xff]
    %v155 = vld [vmem:[%s1 + $0x420] sm:$0xff]
    %v156 = vld [vmem:[%s1 + $0x428] sm:$0xff]
    %v157 = vld [vmem:[%s1 + $0x430] sm:$0xff]
    %v158 = vld [vmem:[%s1 + $0x438] sm:$0xff]
    %v159 = vld [vmem:[%s1 + $0x440] sm:$0xff]
    %v160 = vld [vmem:[%s1 + $0x448] sm:$0xff]
    %v161 = vld [vmem:[%s1 + $0x450] sm:$0xff]
    %v162 = vld [vmem:[%s1 + $0x458] sm:$0xff]
    %v163 = vld [vmem:[%s1 + $0x460] sm:$0xff]
    %v164 = vld [vmem:[%s1 + $0x468] sm:$0xff]
    %v165 = vld [vmem:[%s1 + $0x470] sm:$0xff]
    %v166 = vld [vmem:[%s1 + $0x478] sm:$0xff]
    %v167 = vld [vmem:[%s1 + $0x480] sm:$0xff]
    %v168 = vld [vmem:[%s1 + $0x488] sm:$0xff]
    %v169 = vld [vmem:[%s1 + $0x490] sm:$0xff]
    %v170 = vld [vmem:[%s1 + $0x498] sm:$0xff]
    %v171 = vld [vmem:[%s1 + $0x4a0] sm:$0xff]
    %v172 = vld [vmem:[%s1 + $0x4a8] sm:$0xff]
    %v173 = vld [vmem:[%s1 + $0x4b0] sm:$0xff]
    %v174 = vld [vmem:[%s1 + $0x4b8] sm:$0xff]
    %v175 = vld [vmem:[%s1 + $0x4c0] sm:$0xff]
    %v176 = vld [vmem:[%s1 + $0x4c8] sm:$0xff]
    %v177 = vld [vmem:[%s1 + $0x4d0] sm:$0xff]
    %v178 = vld [vmem:[%s1 + $0x4d8] sm:$0xff]
    %v179 = vld [vmem:[%s1 + $0x4e0] sm:$0xff]
    %v180 = vld [vmem:[%s1 + $0x4e8] sm:$0xff]
    %v181 = vld [vmem:[%s1 + $0x4f0] sm:$0xff]
    %v182 = vld [vmem:[%s1 + $0x4f8] sm:$0xff]
    %v183 = vld [vmem:[%s1 + $0x500] sm:$0xff]
    %v184 = vld [vmem:[%s1 + $0x508] sm:$0xff]
    %v185 = vld [vmem:[%s1 + $0x510] sm:$0xff]
    %v186 = vld [vmem:[%s1 + $0x518] sm:$0xff]
    %v187 = vld [vmem:[%s1 + $0x520] sm:$0xff]
    %v188 = vld [vmem:[%s1 + $0x528] sm:$0xff]
    %v189 = vld [vmem:[%s1 + $0x530] sm:$0xff]
    %v190 = vld [vmem:[%s1 + $0x538] sm:$0xff]
    %v191 = vld [vmem:[%s1 + $0x540] sm:$0xff]
    %v192 = vld [vmem:[%s1 + $0x548] sm:$0xff]
    %v193 = vld [vmem:[%s1 + $0x550] sm:$0xff]
    %v194 = vld [vmem:[%s1 + $0x558] sm:$0xff]
    %v195 = vld [vmem:[%s1 + $0x560] sm:$0xff]
    %v196 = vld [vmem:[%s1 + $0x568] sm:$0xff]
    %v197 = vld [vmem:[%s1 + $0x570] sm:$0xff]
    %v198 = vld [vmem:[%s1 + $0x578] sm:$0xff]
    %v199 = vld [vmem:[%s1 + $0x580] sm:$0xff]
    %v200 = vld [vmem:[%s1 + $0x588] sm:$0xff]
    %v201 = vld [vmem:[%s1 + $0x590] sm:$0xff]
    %v202 = vld [vmem:[%s1 + $0x598] sm:$0xff]
    %v203 = vld [vmem:[%s1 + $0x5a0] sm:$0xff]
    %v204 = vld [vmem:[%s1 + $0x5a8] sm:$0xff]
    %v205 = vld [vmem:[%s1 + $0x5b0] sm:$0xff]
    %v206 = vld [vmem:[%s1 + $0x5b8] sm:$0xff]
    %v207 = vld [vmem:[%s1 + $0x5c0] sm:$0xff]
    %v208 = vld [vmem:[%s1 + $0x5c8] sm:$0xff]
    %v209 = vld [vmem:[%s1 + $0x5d0] sm:$0xff]
    %v210 = vld [vmem:[%s1 + $0x5d8] sm:$0xff]
    %v211 = vld [vmem:[%s1 + $0x5e0] sm:$0xff]
    %v212 = vld [vmem:[%s1 + $0x5e8] sm:$0xff]
    %v213 = vld [vmem:[%s1 + $0x5f0] sm:$0xff]
    %v214 = vld [vmem:[%s1 + $0x5f8] sm:$0xff]
    %v215 = vld [vmem:[%s1 + $0x600] sm:$0xff]
    %v216 = vld [vmem:[%s1 + $0x608] sm:$0xff]
    %v217 = vld [vmem:[%s1 + $0x610] sm:$0xff]
    %v218 = vld [vmem:[%s1 + $0x618] sm:$0xff]
    %v219 = vld [vmem:[%s1 + $0x620] sm:$0xff]
    %v220 = vld [vmem:[%s1 + $0x628] sm:$0xff]
    %v221 = vld [vmem:[%s1 + $0x630] sm:$0xff]
    %v222 = vld [vmem:[%s1 + $0x638] sm:$0xff]
    %v223 = vld [vmem:[%s1 + $0x640] sm:$0xff]
    %v224 = vld [vmem:[%s1 + $0x648] sm:$0xff]
    %v225 = vld [vmem:[%s1 + $0x650] sm:$0xff]
    %v226 = vld [vmem:[%s1 + $0x658] sm:$0xff]
    %v227 = vld [vmem:[%s1 + $0x660] sm:$0xff]
    %v228 = vld [vmem:[%s1 + $0x668] sm:$0xff]
    %v229 = vld [vmem:[%s1 + $0x670] sm:$0xff]
    %v230 = vld [vmem:[%s1 + $0x678] sm:$0xff]
    %v231 = vld [vmem:[%s1 + $0x680] sm:$0xff]
    %v232 = vld [vmem:[%s1 + $0x688] sm:$0xff]
    %v233 = vld [vmem:[%s1 + $0x690] sm:$0xff]
    %v234 = vld [vmem:[%s1 + $0x698] sm:$0xff]
    %v235 = vld [vmem:[%s1 + $0x6a0] sm:$0xff]
    %v236 = vld [vmem:[%s1 + $0x6a8] sm:$0xff]
    %v237 = vld [vmem:[%s1 + $0x6b0] sm:$0xff]
    %v238 = vld [vmem:[%s1 + $0x6b8] sm:$0xff]
    %v239 = vld [vmem:[%s1 + $0x6c0] sm:$0xff]
    %v240 = vld [vmem:[%s1 + $0x6c8] sm:$0xff]
    %v241 = vld [vmem:[%s1 + $0x6d0] sm:$0xff]
    %v242 = vld [vmem:[%s1 + $0x6d8] sm:$0xff]
    %v243 = vld [vmem:[%s1 + $0x6e0] sm:$0xff]
    %v244 = vld [vmem:[%s1 + $0x6e8] sm:$0xff]
    %v245 = vld [vmem:[%s1 + $0x6f0] sm:$0xff]
    %v246 = vld [vmem:[%s1 + $0x6f8] sm:$0xff]
    %v247 = vld [vmem:[%s1 + $0x700] sm:$0xff]
    %v248 = vld [vmem:[%s1 + $0x708] sm:$0xff]
    %v249 = vld [vmem:[%s1 + $0x710] sm:$0xff]
    %v250 = vld [vmem:[%s1 + $0x718] sm:$0xff]
    %v251 = vld [vmem:[%s1 + $0x720] sm:$0xff]
    %v252 = vld [vmem:[%s1 + $0x728] sm:$0xff]
    %v253 = vld [vmem:[%s1 + $0x730] sm:$0xff]
    %v254 = vld [vmem:[%s1 + $0x738] sm:$0xff]
    %v255 = vld [vmem:[%s1 + $0x740] sm:$0xff]
    %v256 = vld [vmem:[%s1 + $0x748] sm:$0xff]
    %v257 = vld [vmem:[%s1 + $0x750] sm:$0xff]
    %v258 = vld [vmem:[%s1 + $0x758] sm:$0xff]
    %v259 = vld [vmem:[%s1 + $0x760] sm:$0xff]
    %v260 = vld [vmem:[%s1 + $0x768] sm:$0xff]
    %v261 = vld [vmem:[%s1 + $0x770] sm:$0xff]
    %v262 = vld [vmem:[%s1 + $0x778] sm:$0xff]
    %v263 = vld [vmem:[%s1 + $0x780] sm:$0xff]
    %v264 = vld [vmem:[%s1 + $0x788] sm:$0xff]
    %v265 = vld [vmem:[%s1 + $0x790] sm:$0xff]
    %v266 = vld [vmem:[%s1 + $0x798] sm:$0xff]
    %v267 = vld [vmem:[%s1 + $0x7a0] sm:$0xff]
    %v268 = vld [vmem:[%s1 + $0x7a8] sm:$0xff]
    %v269 = vld [vmem:[%s1 + $0x7b0] sm:$0xff]
    %v270 = vld [vmem:[%s1 + $0x7b8] sm:$0xff]
    %v271 = vld [vmem:[%s1 + $0x7c0] sm:$0xff]
    %v272 = vld [vmem:[%s1 + $0x7c8] sm:$0xff]
    %v273 = vld [vmem:[%s1 + $0x7d0] sm:$0xff]
    %v274 = vld [vmem:[%s1 + $0x7d8] sm:$0xff]
    %v275 = vld [vmem:[%s1 + $0x7e0] sm:$0xff]
    %v276 = vld [vmem:[%s1 + $0x7e8] sm:$0xff]
    %v277 = vld [vmem:[%s1 + $0x7f0] sm:$0xff]
    %v278 = vld [vmem:[%s1 + $0x7f8] sm:$0xff]
    %v279 = vld [vmem:[%s1 + $0x800] sm:$0xff]
    %v280 = vld [vmem:[%s1 + $0x808] sm:$0xff]
    %v281 = vld [vmem:[%s1 + $0x810] sm:$0xff]
    %v282 = vld [vmem:[%s1 + $0x818] sm:$0xff]
    %v283 = vld [vmem:[%s1 + $0x820] sm:$0xff]
    %v284 = vld [vmem:[%s1 + $0x828] sm:$0xff]
    %v285 = vld [vmem:[%s1 + $0x830] sm:$0xff]
    %v286 = vld [vmem:[%s1 + $0x838] sm:$0xff]
    %v287 = vld [vmem:[%s1 + $0x840] sm:$0xff]
    %v288 = vld [vmem:[%s1 + $0x848] sm:$0xff]
    %v289 = vld [vmem:[%s1 + $0x850] sm:$0xff]
    %v290 = vld [vmem:[%s1 + $0x858] sm:$0xff]
    %v291 = vld [vmem:[%s1 + $0x860] sm:$0xff]
    %v292 = vld [vmem:[%s1 + $0x868] sm:$0xff]
    %v293 = vld [vmem:[%s1 + $0x870] sm:$0xff]
    %v294 = vld [vmem:[%s1 + $0x878] sm:$0xff]
    %v295 = vld [vmem:[%s1 + $0x880] sm:$0xff]
    %v296 = vld [vmem:[%s1 + $0x888] sm:$0xff]
    %v297 = vld [vmem:[%s1 + $0x890] sm:$0xff]
    %v298 = vld [vmem:[%s1 + $0x898] sm:$0xff]
    %v299 = vld [vmem:[%s1 + $0x8a0] sm:$0xff]
    %v300 = vld [vmem:[%s1 + $0x8a8] sm:$0xff]
    %v301 = vld [vmem:[%s1 + $0x8b0] sm:$0xff]
    %v302 = vld [vmem:[%s1 + $0x8b8] sm:$0xff]
    %v303 = vld [vmem:[%s1 + $0x8c0] sm:$0xff]
    %v304 = vld [vmem:[%s1 + $0x8c8] sm:$0xff]
    %v305 = vld [vmem:[%s1 + $0x8d0] sm:$0xff]
    %v306 = vld [vmem:[%s1 + $0x8d8] sm:$0xff]
    %v307 = vld [vmem:[%s1 + $0x8e0] sm:$0xff]
    %v308 = vld [vmem:[%s1 + $0x8e8] sm:$0xff]
    %v309 = vld [vmem:[%s1 + $0x8f0] sm:$0xff]
    %v310 = vld [vmem:[%s1 + $0x8f8] sm:$0xff]
    %v311 = vld [vmem:[%s1 + $0x900] sm:$0xff]
    %v312 = vld [vmem:[%s1 + $0x908] sm:$0xff]
    %v313 = vld [vmem:[%s1 + $0x910] sm:$0xff]
    %v314 = vld [vmem:[%s1 + $0x918] sm:$0xff]
    %v315 = vld [vmem:[%s1 + $0x920] sm:$0xff]
    %v316 = vld [vmem:[%s1 + $0x928] sm:$0xff]
    %v317 = vld [vmem:[%s1 + $0x930] sm:$0xff]
    %v318 = vld [vmem:[%s1 + $0x938] sm:$0xff]
    %v319 = vld [vmem:[%s1 + $0x940] sm:$0xff]
    %v320 = vld [vmem:[%s1 + $0x948] sm:$0xff]
    %v321 = vld [vmem:[%s1 + $0x950] sm:$0xff]
    %v322 = vld [vmem:[%s1 + $0x958] sm:$0xff]
    %v323 = vld [vmem:[%s1 + $0x960] sm:$0xff]
    %v324 = vld [vmem:[%s1 + $0x968] sm:$0xff]
    %v325 = vld [vmem:[%s1 + $0x970] sm:$0xff]
    %v326 = vld [vmem:[%s1 + $0x978] sm:$0xff]
    %v327 = vld [vmem:[%s1 + $0x980] sm:$0xff]
    %v328 = vld [vmem:[%s1 + $0x988] sm:$0xff]
    %v329 = vld [vmem:[%s1 + $0x990] sm:$0xff]
    %v330 = vld [vmem:[%s1 + $0x998] sm:$0xff]
    %v331 = vld [vmem:[%s1 + $0x9a0] sm:$0xff]
    %v332 = vld [vmem:[%s1 + $0x9a8] sm:$0xff]
    %v333 = vld [vmem:[%s1 + $0x9b0] sm:$0xff]
    %v334 = vld [vmem:[%s1 + $0x9b8] sm:$0xff]
    %v335 = vld [vmem:[%s1 + $0x9c0] sm:$0xff]
    %v336 = vld [vmem:[%s1 + $0x9c8] sm:$0xff]
    %v337 = vld [vmem:[%s1 + $0x9d0] sm:$0xff]
    %v338 = vld [vmem:[%s1 + $0x9d8] sm:$0xff]
    %v339 = vld [vmem:[%s1 + $0x9e0] sm:$0xff]
    %v340 = vld [vmem:[%s1 + $0x9e8] sm:$0xff]
    %v341 = vld [vmem:[%s1 + $0x9f0] sm:$0xff]
    %v342 = vld [vmem:[%s1 + $0x9f8] sm:$0xff]
    %v343 = vld [vmem:[%s1 + $0xa00] sm:$0xff]
    %v344 = vld [vmem:[%s1 + $0xa08] sm:$0xff]
    %v345 = vld [vmem:[%s1 + $0xa10] sm:$0xff]
    %v346 = vld [vmem:[%s1 + $0xa18] sm:$0xff]
    %v347 = vld [vmem:[%s1 + $0xa20] sm:$0xff]
    %v348 = vld [vmem:[%s1 + $0xa28] sm:$0xff]
    %v349 = vld [vmem:[%s1 + $0xa30] sm:$0xff]
    %v350 = vld [vmem:[%s1 + $0xa38] sm:$0xff]
    %v351 = vld [vmem:[%s1 + $0xa40] sm:$0xff]
    %v352 = vld [vmem:[%s1 + $0xa48] sm:$0xff]
    %v353 = vld [vmem:[%s1 + $0xa50] sm:$0xff]
    %v354 = vld [vmem:[%s1 + $0xa58] sm:$0xff]
    %v355 = vld [vmem:[%s1 + $0xa60] sm:$0xff]
    %v356 = vld [vmem:[%s1 + $0xa68] sm:$0xff]
    %v357 = vld [vmem:[%s1 + $0xa70] sm:$0xff]
    %v358 = vld [vmem:[%s1 + $0xa78] sm:$0xff]
    %v359 = vld [vmem:[%s1 + $0xa80] sm:$0xff]
    %v360 = vld [vmem:[%s1 + $0xa88] sm:$0xff]
    %v361 = vld [vmem:[%s1 + $0xa90] sm:$0xff]
    %v362 = vld [vmem:[%s1 + $0xa98] sm:$0xff]
    %v363 = vld [vmem:[%s1 + $0xaa0] sm:$0xff]
    %v364 = vld [vmem:[%s1 + $0xaa8] sm:$0xff]
    %v365 = vld [vmem:[%s1 + $0xab0] sm:$0xff]
    %v366 = vld [vmem:[%s1 + $0xab8] sm:$0xff]
    %v367 = vld [vmem:[%s1 + $0xac0] sm:$0xff]
    %v368 = vld [vmem:[%s1 + $0xac8] sm:$0xff]
    %v369 = vld [vmem:[%s1 + $0xad0] sm:$0xff]
    %v370 = vld [vmem:[%s1 + $0xad8] sm:$0xff]
    %v371 = vld [vmem:[%s1 + $0xae0] sm:$0xff]
    %v372 = vld [vmem:[%s1 + $0xae8] sm:$0xff]
    %v373 = vld [vmem:[%s1 + $0xaf0] sm:$0xff]
    %v374 = vld [vmem:[%s1 + $0xaf8] sm:$0xff]
    %v375 = vld [vmem:[%s1 + $0xb00] sm:$0xff]
    %v376 = vld [vmem:[%s1 + $0xb08] sm:$0xff]
    %v377 = vld [vmem:[%s1 + $0xb10] sm:$0xff]
    %v378 = vld [vmem:[%s1 + $0xb18] sm:$0xff]
    %v379 = vld [vmem:[%s1 + $0xb20] sm:$0xff]
    %v380 = vld [vmem:[%s1 + $0xb28] sm:$0xff]
    %v381 = vld [vmem:[%s1 + $0xb30] sm:$0xff]
    %v382 = vld [vmem:[%s1 + $0xb38] sm:$0xff]
    %v383 = vld [vmem:[%s1 + $0xb40] sm:$0xff]
    %v384 = vld [vmem:[%s1 + $0xb48] sm:$0xff]
    %v385 = vld [vmem:[%s1 + $0xb50] sm:$0xff]
    %v386 = vld [vmem:[%s1 + $0xb58] sm:$0xff]
    %v387 = vld [vmem:[%s1 + $0xb60] sm:$0xff]
    %v388 = vld [vmem:[%s1 + $0xb68] sm:$0xff]
    %v389 = vld [vmem:[%s1 + $0xb70] sm:$0xff]
    %v390 = vld [vmem:[%s1 + $0xb78] sm:$0xff]
    %v391 = vld [vmem:[%s1 + $0xb80] sm:$0xff]
    %v392 = vld [vmem:[%s1 + $0xb88] sm:$0xff]
    %v393 = vld [vmem:[%s1 + $0xb90] sm:$0xff]
    %v394 = vld [vmem:[%s1 + $0xb98] sm:$0xff]
    %v395 = vld [vmem:[%s1 + $0xba0] sm:$0xff]
    %v396 = vld [vmem:[%s1 + $0xba8] sm:$0xff]
    %v397 = vld [vmem:[%s1 + $0xbb0] sm:$0xff]
    %v398 = vld [vmem:[%s1 + $0xbb8] sm:$0xff]
    %v399 = vld [vmem:[%s1 + $0xbc0] sm:$0xff]
    %v400 = vld [vmem:[%s1 + $0xbc8] sm:$0xff]
    %v401 = vld [vmem:[%s1 + $0xbd0] sm:$0xff]
    %v402 = vld [vmem:[%s1 + $0xbd8] sm:$0xff]
    %v403 = vld [vmem:[%s1 + $0xbe0] sm:$0xff]
    %v404 = vld [vmem:[%s1 + $0xbe8] sm:$0xff]
    %v405 = vld [vmem:[%s1 + $0xbf0] sm:$0xff]
    %v406 = vld [vmem:[%s1 + $0xbf8] sm:$0xff]
    %v407 = vld [vmem:[%s1 + $0xc00] sm:$0xff]
    %v408 = vld [vmem:[%s1 + $0xc08] sm:$0xff]
    %v409 = vld [vmem:[%s1 + $0xc10] sm:$0xff]
    %v410 = vld [vmem:[%s1 + $0xc18] sm:$0xff]
    %v411 = vld [vmem:[%s1 + $0xc20] sm:$0xff]
    %v412 = vld [vmem:[%s1 + $0xc28] sm:$0xff]
    %v413 = vld [vmem:[%s1 + $0xc30] sm:$0xff]
    %v414 = vld [vmem:[%s1 + $0xc38] sm:$0xff]
    %v415 = vld [vmem:[%s1 + $0xc40] sm:$0xff]
    %v416 = vld [vmem:[%s1 + $0xc48] sm:$0xff]
    %v417 = vld [vmem:[%s1 + $0xc50] sm:$0xff]
    %v418 = vld [vmem:[%s1 + $0xc58] sm:$0xff]
    %v419 = vld [vmem:[%s1 + $0xc60] sm:$0xff]
    %v420 = vld [vmem:[%s1 + $0xc68] sm:$0xff]
    %v421 = vld [vmem:[%s1 + $0xc70] sm:$0xff]
    %v422 = vld [vmem:[%s1 + $0xc78] sm:$0xff]
    %v423 = vld [vmem:[%s2] sm:$0xf]
    %v425 = vlaneseq
    %v426 = vshrl.u32 %v425, 7
    %v427 = vsub.s32 0, %v426
    %v428 = vrot.slane %v423, %v427
    %v429 = vlaneseq
    %v430 = vshrl.u32 %v429, 7
    %v431 = vsub.s32 1, %v430
    %v432 = vrot.slane %v423, %v431
    %v433 = vlaneseq
    %v434 = vshrl.u32 %v433, 7
    %v435 = vsub.s32 2, %v434
    %v436 = vrot.slane %v423, %v435
    %v437 = vlaneseq
    %v438 = vshrl.u32 %v437, 7
    %v439 = vsub.s32 3, %v438
    %v440 = vrot.slane %v423, %v439
    %v447 = vcombine.high %v21, %v21
    %v449 = vunpack.c.l.s4 1983009808
    %v450 = vunpack.c.0.s8 %v449
    %v451 = vlaneseq
    %v452 = vshrl.u32 %v451, 7
    %v453 = vsub.s32 %v450, %v452
    %v454 = vrot.slane %v21, %v453
    %v456 = vunpack.c.l.s4 1983009808
    %v457 = vunpack.c.0.s8 %v456
    %v458 = vlaneseq
    %v459 = vshrl.u32 %v458, 7
    %v460 = vsub.s32 %v457, %v459
    %v461 = vrot.slane %v447, %v460
    %v462 = vcombine.high %v454, %v454
    %v463 = vcombine.high %v461, %v461
    %v464 = vcombine.high %v22, %v22
    %v466 = vunpack.c.l.s4 1983009808
    %v467 = vunpack.c.0.s8 %v466
    %v468 = vlaneseq
    %v469 = vshrl.u32 %v468, 7
    %v470 = vsub.s32 %v467, %v469
    %v471 = vrot.slane %v22, %v470
    %v473 = vunpack.c.l.s4 1983009808
    %v474 = vunpack.c.0.s8 %v473
    %v475 = vlaneseq
    %v476 = vshrl.u32 %v475, 7
    %v477 = vsub.s32 %v474, %v476
    %v478 = vrot.slane %v464, %v477
    %v479 = vcombine.high %v471, %v471
    %vm486 = vcmask 261120
    %v487 = vsel %vm486, %v478, 0
    %489 = vmatprep.subr.mxu0 %v84
    %490 = vmatpush1.msra.mxu0 %v83
    %491 = vmatprep.subr.mxu0 %v80
    %492 = vmatpush1.msra.mxu0 %v79
    %493 = vmatprep.subr.mxu0 %v76
    %494 = vmatpush1.msra.mxu0 %v75
    %495 = vmatprep.subr.mxu0 %v72
    %496 = vmatpush1.msra.mxu0 %v71
    %497 = vmatprep.subr.mxu0 %v68
    %498 = vmatpush1.msra.mxu0 %v67
    %499 = vmatprep.subr.mxu0 %v64
    %500 = vmatpush1.msra.mxu0 %v63
    %501 = vmatprep.subr.mxu0 %v60
    %502 = vmatpush1.msra.mxu0 %v59
    %503 = vmatprep.subr.mxu0 %v56
    %504 = vmatpush1.msra.mxu0 %v55
    %505 = vmatprep.subr.mxu0 %v52
    %506 = vmatpush1.msra.mxu0 %v51
    %507 = vmatprep.subr.mxu0 %v48
    %508 = vmatpush1.msra.mxu0 %v47
    %509 = vmatprep.subr.mxu0 %v44
    %510 = vmatpush1.msra.mxu0 %v43
    %511 = vmatprep.subr.mxu0 %v40
    %512 = vmatpush1.msra.mxu0 %v39
    %513 = vmatprep.subr.mxu0 %v36
    %514 = vmatpush1.msra.mxu0 %v35
    %515 = vmatprep.subr.mxu0 %v32
    %516 = vmatpush1.msra.mxu0 %v31
    %517 = vmatprep.subr.mxu0 %v28
    %518 = vmatpush1.msra.mxu0 %v27
    %519 = vmatprep.subr.mxu0 %v24
    %520 = vmatpush1.msra.mxu0 %v23
    %521 = vmatprep.subr.mxu0 %v148
    %522 = vmatpush2.msra.mxu0 %v147
    %523 = vmatprep.subr.mxu0 %v144
    %524 = vmatpush2.msra.mxu0 %v143
    %525 = vmatprep.subr.mxu0 %v140
    %526 = vmatpush2.msra.mxu0 %v139
    %527 = vmatprep.subr.mxu0 %v136
    %528 = vmatpush2.msra.mxu0 %v135
    %529 = vmatprep.subr.mxu0 %v132
    %530 = vmatpush2.msra.mxu0 %v131
    %531 = vmatprep.subr.mxu0 %v128
    %532 = vmatpush2.msra.mxu0 %v127
    %533 = vmatprep.subr.mxu0 %v124
    %534 = vmatpush2.msra.mxu0 %v123
    %535 = vmatprep.subr.mxu0 %v120
    %536 = vmatpush2.msra.mxu0 %v119
    %537 = vmatprep.subr.mxu0 %v116
    %538 = vmatpush2.msra.mxu0 %v115
    %539 = vmatprep.subr.mxu0 %v112
    %540 = vmatpush2.msra.mxu0 %v111
    %541 = vmatprep.subr.mxu0 %v108
    %542 = vmatpush2.msra.mxu0 %v107
    %543 = vmatprep.subr.mxu0 %v104
    %544 = vmatpush2.msra.mxu0 %v103
    %545 = vmatprep.subr.mxu0 %v100
    %546 = vmatpush2.msra.mxu0 %v99
    %547 = vmatprep.subr.mxu0 %v96
    %548 = vmatpush2.msra.mxu0 %v95
    %549 = vmatprep.subr.mxu0 %v92
    %550 = vmatpush2.msra.mxu0 %v91
    %551 = vmatprep.subr.mxu0 %v88
    %552 = vmatpush2.msra.mxu0 %v87
    %553 = vmatprep.mubr.f32.mxu0 %v462
    %554 = vmatmul.mubr.f32.gmra.mxu0 %v454
    %v555 = vpop.f32.mrf.mxu0
    %v556 = vadd.f32 %v428, %v555
    %v557 = vpop.f32.mrf.mxu0
    %v558 = vadd.f32 %v432, %v557
    %559 = vdwg.mxu0
    %560 = vmatprep.subr.mxu0 %v212
    %561 = vmatpush1.msra.mxu0 %v211
    %562 = vmatprep.subr.mxu0 %v208
    %563 = vmatpush1.msra.mxu0 %v207
    %564 = vmatprep.subr.mxu0 %v204
    %565 = vmatpush1.msra.mxu0 %v203
    %566 = vmatprep.subr.mxu0 %v200
    %567 = vmatpush1.msra.mxu0 %v199
    %568 = vmatprep.subr.mxu0 %v196
    %569 = vmatpush1.msra.mxu0 %v195
    %570 = vmatprep.subr.mxu0 %v192
    %571 = vmatpush1.msra.mxu0 %v191
    %572 = vmatprep.subr.mxu0 %v188
    %573 = vmatpush1.msra.mxu0 %v187
    %574 = vmatprep.subr.mxu0 %v184
    %575 = vmatpush1.msra.mxu0 %v183
    %576 = vmatprep.subr.mxu0 %v180
    %577 = vmatpush1.msra.mxu0 %v179
    %578 = vmatprep.subr.mxu0 %v176
    %579 = vmatpush1.msra.mxu0 %v175
    %580 = vmatprep.subr.mxu0 %v172
    %581 = vmatpush1.msra.mxu0 %v171
    %582 = vmatprep.subr.mxu0 %v168
    %583 = vmatpush1.msra.mxu0 %v167
    %584 = vmatprep.subr.mxu0 %v164
    %585 = vmatpush1.msra.mxu0 %v163
    %586 = vmatprep.subr.mxu0 %v160
    %587 = vmatpush1.msra.mxu0 %v159
    %588 = vmatprep.subr.mxu0 %v156
    %589 = vmatpush1.msra.mxu0 %v155
    %590 = vmatprep.subr.mxu0 %v152
    %591 = vmatpush1.msra.mxu0 %v151
    %592 = vmatprep.subr.mxu0 %v276
    %593 = vmatpush2.msra.mxu0 %v275
    %594 = vmatprep.subr.mxu0 %v272
    %595 = vmatpush2.msra.mxu0 %v271
    %596 = vmatprep.subr.mxu0 %v268
    %597 = vmatpush2.msra.mxu0 %v267
    %598 = vmatprep.subr.mxu0 %v264
    %599 = vmatpush2.msra.mxu0 %v263
    %600 = vmatprep.subr.mxu0 %v260
    %601 = vmatpush2.msra.mxu0 %v259
    %602 = vmatprep.subr.mxu0 %v256
    %603 = vmatpush2.msra.mxu0 %v255
    %604 = vmatprep.subr.mxu0 %v252
    %605 = vmatpush2.msra.mxu0 %v251
    %606 = vmatprep.subr.mxu0 %v248
    %607 = vmatpush2.msra.mxu0 %v247
    %608 = vmatprep.subr.mxu0 %v244
    %609 = vmatpush2.msra.mxu0 %v243
    %610 = vmatprep.subr.mxu0 %v240
    %611 = vmatpush2.msra.mxu0 %v239
    %612 = vmatprep.subr.mxu0 %v236
    %613 = vmatpush2.msra.mxu0 %v235
    %614 = vmatprep.subr.mxu0 %v232
    %615 = vmatpush2.msra.mxu0 %v231
    %616 = vmatprep.subr.mxu0 %v228
    %617 = vmatpush2.msra.mxu0 %v227
    %618 = vmatprep.subr.mxu0 %v224
    %619 = vmatpush2.msra.mxu0 %v223
    %620 = vmatprep.subr.mxu0 %v220
    %621 = vmatpush2.msra.mxu0 %v219
    %622 = vmatprep.subr.mxu0 %v216
    %623 = vmatpush2.msra.mxu0 %v215
    %624 = vmatprep.mubr.f32.mxu0 %v463
    %625 = vmatmul.mubr.f32.gmra.mxu0 %v461
    %v626 = vpop.f32.mrf.mxu0
    %v627 = vadd.f32 %v556, %v626
    %v628 = vpop.f32.mrf.mxu0
    %v629 = vadd.f32 %v558, %v628
    %630 = vdwg.mxu0
    %631 = vmatprep.subr.mxu0 %v340
    %632 = vmatpush1.msra.mxu0 %v339
    %633 = vmatprep.subr.mxu0 %v336
    %634 = vmatpush1.msra.mxu0 %v335
    %635 = vmatprep.subr.mxu0 %v332
    %636 = vmatpush1.msra.mxu0 %v331
    %637 = vmatprep.subr.mxu0 %v328
    %638 = vmatpush1.msra.mxu0 %v327
    %639 = vmatprep.subr.mxu0 %v324
    %640 = vmatpush1.msra.mxu0 %v323
    %641 = vmatprep.subr.mxu0 %v320
    %642 = vmatpush1.msra.mxu0 %v319
    %643 = vmatprep.subr.mxu0 %v316
    %644 = vmatpush1.msra.mxu0 %v315
    %645 = vmatprep.subr.mxu0 %v312
    %646 = vmatpush1.msra.mxu0 %v311
    %647 = vmatprep.subr.mxu0 %v308
    %648 = vmatpush1.msra.mxu0 %v307
    %649 = vmatprep.subr.mxu0 %v304
    %650 = vmatpush1.msra.mxu0 %v303
    %651 = vmatprep.subr.mxu0 %v300
    %652 = vmatpush1.msra.mxu0 %v299
    %653 = vmatprep.subr.mxu0 %v296
    %654 = vmatpush1.msra.mxu0 %v295
    %655 = vmatprep.subr.mxu0 %v292
    %656 = vmatpush1.msra.mxu0 %v291
    %657 = vmatprep.subr.mxu0 %v288
    %658 = vmatpush1.msra.mxu0 %v287
    %659 = vmatprep.subr.mxu0 %v284
    %660 = vmatpush1.msra.mxu0 %v283
    %661 = vmatprep.subr.mxu0 %v280
    %662 = vmatpush1.msra.mxu0 %v279
    %663 = vmatprep.subr.mxu0 %v404
    %664 = vmatpush2.msra.mxu0 %v403
    %665 = vmatprep.subr.mxu0 %v400
    %666 = vmatpush2.msra.mxu0 %v399
    %667 = vmatprep.subr.mxu0 %v396
    %668 = vmatpush2.msra.mxu0 %v395
    %669 = vmatprep.subr.mxu0 %v392
    %670 = vmatpush2.msra.mxu0 %v391
    %671 = vmatprep.subr.mxu0 %v388
    %672 = vmatpush2.msra.mxu0 %v387
    %673 = vmatprep.subr.mxu0 %v384
    %674 = vmatpush2.msra.mxu0 %v383
    %675 = vmatprep.subr.mxu0 %v380
    %676 = vmatpush2.msra.mxu0 %v379
    %677 = vmatprep.subr.mxu0 %v376
    %678 = vmatpush2.msra.mxu0 %v375
    %679 = vmatprep.subr.mxu0 %v372
    %680 = vmatpush2.msra.mxu0 %v371
    %681 = vmatprep.subr.mxu0 %v368
    %682 = vmatpush2.msra.mxu0 %v367
    %683 = vmatprep.subr.mxu0 %v364
    %684 = vmatpush2.msra.mxu0 %v363
    %685 = vmatprep.subr.mxu0 %v360
    %686 = vmatpush2.msra.mxu0 %v359
    %687 = vmatprep.subr.mxu0 %v356
    %688 = vmatpush2.msra.mxu0 %v355
    %689 = vmatprep.subr.mxu0 %v352
    %690 = vmatpush2.msra.mxu0 %v351
    %691 = vmatprep.subr.mxu0 %v348
    %692 = vmatpush2.msra.mxu0 %v347
    %693 = vmatprep.subr.mxu0 %v344
    %694 = vmatpush2.msra.mxu0 %v343
    %695 = vmatprep.mubr.f32.mxu0 %v479
    %696 = vmatmul.mubr.f32.gmra.mxu0 %v471
    %v697 = vpop.f32.mrf.mxu0
    %v698 = vadd.f32 %v627, %v697
    %v699 = vpop.f32.mrf.mxu0
    %v700 = vadd.f32 %v629, %v699
    %701 = vdwg.mxu0
    %702 = vmatprep.subr.mxu0 0.0
    %703 = vmatpush1.msra.mxu0 0.0
    %704 = vmatprep.subr.mxu0 0.0
    %705 = vmatpush1.msra.mxu0 0.0
    %706 = vmatprep.subr.mxu0 0.0
    %707 = vmatpush1.msra.mxu0 0.0
    %708 = vmatprep.subr.mxu0 0.0
    %709 = vmatpush1.msra.mxu0 0.0
    %710 = vmatprep.subr.mxu0 0.0
    %711 = vmatpush1.msra.mxu0 0.0
    %712 = vmatprep.subr.mxu0 0.0
    %713 = vmatpush1.msra.mxu0 0.0
    %714 = vmatprep.subr.mxu0 0.0
    %715 = vmatpush1.msra.mxu0 0.0
    %716 = vmatprep.subr.mxu0 0.0
    %717 = vmatpush1.msra.mxu0 0.0
    %718 = vmatprep.subr.mxu0 0.0
    %719 = vmatpush1.msra.mxu0 0.0
    %720 = vmatprep.subr.mxu0 0.0
    %721 = vmatpush1.msra.mxu0 0.0
    %722 = vmatprep.subr.mxu0 0.0
    %723 = vmatpush1.msra.mxu0 0.0
    %724 = vmatprep.subr.mxu0 0.0
    %725 = vmatpush1.msra.mxu0 0.0
    %726 = vmatprep.subr.mxu0 %v420
    %727 = vmatpush1.msra.mxu0 %v419
    %728 = vmatprep.subr.mxu0 %v416
    %729 = vmatpush1.msra.mxu0 %v415
    %730 = vmatprep.subr.mxu0 %v412
    %731 = vmatpush1.msra.mxu0 %v411
    %732 = vmatprep.subr.mxu0 %v408
    %733 = vmatpush1.msra.mxu0 %v407
    %734 = vmatprep.subr.mxu0 0.0
    %735 = vmatpush2.msra.mxu0 0.0
    %736 = vmatprep.subr.mxu0 0.0
    %737 = vmatpush2.msra.mxu0 0.0
    %738 = vmatprep.subr.mxu0 0.0
    %739 = vmatpush2.msra.mxu0 0.0
    %740 = vmatprep.subr.mxu0 0.0
    %741 = vmatpush2.msra.mxu0 0.0
    %742 = vmatprep.subr.mxu0 0.0
    %743 = vmatpush2.msra.mxu0 0.0
    %744 = vmatprep.subr.mxu0 0.0
    %745 = vmatpush2.msra.mxu0 0.0
    %746 = vmatprep.subr.mxu0 0.0
    %747 = vmatpush2.msra.mxu0 0.0
    %748 = vmatprep.subr.mxu0 0.0
    %749 = vmatpush2.msra.mxu0 0.0
    %750 = vmatprep.subr.mxu0 0.0
    %751 = vmatpush2.msra.mxu0 0.0
    %752 = vmatprep.subr.mxu0 0.0
    %753 = vmatpush2.msra.mxu0 0.0
    %754 = vmatprep.subr.mxu0 0.0
    %755 = vmatpush2.msra.mxu0 0.0
    %756 = vmatprep.subr.mxu0 0.0
    %757 = vmatpush2.msra.mxu0 0.0
    %758 = vmatprep.subr.mxu0 0.0
    %759 = vmatpush2.msra.mxu0 0.0
    %760 = vmatprep.subr.mxu0 0.0
    %761 = vmatpush2.msra.mxu0 0.0
    %762 = vmatprep.subr.mxu0 0.0
    %763 = vmatpush2.msra.mxu0 0.0
    %764 = vmatprep.subr.mxu0 0.0
    %765 = vmatpush2.msra.mxu0 0.0
    %766 = vmatprep.mubr.f32.mxu0 0.0
    %767 = vmatmul.mubr.f32.gmra.mxu0 %v487
    %v768 = vpop.f32.mrf.mxu0
    %v769 = vadd.f32 %v698, %v768
    %v770 = vpop.f32.mrf.mxu0
    %v771 = vadd.f32 %v700, %v770
    %772 = vdwg.mxu0
    %773 = vmatprep.subr.mxu0 %v86
    %774 = vmatpush1.msra.mxu0 %v85
    %775 = vmatprep.subr.mxu0 %v82
    %776 = vmatpush1.msra.mxu0 %v81
    %777 = vmatprep.subr.mxu0 %v78
    %778 = vmatpush1.msra.mxu0 %v77
    %779 = vmatprep.subr.mxu0 %v74
    %780 = vmatpush1.msra.mxu0 %v73
    %781 = vmatprep.subr.mxu0 %v70
    %782 = vmatpush1.msra.mxu0 %v69
    %783 = vmatprep.subr.mxu0 %v66
    %784 = vmatpush1.msra.mxu0 %v65
    %785 = vmatprep.subr.mxu0 %v62
    %786 = vmatpush1.msra.mxu0 %v61
    %787 = vmatprep.subr.mxu0 %v58
    %788 = vmatpush1.msra.mxu0 %v57
    %789 = vmatprep.subr.mxu0 %v54
    %790 = vmatpush1.msra.mxu0 %v53
    %791 = vmatprep.subr.mxu0 %v50
    %792 = vmatpush1.msra.mxu0 %v49
    %793 = vmatprep.subr.mxu0 %v46
    %794 = vmatpush1.msra.mxu0 %v45
    %795 = vmatprep.subr.mxu0 %v42
    %796 = vmatpush1.msra.mxu0 %v41
    %797 = vmatprep.subr.mxu0 %v38
    %798 = vmatpush1.msra.mxu0 %v37
    %799 = vmatprep.subr.mxu0 %v34
    %800 = vmatpush1.msra.mxu0 %v33
    %801 = vmatprep.subr.mxu0 %v30
    %802 = vmatpush1.msra.mxu0 %v29
    %803 = vmatprep.subr.mxu0 %v26
    %804 = vmatpush1.msra.mxu0 %v25
    %805 = vmatprep.subr.mxu0 %v150
    %806 = vmatpush2.msra.mxu0 %v149
    %807 = vmatprep.subr.mxu0 %v146
    %808 = vmatpush2.msra.mxu0 %v145
    %809 = vmatprep.subr.mxu0 %v142
    %810 = vmatpush2.msra.mxu0 %v141
    %811 = vmatprep.subr.mxu0 %v138
    %812 = vmatpush2.msra.mxu0 %v137
    %813 = vmatprep.subr.mxu0 %v134
    %814 = vmatpush2.msra.mxu0 %v133
    %815 = vmatprep.subr.mxu0 %v130
    %816 = vmatpush2.msra.mxu0 %v129
    %817 = vmatprep.subr.mxu0 %v126
    %818 = vmatpush2.msra.mxu0 %v125
    %819 = vmatprep.subr.mxu0 %v122
    %820 = vmatpush2.msra.mxu0 %v121
    %821 = vmatprep.subr.mxu0 %v118
    %822 = vmatpush2.msra.mxu0 %v117
    %823 = vmatprep.subr.mxu0 %v114
    %824 = vmatpush2.msra.mxu0 %v113
    %825 = vmatprep.subr.mxu0 %v110
    %826 = vmatpush2.msra.mxu0 %v109
    %827 = vmatprep.subr.mxu0 %v106
    %828 = vmatpush2.msra.mxu0 %v105
    %829 = vmatprep.subr.mxu0 %v102
    %830 = vmatpush2.msra.mxu0 %v101
    %831 = vmatprep.subr.mxu0 %v98
    %832 = vmatpush2.msra.mxu0 %v97
    %833 = vmatprep.subr.mxu0 %v94
    %834 = vmatpush2.msra.mxu0 %v93
    %835 = vmatprep.subr.mxu0 %v90
    %836 = vmatpush2.msra.mxu0 %v89
    %837 = vmatprep.mubr.f32.mxu0 %v462
    %838 = vmatmul.mubr.f32.gmra.mxu0 %v454
    %v839 = vpop.f32.mrf.mxu0
    %v840 = vadd.f32 %v436, %v839
    %v841 = vpop.f32.mrf.mxu0
    %v842 = vadd.f32 %v440, %v841
    %843 = vdwg.mxu0
    %844 = vmatprep.subr.mxu0 %v214
    %845 = vmatpush1.msra.mxu0 %v213
    %846 = vmatprep.subr.mxu0 %v210
    %847 = vmatpush1.msra.mxu0 %v209
    %848 = vmatprep.subr.mxu0 %v206
    %849 = vmatpush1.msra.mxu0 %v205
    %850 = vmatprep.subr.mxu0 %v202
    %851 = vmatpush1.msra.mxu0 %v201
    %852 = vmatprep.subr.mxu0 %v198
    %853 = vmatpush1.msra.mxu0 %v197
    %854 = vmatprep.subr.mxu0 %v194
    %855 = vmatpush1.msra.mxu0 %v193
    %856 = vmatprep.subr.mxu0 %v190
    %857 = vmatpush1.msra.mxu0 %v189
    %858 = vmatprep.subr.mxu0 %v186
    %859 = vmatpush1.msra.mxu0 %v185
    %860 = vmatprep.subr.mxu0 %v182
    %861 = vmatpush1.msra.mxu0 %v181
    %862 = vmatprep.subr.mxu0 %v178
    %863 = vmatpush1.msra.mxu0 %v177
    %864 = vmatprep.subr.mxu0 %v174
    %865 = vmatpush1.msra.mxu0 %v173
    %866 = vmatprep.subr.mxu0 %v170
    %867 = vmatpush1.msra.mxu0 %v169
    %868 = vmatprep.subr.mxu0 %v166
    %869 = vmatpush1.msra.mxu0 %v165
    %870 = vmatprep.subr.mxu0 %v162
    %871 = vmatpush1.msra.mxu0 %v161
    %872 = vmatprep.subr.mxu0 %v158
    %873 = vmatpush1.msra.mxu0 %v157
    %874 = vmatprep.subr.mxu0 %v154
    %875 = vmatpush1.msra.mxu0 %v153
    %876 = vmatprep.subr.mxu0 %v278
    %877 = vmatpush2.msra.mxu0 %v277
    %878 = vmatprep.subr.mxu0 %v274
    %879 = vmatpush2.msra.mxu0 %v273
    %880 = vmatprep.subr.mxu0 %v270
    %881 = vmatpush2.msra.mxu0 %v269
    %882 = vmatprep.subr.mxu0 %v266
    %883 = vmatpush2.msra.mxu0 %v265
    %884 = vmatprep.subr.mxu0 %v262
    %885 = vmatpush2.msra.mxu0 %v261
    %886 = vmatprep.subr.mxu0 %v258
    %887 = vmatpush2.msra.mxu0 %v257
    %888 = vmatprep.subr.mxu0 %v254
    %889 = vmatpush2.msra.mxu0 %v253
    %890 = vmatprep.subr.mxu0 %v250
    %891 = vmatpush2.msra.mxu0 %v249
    %892 = vmatprep.subr.mxu0 %v246
    %893 = vmatpush2.msra.mxu0 %v245
    %894 = vmatprep.subr.mxu0 %v242
    %895 = vmatpush2.msra.mxu0 %v241
    %896 = vmatprep.subr.mxu0 %v238
    %897 = vmatpush2.msra.mxu0 %v237
    %898 = vmatprep.subr.mxu0 %v234
    %899 = vmatpush2.msra.mxu0 %v233
    %900 = vmatprep.subr.mxu0 %v230
    %901 = vmatpush2.msra.mxu0 %v229
    %902 = vmatprep.subr.mxu0 %v226
    %903 = vmatpush2.msra.mxu0 %v225
    %904 = vmatprep.subr.mxu0 %v222
    %905 = vmatpush2.msra.mxu0 %v221
    %906 = vmatprep.subr.mxu0 %v218
    %907 = vmatpush2.msra.mxu0 %v217
    %908 = vmatprep.mubr.f32.mxu0 %v463
    %909 = vmatmul.mubr.f32.gmra.mxu0 %v461
    %v910 = vpop.f32.mrf.mxu0
    %v911 = vadd.f32 %v840, %v910
    %v912 = vpop.f32.mrf.mxu0
    %v913 = vadd.f32 %v842, %v912
    %914 = vdwg.mxu0
    %915 = vmatprep.subr.mxu0 %v342
    %916 = vmatpush1.msra.mxu0 %v341
    %917 = vmatprep.subr.mxu0 %v338
    %918 = vmatpush1.msra.mxu0 %v337
    %919 = vmatprep.subr.mxu0 %v334
    %920 = vmatpush1.msra.mxu0 %v333
    %921 = vmatprep.subr.mxu0 %v330
    %922 = vmatpush1.msra.mxu0 %v329
    %923 = vmatprep.subr.mxu0 %v326
    %924 = vmatpush1.msra.mxu0 %v325
    %925 = vmatprep.subr.mxu0 %v322
    %926 = vmatpush1.msra.mxu0 %v321
    %927 = vmatprep.subr.mxu0 %v318
    %928 = vmatpush1.msra.mxu0 %v317
    %929 = vmatprep.subr.mxu0 %v314
    %930 = vmatpush1.msra.mxu0 %v313
    %931 = vmatprep.subr.mxu0 %v310
    %932 = vmatpush1.msra.mxu0 %v309
    %933 = vmatprep.subr.mxu0 %v306
    %934 = vmatpush1.msra.mxu0 %v305
    %935 = vmatprep.subr.mxu0 %v302
    %936 = vmatpush1.msra.mxu0 %v301
    %937 = vmatprep.subr.mxu0 %v298
    %938 = vmatpush1.msra.mxu0 %v297
    %939 = vmatprep.subr.mxu0 %v294
    %940 = vmatpush1.msra.mxu0 %v293
    %941 = vmatprep.subr.mxu0 %v290
    %942 = vmatpush1.msra.mxu0 %v289
    %943 = vmatprep.subr.mxu0 %v286
    %944 = vmatpush1.msra.mxu0 %v285
    %945 = vmatprep.subr.mxu0 %v282
    %946 = vmatpush1.msra.mxu0 %v281
    %947 = vmatprep.subr.mxu0 %v406
    %948 = vmatpush2.msra.mxu0 %v405
    %949 = vmatprep.subr.mxu0 %v402
    %950 = vmatpush2.msra.mxu0 %v401
    %951 = vmatprep.subr.mxu0 %v398
    %952 = vmatpush2.msra.mxu0 %v397
    %953 = vmatprep.subr.mxu0 %v394
    %954 = vmatpush2.msra.mxu0 %v393
    %955 = vmatprep.subr.mxu0 %v390
    %956 = vmatpush2.msra.mxu0 %v389
    %957 = vmatprep.subr.mxu0 %v386
    %958 = vmatpush2.msra.mxu0 %v385
    %959 = vmatprep.subr.mxu0 %v382
    %960 = vmatpush2.msra.mxu0 %v381
    %961 = vmatprep.subr.mxu0 %v378
    %962 = vmatpush2.msra.mxu0 %v377
    %963 = vmatprep.subr.mxu0 %v374
    %964 = vmatpush2.msra.mxu0 %v373
    %965 = vmatprep.subr.mxu0 %v370
    %966 = vmatpush2.msra.mxu0 %v369
    %967 = vmatprep.subr.mxu0 %v366
    %968 = vmatpush2.msra.mxu0 %v365
    %969 = vmatprep.subr.mxu0 %v362
    %970 = vmatpush2.msra.mxu0 %v361
    %971 = vmatprep.subr.mxu0 %v358
    %972 = vmatpush2.msra.mxu0 %v357
    %973 = vmatprep.subr.mxu0 %v354
    %974 = vmatpush2.msra.mxu0 %v353
    %975 = vmatprep.subr.mxu0 %v350
    %976 = vmatpush2.msra.mxu0 %v349
    %977 = vmatprep.subr.mxu0 %v346
    %978 = vmatpush2.msra.mxu0 %v345
    %979 = vmatprep.mubr.f32.mxu0 %v479
    %980 = vmatmul.mubr.f32.gmra.mxu0 %v471
    %v981 = vpop.f32.mrf.mxu0
    %v982 = vadd.f32 %v911, %v981
    %v983 = vpop.f32.mrf.mxu0
    %v984 = vadd.f32 %v913, %v983
    %985 = vdwg.mxu0
    %986 = vmatprep.subr.mxu0 0.0
    %987 = vmatpush1.msra.mxu0 0.0
    %988 = vmatprep.subr.mxu0 0.0
    %989 = vmatpush1.msra.mxu0 0.0
    %990 = vmatprep.subr.mxu0 0.0
    %991 = vmatpush1.msra.mxu0 0.0
    %992 = vmatprep.subr.mxu0 0.0
    %993 = vmatpush1.msra.mxu0 0.0
    %994 = vmatprep.subr.mxu0 0.0
    %995 = vmatpush1.msra.mxu0 0.0
    %996 = vmatprep.subr.mxu0 0.0
    %997 = vmatpush1.msra.mxu0 0.0
    %998 = vmatprep.subr.mxu0 0.0
    %999 = vmatpush1.msra.mxu0 0.0
    %1000 = vmatprep.subr.mxu0 0.0
    %1001 = vmatpush1.msra.mxu0 0.0
    %1002 = vmatprep.subr.mxu0 0.0
    %1003 = vmatpush1.msra.mxu0 0.0
    %1004 = vmatprep.subr.mxu0 0.0
    %1005 = vmatpush1.msra.mxu0 0.0
    %1006 = vmatprep.subr.mxu0 0.0
    %1007 = vmatpush1.msra.mxu0 0.0
    %1008 = vmatprep.subr.mxu0 0.0
    %1009 = vmatpush1.msra.mxu0 0.0
    %1010 = vmatprep.subr.mxu0 %v422
    %1011 = vmatpush1.msra.mxu0 %v421
    %1012 = vmatprep.subr.mxu0 %v418
    %1013 = vmatpush1.msra.mxu0 %v417
    %1014 = vmatprep.subr.mxu0 %v414
    %1015 = vmatpush1.msra.mxu0 %v413
    %1016 = vmatprep.subr.mxu0 %v410
    %1017 = vmatpush1.msra.mxu0 %v409
    %1018 = vmatprep.subr.mxu0 0.0
    %1019 = vmatpush2.msra.mxu0 0.0
    %1020 = vmatprep.subr.mxu0 0.0
    %1021 = vmatpush2.msra.mxu0 0.0
    %1022 = vmatprep.subr.mxu0 0.0
    %1023 = vmatpush2.msra.mxu0 0.0
    %1024 = vmatprep.subr.mxu0 0.0
    %1025 = vmatpush2.msra.mxu0 0.0
    %1026 = vmatprep.subr.mxu0 0.0
    %1027 = vmatpush2.msra.mxu0 0.0
    %1028 = vmatprep.subr.mxu0 0.0
    %1029 = vmatpush2.msra.mxu0 0.0
    %1030 = vmatprep.subr.mxu0 0.0
    %1031 = vmatpush2.msra.mxu0 0.0
    %1032 = vmatprep.subr.mxu0 0.0
    %1033 = vmatpush2.msra.mxu0 0.0
    %1034 = vmatprep.subr.mxu0 0.0
    %1035 = vmatpush2.msra.mxu0 0.0
    %1036 = vmatprep.subr.mxu0 0.0
    %1037 = vmatpush2.msra.mxu0 0.0
    %1038 = vmatprep.subr.mxu0 0.0
    %1039 = vmatpush2.msra.mxu0 0.0
    %1040 = vmatprep.subr.mxu0 0.0
    %1041 = vmatpush2.msra.mxu0 0.0
    %1042 = vmatprep.subr.mxu0 0.0
    %1043 = vmatpush2.msra.mxu0 0.0
    %1044 = vmatprep.subr.mxu0 0.0
    %1045 = vmatpush2.msra.mxu0 0.0
    %1046 = vmatprep.subr.mxu0 0.0
    %1047 = vmatpush2.msra.mxu0 0.0
    %1048 = vmatprep.subr.mxu0 0.0
    %1049 = vmatpush2.msra.mxu0 0.0
    %1050 = vmatprep.mubr.f32.mxu0 0.0
    %1051 = vmatmul.mubr.f32.gmra.mxu0 %v487
    %v1052 = vpop.f32.mrf.mxu0
    %v1053 = vadd.f32 %v982, %v1052
    %v1054 = vpop.f32.mrf.mxu0
    %v1055 = vadd.f32 %v984, %v1054
    %1056 = vdwg.mxu0
    %v1057 = vmax.f32 %v769, 0.0
    %v1058 = vmax.f32 %v771, 0.0
    %v1059 = vmax.f32 %v1053, 0.0
    %v1060 = vmax.f32 %v1055, 0.0
    %v1061 = vld [vmem:[%s3] sm:$0xff]
    %v1062 = vld [vmem:[%s3 + $0x8] sm:$0xff]
    %v1063 = vld [vmem:[%s3 + $0x10] sm:$0xff]
    %v1064 = vld [vmem:[%s3 + $0x18] sm:$0xff]
    %v1065 = vld [vmem:[%s3 + $0x20] sm:$0xff]
    %v1066 = vld [vmem:[%s3 + $0x28] sm:$0xff]
    %v1067 = vld [vmem:[%s3 + $0x30] sm:$0xff]
    %v1068 = vld [vmem:[%s3 + $0x38] sm:$0xff]
    %v1069 = vld [vmem:[%s3 + $0x40] sm:$0xff]
    %v1070 = vld [vmem:[%s3 + $0x48] sm:$0xff]
    %v1071 = vld [vmem:[%s3 + $0x50] sm:$0xff]
    %v1072 = vld [vmem:[%s3 + $0x58] sm:$0xff]
    %v1073 = vld [vmem:[%s3 + $0x60] sm:$0xff]
    %v1074 = vld [vmem:[%s3 + $0x68] sm:$0xff]
    %v1075 = vld [vmem:[%s3 + $0x70] sm:$0xff]
    %v1076 = vld [vmem:[%s3 + $0x78] sm:$0xff]
    %v1077 = vld [vmem:[%s3 + $0x80] sm:$0xff]
    %v1078 = vld [vmem:[%s3 + $0x88] sm:$0xff]
    %v1079 = vld [vmem:[%s3 + $0x90] sm:$0xff]
    %v1080 = vld [vmem:[%s3 + $0x98] sm:$0xff]
    %v1081 = vld [vmem:[%s3 + $0xa0] sm:$0xff]
    %v1082 = vld [vmem:[%s3 + $0xa8] sm:$0xff]
    %v1083 = vld [vmem:[%s3 + $0xb0] sm:$0xff]
    %v1084 = vld [vmem:[%s3 + $0xb8] sm:$0xff]
    %v1085 = vld [vmem:[%s3 + $0xc0] sm:$0xff]
    %v1086 = vld [vmem:[%s3 + $0xc8] sm:$0xff]
    %v1087 = vld [vmem:[%s3 + $0xd0] sm:$0xff]
    %v1088 = vld [vmem:[%s3 + $0xd8] sm:$0xff]
    %v1089 = vld [vmem:[%s3 + $0xe0] sm:$0xff]
    %v1090 = vld [vmem:[%s3 + $0xe8] sm:$0xff]
    %v1091 = vld [vmem:[%s3 + $0xf0] sm:$0xff]
    %v1092 = vld [vmem:[%s3 + $0xf8] sm:$0xff]
    %v1093 = vld [vmem:[%s3 + $0x100] sm:$0xff]
    %v1094 = vld [vmem:[%s3 + $0x108] sm:$0xff]
    %v1095 = vld [vmem:[%s3 + $0x110] sm:$0xff]
    %v1096 = vld [vmem:[%s3 + $0x118] sm:$0xff]
    %v1097 = vld [vmem:[%s3 + $0x120] sm:$0xff]
    %v1098 = vld [vmem:[%s3 + $0x128] sm:$0xff]
    %v1099 = vld [vmem:[%s3 + $0x130] sm:$0xff]
    %v1100 = vld [vmem:[%s3 + $0x138] sm:$0xff]
    %v1101 = vld [vmem:[%s3 + $0x140] sm:$0xff]
    %v1102 = vld [vmem:[%s3 + $0x148] sm:$0xff]
    %v1103 = vld [vmem:[%s3 + $0x150] sm:$0xff]
    %v1104 = vld [vmem:[%s3 + $0x158] sm:$0xff]
    %v1105 = vld [vmem:[%s3 + $0x160] sm:$0xff]
    %v1106 = vld [vmem:[%s3 + $0x168] sm:$0xff]
    %v1107 = vld [vmem:[%s3 + $0x170] sm:$0xff]
    %v1108 = vld [vmem:[%s3 + $0x178] sm:$0xff]
    %v1109 = vld [vmem:[%s3 + $0x180] sm:$0xff]
    %v1110 = vld [vmem:[%s3 + $0x188] sm:$0xff]
    %v1111 = vld [vmem:[%s3 + $0x190] sm:$0xff]
    %v1112 = vld [vmem:[%s3 + $0x198] sm:$0xff]
    %v1113 = vld [vmem:[%s3 + $0x1a0] sm:$0xff]
    %v1114 = vld [vmem:[%s3 + $0x1a8] sm:$0xff]
    %v1115 = vld [vmem:[%s3 + $0x1b0] sm:$0xff]
    %v1116 = vld [vmem:[%s3 + $0x1b8] sm:$0xff]
    %v1117 = vld [vmem:[%s3 + $0x1c0] sm:$0xff]
    %v1118 = vld [vmem:[%s3 + $0x1c8] sm:$0xff]
    %v1119 = vld [vmem:[%s3 + $0x1d0] sm:$0xff]
    %v1120 = vld [vmem:[%s3 + $0x1d8] sm:$0xff]
    %v1121 = vld [vmem:[%s3 + $0x1e0] sm:$0xff]
    %v1122 = vld [vmem:[%s3 + $0x1e8] sm:$0xff]
    %v1123 = vld [vmem:[%s3 + $0x1f0] sm:$0xf]
    %v1124 = vld [vmem:[%s4] sm:$0x1]
    %v1126 = vlaneseq
    %v1127 = vshrl.u32 %v1126, 7
    %v1128 = vsub.s32 0, %v1127
    %v1129 = vrot.slane %v1124, %v1128
    %vm1131 = vcmask 949248
    %v1133 = vsel %vm1131, %v1060, 0
    %vm1135 = vcmask 1043456
    %v1137 = vsel %vm1135, %v1123, 0
    %1139 = vmatprep.subr.mxu0 0.0
    %1140 = vmatpush1.msra.mxu0 %v1076
    %1141 = vmatprep.subr.mxu0 0.0
    %1142 = vmatpush1.msra.mxu0 %v1075
    %1143 = vmatprep.subr.mxu0 0.0
    %1144 = vmatpush1.msra.mxu0 %v1074
    %1145 = vmatprep.subr.mxu0 0.0
    %1146 = vmatpush1.msra.mxu0 %v1073
    %1147 = vmatprep.subr.mxu0 0.0
    %1148 = vmatpush1.msra.mxu0 %v1072
    %1149 = vmatprep.subr.mxu0 0.0
    %1150 = vmatpush1.msra.mxu0 %v1071
    %1151 = vmatprep.subr.mxu0 0.0
    %1152 = vmatpush1.msra.mxu0 %v1070
    %1153 = vmatprep.subr.mxu0 0.0
    %1154 = vmatpush1.msra.mxu0 %v1069
    %1155 = vmatprep.subr.mxu0 0.0
    %1156 = vmatpush1.msra.mxu0 %v1068
    %1157 = vmatprep.subr.mxu0 0.0
    %1158 = vmatpush1.msra.mxu0 %v1067
    %1159 = vmatprep.subr.mxu0 0.0
    %1160 = vmatpush1.msra.mxu0 %v1066
    %1161 = vmatprep.subr.mxu0 0.0
    %1162 = vmatpush1.msra.mxu0 %v1065
    %1163 = vmatprep.subr.mxu0 0.0
    %1164 = vmatpush1.msra.mxu0 %v1064
    %1165 = vmatprep.subr.mxu0 0.0
    %1166 = vmatpush1.msra.mxu0 %v1063
    %1167 = vmatprep.subr.mxu0 0.0
    %1168 = vmatpush1.msra.mxu0 %v1062
    %1169 = vmatprep.subr.mxu0 0.0
    %1170 = vmatpush1.msra.mxu0 %v1061
    %1171 = vmatprep.subr.mxu0 0.0
    %1172 = vmatpush2.msra.mxu0 %v1092
    %1173 = vmatprep.subr.mxu0 0.0
    %1174 = vmatpush2.msra.mxu0 %v1091
    %1175 = vmatprep.subr.mxu0 0.0
    %1176 = vmatpush2.msra.mxu0 %v1090
    %1177 = vmatprep.subr.mxu0 0.0
    %1178 = vmatpush2.msra.mxu0 %v1089
    %1179 = vmatprep.subr.mxu0 0.0
    %1180 = vmatpush2.msra.mxu0 %v1088
    %1181 = vmatprep.subr.mxu0 0.0
    %1182 = vmatpush2.msra.mxu0 %v1087
    %1183 = vmatprep.subr.mxu0 0.0
    %1184 = vmatpush2.msra.mxu0 %v1086
    %1185 = vmatprep.subr.mxu0 0.0
    %1186 = vmatpush2.msra.mxu0 %v1085
    %1187 = vmatprep.subr.mxu0 0.0
    %1188 = vmatpush2.msra.mxu0 %v1084
    %1189 = vmatprep.subr.mxu0 0.0
    %1190 = vmatpush2.msra.mxu0 %v1083
    %1191 = vmatprep.subr.mxu0 0.0
    %1192 = vmatpush2.msra.mxu0 %v1082
    %1193 = vmatprep.subr.mxu0 0.0
    %1194 = vmatpush2.msra.mxu0 %v1081
    %1195 = vmatprep.subr.mxu0 0.0
    %1196 = vmatpush2.msra.mxu0 %v1080
    %1197 = vmatprep.subr.mxu0 0.0
    %1198 = vmatpush2.msra.mxu0 %v1079
    %1199 = vmatprep.subr.mxu0 0.0
    %1200 = vmatpush2.msra.mxu0 %v1078
    %1201 = vmatprep.subr.mxu0 0.0
    %1202 = vmatpush2.msra.mxu0 %v1077
    %1203 = vmatprep.mubr.f32.mxu0 %v1058
    %1204 = vmatmul.mubr.f32.gmra.mxu0 %v1057
    %v1205 = vpop.f32.mrf.mxu0
    %v1206 = vadd.f32 %v1129, %v1205
    %v1207 = vpop.f32.mrf.mxu0
    %1208 = vdwg.mxu0
    %1209 = vmatprep.subr.mxu0 0.0
    %1210 = vmatpush1.msra.mxu0 %v1108
    %1211 = vmatprep.subr.mxu0 0.0
    %1212 = vmatpush1.msra.mxu0 %v1107
    %1213 = vmatprep.subr.mxu0 0.0
    %1214 = vmatpush1.msra.mxu0 %v1106
    %1215 = vmatprep.subr.mxu0 0.0
    %1216 = vmatpush1.msra.mxu0 %v1105
    %1217 = vmatprep.subr.mxu0 0.0
    %1218 = vmatpush1.msra.mxu0 %v1104
    %1219 = vmatprep.subr.mxu0 0.0
    %1220 = vmatpush1.msra.mxu0 %v1103
    %1221 = vmatprep.subr.mxu0 0.0
    %1222 = vmatpush1.msra.mxu0 %v1102
    %1223 = vmatprep.subr.mxu0 0.0
    %1224 = vmatpush1.msra.mxu0 %v1101
    %1225 = vmatprep.subr.mxu0 0.0
    %1226 = vmatpush1.msra.mxu0 %v1100
    %1227 = vmatprep.subr.mxu0 0.0
    %1228 = vmatpush1.msra.mxu0 %v1099
    %1229 = vmatprep.subr.mxu0 0.0
    %1230 = vmatpush1.msra.mxu0 %v1098
    %1231 = vmatprep.subr.mxu0 0.0
    %1232 = vmatpush1.msra.mxu0 %v1097
    %1233 = vmatprep.subr.mxu0 0.0
    %1234 = vmatpush1.msra.mxu0 %v1096
    %1235 = vmatprep.subr.mxu0 0.0
    %1236 = vmatpush1.msra.mxu0 %v1095
    %1237 = vmatprep.subr.mxu0 0.0
    %1238 = vmatpush1.msra.mxu0 %v1094
    %1239 = vmatprep.subr.mxu0 0.0
    %1240 = vmatpush1.msra.mxu0 %v1093
    %1241 = vmatprep.subr.mxu0 0.0
    %1242 = vmatpush2.msra.mxu0 0.0
    %1243 = vmatprep.subr.mxu0 0.0
    %1244 = vmatpush2.msra.mxu0 %v1137
    %1245 = vmatprep.subr.mxu0 0.0
    %1246 = vmatpush2.msra.mxu0 %v1122
    %1247 = vmatprep.subr.mxu0 0.0
    %1248 = vmatpush2.msra.mxu0 %v1121
    %1249 = vmatprep.subr.mxu0 0.0
    %1250 = vmatpush2.msra.mxu0 %v1120
    %1251 = vmatprep.subr.mxu0 0.0
    %1252 = vmatpush2.msra.mxu0 %v1119
    %1253 = vmatprep.subr.mxu0 0.0
    %1254 = vmatpush2.msra.mxu0 %v1118
    %1255 = vmatprep.subr.mxu0 0.0
    %1256 = vmatpush2.msra.mxu0 %v1117
    %1257 = vmatprep.subr.mxu0 0.0
    %1258 = vmatpush2.msra.mxu0 %v1116
    %1259 = vmatprep.subr.mxu0 0.0
    %1260 = vmatpush2.msra.mxu0 %v1115
    %1261 = vmatprep.subr.mxu0 0.0
    %1262 = vmatpush2.msra.mxu0 %v1114
    %1263 = vmatprep.subr.mxu0 0.0
    %1264 = vmatpush2.msra.mxu0 %v1113
    %1265 = vmatprep.subr.mxu0 0.0
    %1266 = vmatpush2.msra.mxu0 %v1112
    %1267 = vmatprep.subr.mxu0 0.0
    %1268 = vmatpush2.msra.mxu0 %v1111
    %1269 = vmatprep.subr.mxu0 0.0
    %1270 = vmatpush2.msra.mxu0 %v1110
    %1271 = vmatprep.subr.mxu0 0.0
    %1272 = vmatpush2.msra.mxu0 %v1109
    %1273 = vmatprep.mubr.f32.mxu0 %v1133
    %1274 = vmatmul.mubr.f32.gmra.mxu0 %v1059
    %v1275 = vpop.f32.mrf.mxu0
    %v1276 = vadd.f32 %v1206, %v1275
    %v1277 = vpop.f32.mrf.mxu0
    %1278 = vdwg.mxu0
    %vm1279 = vcmask 1041408
    %v1280 = vsel %vm1279, %v1276, -inf
    %1281 = vmax.xlane.f32.xlu0 %v1280
    %v1282 = vpop.xlane.xlu0 %1281
    %v1283 = vsub.f32 %v1276, %v1282
    %v1284 = vmul.f32 %v1283, 1.442695
    %v1285 = vpow.pop %v1284
    %v1286 = vsel %vm1279, %v1285, 0.0
    %1287 = vadd.xlane.f32.xlu0 %v1286
    %v1288 = vpop.xlane.xlu0 %1287
    %v1289 = vlog2.pop %v1288
    %v1290 = vmul.f32 %v1289, 0.6931472
    %v1291 = vadd.f32 %v1282, %v1290
    %v1292 = vsub.f32 %v1276, %v1291
    %1293 = vst [vmem:[#allocation2] sm:$0x3] %v1292
    // Predicated region
    $region22: #{network_forward.5} parent=1 // pred_check
      _
    $region23: #{network_forward.5} parent=1 // pred_check_branch
      %1295 = sbr.rel (0) target = $region25
    $region24: #{network_forward.5} parent=1 // pred_region
      %s1297 = ssub.s32 32, 32
      %1298 = vsyncadd [#allocation3], %s1297
      %s1300 = sshll.u32 [#allocation2], 4
      %s1301 = int_to_ptr.vmem [resolvable:$true] %s1300
      %1303 = dma.vmem_to_hbm [thread:$0]  %s1301, 32, %s5, [#allocation3]
    $region25: #{network_forward.5} parent=1 // pred_fallthru
      _
    // Predicated region
    $region26: #{network_forward.5} parent=1 // pred_check
      _
    $region27: #{network_forward.5} parent=1 // pred_check_branch
      %1305 = sbr.rel (0) target = $region29
    $region28: #{network_forward.5} parent=1 // pred_region
      %1306 = dma.done [#allocation3], 32
    $region29: #{network_forward.5} parent=1 // pred_fallthru
      _
    %1307 = vsyncpa [#allocation3], 1

</llo_original>
